<compile_context>
chip_gen: v7x
topology: tpu7x:2x2x1
jax: 0.10.0
libtpu: 0.0.40
codegen_flags: <defaults>
</compile_context>

<pallas_src>
import math
import functools

import jax
import jax.numpy as jnp
from jax import lax
from jax.experimental import pallas as pl
from jax.experimental.pallas import tpu as pltpu


def _round_up(x, m):
    return (x + m - 1) // m * m


# PyTorch LSTM gate order is (i, f, g, o); the kernel wants (i, f, o, g) so the
# three sigmoid gates are one contiguous 3H slab and the tanh gate is the last H.
_GATE_ORDER = (0, 1, 3, 2)


def _prep_gate_mat(w_t, H, Hp):
    """w_t: (Din, 4H) in PyTorch gate order -> (Din, 4Hp) in kernel order, gate-padded."""
    blocks = []
    for k in _GATE_ORDER:
        blk = w_t[:, k * H:(k + 1) * H]
        blocks.append(jnp.pad(blk, ((0, 0), (0, Hp - H))))
    return jnp.concatenate(blocks, axis=-1)


def _prep_gate_vec(b, H, Hp):
    """b: (1, 4H) in PyTorch gate order -> (1, 4Hp) in kernel order, gate-padded."""
    blocks = []
    for k in _GATE_ORDER:
        blocks.append(jnp.pad(b[:, k * H:(k + 1) * H], ((0, 0), (0, Hp - H))))
    return jnp.concatenate(blocks, axis=-1)


# ----------------------------------------------------------------------------
# Fused Pallas kernel: all LSTM layers + FC head, weights resident in VMEM.
# ----------------------------------------------------------------------------
def _make_fused_kernel(num_layers, unroll):
    n_in = 1 + 3 * num_layers + 4  # x, (W_ih,W_hh,b)*L, W_fc, b_fc, h0, c0

    def kernel(*refs):
        x_ref = refs[0]                                # (S, Bt, Vp)  time-major
        lw = refs[1:1 + 3 * num_layers]                # per-layer (W_ih^T, W_hh^T, bias)
        fcw_ref, fcb_ref, h0_ref, c0_ref = refs[1 + 3 * num_layers:n_in]
        out_ref, hN_ref, cN_ref = refs[n_in:n_in + 3]  # (S,Bt,Vp), (L,Bt,Hp), (L,Bt,Hp)
        seq_scr, gx_scr = refs[n_in + 3:n_in + 5]      # (S,Bt,Hp), (S,Bt,4Hp) scratch

        S, B, _ = x_ref.shape
        H = h0_ref.shape[-1]                           # = Hp (multiple of 128)

        for l in range(num_layers):
            wih_ref = lw[3 * l + 0]                    # (Din, 4H)  bf16/f32
            whh_ref = lw[3 * l + 1]                    # (H, 4H)    bf16/f32
            b_ref = lw[3 * l + 2]                      # (1, 4H)    f32

            # --- (1) input-side gate contribution for ALL timesteps at once
            #         (one big MXU pass, bf16 inputs, f32 accumulate).
            if l == 0:
                seq_in = x_ref[...]                    # (S, B, Vp)
            else:
                seq_in = seq_scr[...]                  # (S, B, Hp) previous layer output
            din = seq_in.shape[-1]
            gx = jnp.dot(seq_in.reshape(S * B, din), wih_ref[...],
                         preferred_element_type=jnp.float32) + b_ref[...]
            gx_scr[...] = gx.reshape(S, B, 4 * H).astype(gx_scr.dtype)

            whh = whh_ref[...]                         # stays on-chip across the loop

            # --- (2) sequential recurrence: one small matmul per step.
            def step(t, carry):
                h, c = carry                           # f32 (B, H)
                gates = gx_scr[t].astype(jnp.float32) + jnp.dot(
                    h.astype(whh.dtype), whh, preferred_element_type=jnp.float32)
                # Gate layout is (i, f, o | g): sigmoid only on the 3H slab,
                # tanh only on the last H slab (128-aligned lane slices).
                sig = jax.nn.sigmoid(gates[:, 0:3 * H])
                g_g = jnp.tanh(gates[:, 3 * H:4 * H])
                i_g = sig[:, 0 * H:1 * H]
                f_g = sig[:, 1 * H:2 * H]
                o_g = sig[:, 2 * H:3 * H]
                c_new = f_g * c + i_g * g_g
                h_new = o_g * jnp.tanh(c_new)
                # gx for this layer is fully precomputed, so reusing seq_scr
                # in-place for this layer's output sequence is safe.
                seq_scr[t] = h_new.astype(seq_scr.dtype)
                return (h_new, c_new)

            hT, cT = lax.fori_loop(0, S, step, (h0_ref[l], c0_ref[l]),
                                   unroll=unroll)
            hN_ref[l] = hT
            cN_ref[l] = cT

        # --- (3) FC head fused in: one big lane-dense matmul over the sequence.
        h_all = seq_scr[...].reshape(S * B, H)
        logits = (jnp.dot(h_all, fcw_ref[...], preferred_element_type=jnp.float32)
                  + fcb_ref[...])
        out_ref[...] = logits.reshape(S, B, -1).astype(out_ref.dtype)

    return kernel


# ----------------------------------------------------------------------------
# Host wrapper (mirror of CharModel.forward)
# ----------------------------------------------------------------------------
def char_model_forward(params, x, hidden, *, matmul_dtype=jnp.bfloat16):
    """x: (batch, seq, vocab) batch_first; hidden: (h0, c0) each (L, B, H).

    Returns (final_out (batch*seq, vocab), (hN, cN)).
    """
    h0_all, c0_all = hidden
    B, S, V = x.shape
    L, _, H = h0_all.shape
    Vp = _round_up(V, 128)   # lane-dense input / output feature dims
    Hp = _round_up(H, 128)   # lane-dense gate slices & hidden stores
    Bp = _round_up(B, 8)     # fill vreg sublanes / MXU rows

    # Batch-tile grid axis: 2 "parallel" tiles when the padded batch splits into
    # 16-aligned halves (lets v7x use both TensorCores; harmless on v5e/v6e).
    n_bt = 2 if (Bp >= 32 and Bp % 32 == 0) else 1
    Bt = Bp // n_bt

    # Time-major layout so the kernel indexes timesteps on the leading dim.
    x_tm = jnp.transpose(x, (1, 0, 2))                      # (S, B, V)
    x_tm = jnp.pad(x_tm, ((0, 0), (0, Bp - B), (0, Vp - V))).astype(matmul_dtype)
    h0 = jnp.pad(h0_all, ((0, 0), (0, Bp - B), (0, Hp - H)))
    c0 = jnp.pad(c0_all, ((0, 0), (0, Bp - B), (0, Hp - H)))

    # Weight prep: gate reorder (i,f,g,o)->(i,f,o,g), pad H->Hp per gate, pad
    # the layer-0 input rows V->Vp, cast matmul operands to bf16.
    flat_w = []
    for l, (w_ih_t, w_hh_t, b) in enumerate(params["lstm"]):
        din = V if l == 0 else H
        dinp = Vp if l == 0 else Hp
        wih = _prep_gate_mat(w_ih_t, H, Hp)
        wih = jnp.pad(wih, ((0, dinp - din), (0, 0)))
        whh = _prep_gate_mat(w_hh_t, H, Hp)
        whh = jnp.pad(whh, ((0, Hp - H), (0, 0)))
        bias = _prep_gate_vec(b, H, Hp)
        flat_w += [wih.astype(matmul_dtype), whh.astype(matmul_dtype),
                   bias.astype(jnp.float32)]

    w_fc_t, b_fc = params["fc"]                             # (H, V), (1, V)
    w_fc_p = jnp.pad(w_fc_t, ((0, Hp - H), (0, Vp - V))).astype(matmul_dtype)
    b_fc_p = jnp.pad(b_fc, ((0, 0), (0, Vp - V))).astype(jnp.float32)

    # BlockSpecs: batch tiled, everything else full-array & grid-constant.
    weight_specs = []
    for l in range(L):
        dinp = Vp if l == 0 else Hp
        weight_specs += [
            pl.BlockSpec((dinp, 4 * Hp), lambda b: (0, 0)),
            pl.BlockSpec((Hp, 4 * Hp), lambda b: (0, 0)),
            pl.BlockSpec((1, 4 * Hp), lambda b: (0, 0)),
        ]
    in_specs = (
        [pl.BlockSpec((S, Bt, Vp), lambda b: (0, b, 0))]
        + weight_specs
        + [pl.BlockSpec((Hp, Vp), lambda b: (0, 0)),
           pl.BlockSpec((1, Vp), lambda b: (0, 0)),
           pl.BlockSpec((L, Bt, Hp), lambda b: (0, b, 0)),
           pl.BlockSpec((L, Bt, Hp), lambda b: (0, b, 0))]
    )
    out_specs = (
        pl.BlockSpec((S, Bt, Vp), lambda b: (0, b, 0)),
        pl.BlockSpec((L, Bt, Hp), lambda b: (0, b, 0)),
        pl.BlockSpec((L, Bt, Hp), lambda b: (0, b, 0)),
    )
    out_shapes = (
        jax.ShapeDtypeStruct((S, Bp, Vp), jnp.float32),     # per-step logits (padded)
        jax.ShapeDtypeStruct((L, Bp, Hp), jnp.float32),     # h_N
        jax.ShapeDtypeStruct((L, Bp, Hp), jnp.float32),     # c_N
    )
    scratch_shapes = [
        pltpu.VMEM((S, Bt, Hp), matmul_dtype),              # layer output sequence (reused)
        pltpu.VMEM((S, Bt, 4 * Hp), matmul_dtype),          # precomputed x->gates per layer
    ]

    # Derive the VMEM limit from the actual footprint, capped per-generation.
    def _nbytes(shape, dtype):
        return math.prod(shape) * jnp.dtype(dtype).itemsize

    msz = jnp.dtype(matmul_dtype).itemsize
    in_bytes = _nbytes((S, Bt, Vp), matmul_dtype)
    for l in range(L):
        dinp = Vp if l == 0 else Hp
        in_bytes += (dinp * 4 * Hp + Hp * 4 * Hp) * msz + 4 * Hp * 4
    in_bytes += Hp * Vp * msz + Vp * 4
    in_bytes += 2 * _nbytes((L, Bt, Hp), jnp.float32)
    out_bytes = _nbytes((S, Bt, Vp), jnp.float32) + 2 * _nbytes((L, Bt, Hp), jnp.float32)
    scr_bytes = _nbytes((S, Bt, Hp), matmul_dtype) + _nbytes((S, Bt, 4 * Hp), matmul_dtype)
    need = 2 * (in_bytes + out_bytes) + scr_bytes + (8 << 20)   # dbl-buffer + headroom
    try:
        cap = int(pltpu.get_tpu_info().vmem_capacity_bytes)
    except Exception:
        cap = 64 << 20                                       # conservative (v7x per-core)
    vmem_limit = int(min(max(need, 32 << 20), int(cap * 0.85)))

    unroll = S if S <= 16 else 8
    kernel = _make_fused_kernel(L, unroll=unroll)

    out_tm, hN, cN = pl.pallas_call(
        kernel,
        grid=(n_bt,),
        in_specs=in_specs,
        out_specs=out_specs,
        out_shape=out_shapes,
        scratch_shapes=scratch_shapes,
        compiler_params=pltpu.CompilerParams(
            dimension_semantics=("parallel",),
            vmem_limit_bytes=vmem_limit),
    )(x_tm, *flat_w, w_fc_p, b_fc_p, h0, c0)

    # Un-pad + reorder rows to PyTorch's batch-major .view(-1, H) ordering.
    final_out = jnp.transpose(out_tm[:, :B, :V], (1, 0, 2)).reshape(B * S, V)
    return final_out, (hN[:, :B, :H], cN[:, :B, :H])


# ----------------------------------------------------------------------------
# Pure-JAX reference (for correctness check; f32, PyTorch gate order)
# ----------------------------------------------------------------------------
def _lstm_layer_ref(x_tm, w_ih_t, w_hh_t, bias, h0, c0):
    H = h0.shape[1]

    def step(carry, x_t):
        h, c = carry
        gates = x_t @ w_ih_t + h @ w_hh_t + bias
        i_g = jax.nn.sigmoid(gates[:, 0 * H:1 * H])
        f_g = jax.nn.sigmoid(gates[:, 1 * H:2 * H])
        g_g = jnp.tanh(gates[:, 2 * H:3 * H])
        o_g = jax.nn.sigmoid(gates[:, 3 * H:4 * H])
        c_new = f_g * c + i_g * g_g
        h_new = o_g * jnp.tanh(c_new)
        return (h_new, c_new), h_new

    (hT, cT), ys = lax.scan(step, (h0, c0), x_tm)
    return ys, hT, cT


def char_model_forward_ref(params, x, hidden):
    h0_all, c0_all = hidden
    x_tm = jnp.transpose(x, (1, 0, 2))
    layer_in = x_tm
    hs, cs = [], []
    for l in range(len(params["lstm"])):
        w_ih_t, w_hh_t, bias = params["lstm"][l]
        layer_in, hT, cT = _lstm_layer_ref(
            layer_in, w_ih_t, w_hh_t, bias, h0_all[l], c0_all[l])
        hs.append(hT)
        cs.append(cT)
    lstm_out = jnp.transpose(layer_in, (1, 0, 2))
    B, S, H = lstm_out.shape
    w_fc_t, b_fc = params["fc"]
    out = lstm_out.reshape(B * S, H) @ w_fc_t + b_fc
    return out, (jnp.stack(hs, 0), jnp.stack(cs, 0))


# ----------------------------------------------------------------------------
# Deterministic parameter init (PyTorch-style uniform(-1/sqrt(H), 1/sqrt(H)))
# ----------------------------------------------------------------------------
def init_params(key, vocab, hidden, num_layers):
    bound = 1.0 / jnp.sqrt(jnp.float32(hidden))
    lstm_params = []
    for l in range(num_layers):
        in_dim = vocab if l == 0 else hidden
        key, k1, k2, k3, k4 = jax.random.split(key, 5)
        w_ih = jax.random.uniform(k1, (4 * hidden, in_dim), jnp.float32, -bound, bound)
        w_hh = jax.random.uniform(k2, (4 * hidden, hidden), jnp.float32, -bound, bound)
        b_ih = jax.random.uniform(k3, (4 * hidden,), jnp.float32, -bound, bound)
        b_hh = jax.random.uniform(k4, (4 * hidden,), jnp.float32, -bound, bound)
        lstm_params.append(
            (w_ih.T, w_hh.T, (b_ih + b_hh).reshape(1, 4 * hidden)))
    key, k5, k6 = jax.random.split(key, 3)
    w_fc = jax.random.uniform(k5, (vocab, hidden), jnp.float32, -bound, bound)
    b_fc = jax.random.uniform(k6, (vocab,), jnp.float32, -bound, bound)
    return {"lstm": lstm_params, "fc": (w_fc.T, b_fc.reshape(1, vocab))}


# ----------------------------------------------------------------------------
# main
# ----------------------------------------------------------------------------
if __name__ == "__main__":
    VOCAB = 16       # len(all_chars)
    HIDDEN = 32      # num_hidden (scaled down from 256)
    LAYERS = 2       # num_layers (scaled down from 4)
    BATCH = 4        # wrapper pads batch to a multiple of 8 sublanes
    SEQ = 8

    key = jax.random.PRNGKey(0)
    key, kx = jax.random.split(key)
    params = init_params(key, VOCAB, HIDDEN, LAYERS)

    # batch_first input, like the PyTorch module
    x = jax.random.uniform(kx, (BATCH, SEQ, VOCAB), jnp.float32)
    h0 = jnp.zeros((LAYERS, BATCH, HIDDEN), jnp.float32)
    c0 = jnp.zeros((LAYERS, BATCH, HIDDEN), jnp.float32)

    ref_out, (ref_h, ref_c) = char_model_forward_ref(params, x, (h0, c0))

    # Default (performance) path: bf16 MXU operands, f32 accumulation/recurrence.
    forward_bf16 = jax.jit(char_model_forward)
    out_bf16, (h_bf16, c_bf16) = forward_bf16(params, x, (h0, c0))
    jax.block_until_ready((out_bf16, h_bf16, c_bf16))

    assert out_bf16.shape == (BATCH * SEQ, VOCAB)
    assert h_bf16.shape == (LAYERS, BATCH, HIDDEN) and c_bf16.shape == (LAYERS, BATCH, HIDDEN)
    assert jnp.allclose(out_bf16, ref_out, atol=5e-2, rtol=5e-2)
    assert jnp.allclose(h_bf16, ref_h, atol=5e-2, rtol=5e-2)
    assert jnp.allclose(c_bf16, ref_c, atol=5e-2, rtol=5e-2)

    # Strict correctness path: same kernel, f32 matmul operands.
    forward_f32 = jax.jit(functools.partial(char_model_forward,
                                            matmul_dtype=jnp.float32))
    out_f32, (h_f32, c_f32) = forward_f32(params, x, (h0, c0))
    jax.block_until_ready((out_f32, h_f32, c_f32))

    assert jnp.allclose(out_f32, ref_out, atol=1e-4, rtol=1e-4)
    assert jnp.allclose(h_f32, ref_h, atol=1e-4, rtol=1e-4)
    assert jnp.allclose(c_f32, ref_c, atol=1e-4, rtol=1e-4)

    print("KERNEL_OK")
</pallas_src>

<mosaic_0001>
module attributes {stable_mosaic.version = 11 : i64} {
  func.func @kernel(%arg0: i32, %arg1: memref<8x8x128xbf16, #tpu.memory_space<vmem>>, %arg2: memref<128x512xbf16, #tpu.memory_space<vmem>>, %arg3: memref<128x512xbf16, #tpu.memory_space<vmem>>, %arg4: memref<1x512xf32, #tpu.memory_space<vmem>>, %arg5: memref<128x512xbf16, #tpu.memory_space<vmem>>, %arg6: memref<128x512xbf16, #tpu.memory_space<vmem>>, %arg7: memref<1x512xf32, #tpu.memory_space<vmem>>, %arg8: memref<128x128xbf16, #tpu.memory_space<vmem>>, %arg9: memref<1x128xf32, #tpu.memory_space<vmem>>, %arg10: memref<2x8x128xf32, #tpu.memory_space<vmem>>, %arg11: memref<2x8x128xf32, #tpu.memory_space<vmem>>, %arg12: memref<8x8x128xf32, #tpu.memory_space<vmem>>, %arg13: memref<2x8x128xf32, #tpu.memory_space<vmem>>, %arg14: memref<2x8x128xf32, #tpu.memory_space<vmem>>, %arg15: memref<8x8x128xbf16, #tpu.memory_space<vmem>>, %arg16: memref<8x8x512xbf16, #tpu.memory_space<vmem>>) attributes {dimension_semantics = [#tpu.dimension_semantics<parallel>], iteration_bounds = array<i64: 1>, scalar_prefetch = 0 : i64, scratch_operands = 2 : i64, tpu.core_type = #tpu.core_type<tc>, window_params = [{transform_indices = @transform_0, window_bounds = array<i64: 8, 8, 128>}, {pipeline_mode = #tpu.pipeline_mode<synchronous>, transform_indices = @transform_1, window_bounds = array<i64: 128, 512>}, {pipeline_mode = #tpu.pipeline_mode<synchronous>, transform_indices = @transform_2, window_bounds = array<i64: 128, 512>}, {pipeline_mode = #tpu.pipeline_mode<synchronous>, transform_indices = @transform_3, window_bounds = array<i64: 1, 512>}, {pipeline_mode = #tpu.pipeline_mode<synchronous>, transform_indices = @transform_4, window_bounds = array<i64: 128, 512>}, {pipeline_mode = #tpu.pipeline_mode<synchronous>, transform_indices = @transform_5, window_bounds = array<i64: 128, 512>}, {pipeline_mode = #tpu.pipeline_mode<synchronous>, transform_indices = @transform_6, window_bounds = array<i64: 1, 512>}, {pipeline_mode = #tpu.pipeline_mode<synchronous>, transform_indices = @transform_7, window_bounds = array<i64: 128, 128>}, {pipeline_mode = #tpu.pipeline_mode<synchronous>, transform_indices = @transform_8, window_bounds = array<i64: 1, 128>}, {transform_indices = @transform_9, window_bounds = array<i64: 2, 8, 128>}, {transform_indices = @transform_10, window_bounds = array<i64: 2, 8, 128>}, {transform_indices = @transform_11, window_bounds = array<i64: 8, 8, 128>}, {transform_indices = @transform_12, window_bounds = array<i64: 2, 8, 128>}, {transform_indices = @transform_13, window_bounds = array<i64: 2, 8, 128>}]} {
    %c0 = arith.constant 0 : index
    %c0_0 = arith.constant 0 : index
    %c0_1 = arith.constant 0 : index
    %0 = vector.load %arg1[%c0, %c0_0, %c0_1] : memref<8x8x128xbf16, #tpu.memory_space<vmem>>, vector<8x8x128xbf16>
    %1 = vector.shape_cast %0 : vector<8x8x128xbf16> to vector<64x128xbf16>
    %c0_2 = arith.constant 0 : index
    %c0_3 = arith.constant 0 : index
    %2 = vector.load %arg2[%c0_2, %c0_3] : memref<128x512xbf16, #tpu.memory_space<vmem>>, vector<128x512xbf16>
    %cst = arith.constant dense<0.000000e+00> : vector<64x512xf32>
    %3 = tpu.matmul %1, %2, %cst {dimension_numbers = #tpu.dot_dimension_numbers<[1], [0], [0], [1], [0, 0, 1, 1], [], []>} : vector<64x128xbf16>, vector<128x512xbf16>, vector<64x512xf32> -> vector<64x512xf32>
    %c0_4 = arith.constant 0 : index
    %c0_5 = arith.constant 0 : index
    %4 = vector.load %arg4[%c0_4, %c0_5] : memref<1x512xf32, #tpu.memory_space<vmem>>, vector<1x512xf32>
    %5 = vector.broadcast %4 : vector<1x512xf32> to vector<64x512xf32>
    %6 = arith.addf %3, %5 : vector<64x512xf32>
    %7 = vector.shape_cast %6 : vector<64x512xf32> to vector<8x8x512xf32>
    %8 = arith.truncf %7 : vector<8x8x512xf32> to vector<8x8x512xbf16>
    %c0_6 = arith.constant 0 : index
    %c0_7 = arith.constant 0 : index
    %c0_8 = arith.constant 0 : index
    %9 = vector.load %arg16[%c0_6, %c0_7, %c0_8] : memref<8x8x512xbf16, #tpu.memory_space<vmem>>, vector<8x8x512xbf16>
    tpu.vector_store %arg16[%c0_6, %c0_7, %c0_8], %8 {strides = array<i32>} : memref<8x8x512xbf16, #tpu.memory_space<vmem>>, vector<8x8x512xbf16>,
    %c0_9 = arith.constant 0 : index
    %c0_10 = arith.constant 0 : index
    %10 = vector.load %arg3[%c0_9, %c0_10] : memref<128x512xbf16, #tpu.memory_space<vmem>>, vector<128x512xbf16>
    %c0_11 = arith.constant 0 : index
    %c0_12 = arith.constant 0 : index
    %c0_13 = arith.constant 0 : index
    %11 = vector.load %arg10[%c0_11, %c0_12, %c0_13] : memref<2x8x128xf32, #tpu.memory_space<vmem>>, vector<1x8x128xf32>
    %12 = vector.shape_cast %11 : vector<1x8x128xf32> to vector<8x128xf32>
    %c0_14 = arith.constant 0 : index
    %c0_15 = arith.constant 0 : index
    %c0_16 = arith.constant 0 : index
    %13 = vector.load %arg11[%c0_14, %c0_15, %c0_16] : memref<2x8x128xf32, #tpu.memory_space<vmem>>, vector<1x8x128xf32>
    %14 = vector.shape_cast %13 : vector<1x8x128xf32> to vector<8x128xf32>
    %c0_i32 = arith.constant 0 : i32
    %15 = arith.index_cast %c0_i32 : i32 to index
    %c0_17 = arith.constant 0 : index
    %c0_18 = arith.constant 0 : index
    %16 = vector.load %arg16[%15, %c0_17, %c0_18] : memref<8x8x512xbf16, #tpu.memory_space<vmem>>, vector<1x8x512xbf16>
    %17 = vector.shape_cast %16 : vector<1x8x512xbf16> to vector<8x512xbf16>
    %18 = arith.extf %17 : vector<8x512xbf16> to vector<8x512xf32>
    %19 = arith.truncf %12 : vector<8x128xf32> to vector<8x128xbf16>
    %cst_19 = arith.constant dense<0.000000e+00> : vector<8x512xf32>
    %20 = tpu.matmul %19, %10, %cst_19 {dimension_numbers = #tpu.dot_dimension_numbers<[1], [0], [0], [1], [0, 0, 1, 1], [], []>} : vector<8x128xbf16>, vector<128x512xbf16>, vector<8x512xf32> -> vector<8x512xf32>
    %21 = arith.addf %18, %20 : vector<8x512xf32>
    %22 = vector.extract_strided_slice %21 {offsets = [0, 0], sizes = [8, 384], strides = [1, 1]} : vector<8x512xf32> to vector<8x384xf32>
    %23 = arith.negf %22 : vector<8x384xf32>
    %24 = math.exp %23 : vector<8x384xf32>
    %cst_20 = arith.constant 1.000000e+00 : f32
    %25 = vector.broadcast %cst_20 : f32 to vector<8x384xf32>
    %26 = arith.addf %25, %24 : vector<8x384xf32>
    %27 = arith.divf %25, %26 : vector<8x384xf32>
    %28 = vector.extract_strided_slice %21 {offsets = [0, 384], sizes = [8, 128], strides = [1, 1]} : vector<8x512xf32> to vector<8x128xf32>
    %29 = math.tanh %28 : vector<8x128xf32>
    %30 = vector.extract_strided_slice %27 {offsets = [0, 0], sizes = [8, 128], strides = [1, 1]} : vector<8x384xf32> to vector<8x128xf32>
    %31 = vector.extract_strided_slice %27 {offsets = [0, 128], sizes = [8, 128], strides = [1, 1]} : vector<8x384xf32> to vector<8x128xf32>
    %32 = vector.extract_strided_slice %27 {offsets = [0, 256], sizes = [8, 128], strides = [1, 1]} : vector<8x384xf32> to vector<8x128xf32>
    %33 = arith.mulf %31, %14 : vector<8x128xf32>
    %34 = arith.mulf %30, %29 : vector<8x128xf32>
    %35 = arith.addf %33, %34 : vector<8x128xf32>
    %36 = math.tanh %35 : vector<8x128xf32>
    %37 = arith.mulf %32, %36 : vector<8x128xf32>
    %38 = arith.truncf %37 : vector<8x128xf32> to vector<8x128xbf16>
    %39 = arith.index_cast %c0_i32 : i32 to index
    %c0_21 = arith.constant 0 : index
    %c0_22 = arith.constant 0 : index
    %40 = vector.load %arg15[%39, %c0_21, %c0_22] : memref<8x8x128xbf16, #tpu.memory_space<vmem>>, vector<1x8x128xbf16>
    %41 = vector.shape_cast %40 : vector<1x8x128xbf16> to vector<8x128xbf16>
    %42 = vector.shape_cast %38 : vector<8x128xbf16> to vector<1x8x128xbf16>
    tpu.vector_store %arg15[%39, %c0_21, %c0_22], %42 {strides = array<i32>} : memref<8x8x128xbf16, #tpu.memory_space<vmem>>, vector<1x8x128xbf16>,
    %c1_i32 = arith.constant 1 : i32
    %43 = arith.index_cast %c1_i32 : i32 to index
    %c0_23 = arith.constant 0 : index
    %c0_24 = arith.constant 0 : index
    %44 = vector.load %arg16[%43, %c0_23, %c0_24] : memref<8x8x512xbf16, #tpu.memory_space<vmem>>, vector<1x8x512xbf16>
    %45 = vector.shape_cast %44 : vector<1x8x512xbf16> to vector<8x512xbf16>
    %46 = arith.extf %45 : vector<8x512xbf16> to vector<8x512xf32>
    %47 = arith.truncf %37 : vector<8x128xf32> to vector<8x128xbf16>
    %cst_25 = arith.constant dense<0.000000e+00> : vector<8x512xf32>
    %48 = tpu.matmul %47, %10, %cst_25 {dimension_numbers = #tpu.dot_dimension_numbers<[1], [0], [0], [1], [0, 0, 1, 1], [], []>} : vector<8x128xbf16>, vector<128x512xbf16>, vector<8x512xf32> -> vector<8x512xf32>
    %49 = arith.addf %46, %48 : vector<8x512xf32>
    %50 = vector.extract_strided_slice %49 {offsets = [0, 0], sizes = [8, 384], strides = [1, 1]} : vector<8x512xf32> to vector<8x384xf32>
    %51 = arith.negf %50 : vector<8x384xf32>
    %52 = math.exp %51 : vector<8x384xf32>
    %cst_26 = arith.constant 1.000000e+00 : f32
    %53 = vector.broadcast %cst_26 : f32 to vector<8x384xf32>
    %54 = arith.addf %53, %52 : vector<8x384xf32>
    %55 = arith.divf %53, %54 : vector<8x384xf32>
    %56 = vector.extract_strided_slice %49 {offsets = [0, 384], sizes = [8, 128], strides = [1, 1]} : vector<8x512xf32> to vector<8x128xf32>
    %57 = math.tanh %56 : vector<8x128xf32>
    %58 = vector.extract_strided_slice %55 {offsets = [0, 0], sizes = [8, 128], strides = [1, 1]} : vector<8x384xf32> to vector<8x128xf32>
    %59 = vector.extract_strided_slice %55 {offsets = [0, 128], sizes = [8, 128], strides = [1, 1]} : vector<8x384xf32> to vector<8x128xf32>
    %60 = vector.extract_strided_slice %55 {offsets = [0, 256], sizes = [8, 128], strides = [1, 1]} : vector<8x384xf32> to vector<8x128xf32>
    %61 = arith.mulf %59, %35 : vector<8x128xf32>
    %62 = arith.mulf %58, %57 : vector<8x128xf32>
    %63 = arith.addf %61, %62 : vector<8x128xf32>
    %64 = math.tanh %63 : vector<8x128xf32>
    %65 = arith.mulf %60, %64 : vector<8x128xf32>
    %66 = arith.truncf %65 : vector<8x128xf32> to vector<8x128xbf16>
    %67 = arith.index_cast %c1_i32 : i32 to index
    %c0_27 = arith.constant 0 : index
    %c0_28 = arith.constant 0 : index
    %68 = vector.load %arg15[%67, %c0_27, %c0_28] : memref<8x8x128xbf16, #tpu.memory_space<vmem>>, vector<1x8x128xbf16>
    %69 = vector.shape_cast %68 : vector<1x8x128xbf16> to vector<8x128xbf16>
    %70 = vector.shape_cast %66 : vector<8x128xbf16> to vector<1x8x128xbf16>
    tpu.vector_store %arg15[%67, %c0_27, %c0_28], %70 {strides = array<i32>} : memref<8x8x128xbf16, #tpu.memory_space<vmem>>, vector<1x8x128xbf16>,
    %c2_i32 = arith.constant 2 : i32
    %71 = arith.index_cast %c2_i32 : i32 to index
    %c0_29 = arith.constant 0 : index
    %c0_30 = arith.constant 0 : index
    %72 = vector.load %arg16[%71, %c0_29, %c0_30] : memref<8x8x512xbf16, #tpu.memory_space<vmem>>, vector<1x8x512xbf16>
    %73 = vector.shape_cast %72 : vector<1x8x512xbf16> to vector<8x512xbf16>
    %74 = arith.extf %73 : vector<8x512xbf16> to vector<8x512xf32>
    %75 = arith.truncf %65 : vector<8x128xf32> to vector<8x128xbf16>
    %cst_31 = arith.constant dense<0.000000e+00> : vector<8x512xf32>
    %76 = tpu.matmul %75, %10, %cst_31 {dimension_numbers = #tpu.dot_dimension_numbers<[1], [0], [0], [1], [0, 0, 1, 1], [], []>} : vector<8x128xbf16>, vector<128x512xbf16>, vector<8x512xf32> -> vector<8x512xf32>
    %77 = arith.addf %74, %76 : vector<8x512xf32>
    %78 = vector.extract_strided_slice %77 {offsets = [0, 0], sizes = [8, 384], strides = [1, 1]} : vector<8x512xf32> to vector<8x384xf32>
    %79 = arith.negf %78 : vector<8x384xf32>
    %80 = math.exp %79 : vector<8x384xf32>
    %cst_32 = arith.constant 1.000000e+00 : f32
    %81 = vector.broadcast %cst_32 : f32 to vector<8x384xf32>
    %82 = arith.addf %81, %80 : vector<8x384xf32>
    %83 = arith.divf %81, %82 : vector<8x384xf32>
    %84 = vector.extract_strided_slice %77 {offsets = [0, 384], sizes = [8, 128], strides = [1, 1]} : vector<8x512xf32> to vector<8x128xf32>
    %85 = math.tanh %84 : vector<8x128xf32>
    %86 = vector.extract_strided_slice %83 {offsets = [0, 0], sizes = [8, 128], strides = [1, 1]} : vector<8x384xf32> to vector<8x128xf32>
    %87 = vector.extract_strided_slice %83 {offsets = [0, 128], sizes = [8, 128], strides = [1, 1]} : vector<8x384xf32> to vector<8x128xf32>
    %88 = vector.extract_strided_slice %83 {offsets = [0, 256], sizes = [8, 128], strides = [1, 1]} : vector<8x384xf32> to vector<8x128xf32>
    %89 = arith.mulf %87, %63 : vector<8x128xf32>
    %90 = arith.mulf %86, %85 : vector<8x128xf32>
    %91 = arith.addf %89, %90 : vector<8x128xf32>
    %92 = math.tanh %91 : vector<8x128xf32>
    %93 = arith.mulf %88, %92 : vector<8x128xf32>
    %94 = arith.truncf %93 : vector<8x128xf32> to vector<8x128xbf16>
    %95 = arith.index_cast %c2_i32 : i32 to index
    %c0_33 = arith.constant 0 : index
    %c0_34 = arith.constant 0 : index
    %96 = vector.load %arg15[%95, %c0_33, %c0_34] : memref<8x8x128xbf16, #tpu.memory_space<vmem>>, vector<1x8x128xbf16>
    %97 = vector.shape_cast %96 : vector<1x8x128xbf16> to vector<8x128xbf16>
    %98 = vector.shape_cast %94 : vector<8x128xbf16> to vector<1x8x128xbf16>
    tpu.vector_store %arg15[%95, %c0_33, %c0_34], %98 {strides = array<i32>} : memref<8x8x128xbf16, #tpu.memory_space<vmem>>, vector<1x8x128xbf16>,
    %c3_i32 = arith.constant 3 : i32
    %99 = arith.index_cast %c3_i32 : i32 to index
    %c0_35 = arith.constant 0 : index
    %c0_36 = arith.constant 0 : index
    %100 = vector.load %arg16[%99, %c0_35, %c0_36] : memref<8x8x512xbf16, #tpu.memory_space<vmem>>, vector<1x8x512xbf16>
    %101 = vector.shape_cast %100 : vector<1x8x512xbf16> to vector<8x512xbf16>
    %102 = arith.extf %101 : vector<8x512xbf16> to vector<8x512xf32>
    %103 = arith.truncf %93 : vector<8x128xf32> to vector<8x128xbf16>
    %cst_37 = arith.constant dense<0.000000e+00> : vector<8x512xf32>
    %104 = tpu.matmul %103, %10, %cst_37 {dimension_numbers = #tpu.dot_dimension_numbers<[1], [0], [0], [1], [0, 0, 1, 1], [], []>} : vector<8x128xbf16>, vector<128x512xbf16>, vector<8x512xf32> -> vector<8x512xf32>
    %105 = arith.addf %102, %104 : vector<8x512xf32>
    %106 = vector.extract_strided_slice %105 {offsets = [0, 0], sizes = [8, 384], strides = [1, 1]} : vector<8x512xf32> to vector<8x384xf32>
    %107 = arith.negf %106 : vector<8x384xf32>
    %108 = math.exp %107 : vector<8x384xf32>
    %cst_38 = arith.constant 1.000000e+00 : f32
    %109 = vector.broadcast %cst_38 : f32 to vector<8x384xf32>
    %110 = arith.addf %109, %108 : vector<8x384xf32>
    %111 = arith.divf %109, %110 : vector<8x384xf32>
    %112 = vector.extract_strided_slice %105 {offsets = [0, 384], sizes = [8, 128], strides = [1, 1]} : vector<8x512xf32> to vector<8x128xf32>
    %113 = math.tanh %112 : vector<8x128xf32>
    %114 = vector.extract_strided_slice %111 {offsets = [0, 0], sizes = [8, 128], strides = [1, 1]} : vector<8x384xf32> to vector<8x128xf32>
    %115 = vector.extract_strided_slice %111 {offsets = [0, 128], sizes = [8, 128], strides = [1, 1]} : vector<8x384xf32> to vector<8x128xf32>
    %116 = vector.extract_strided_slice %111 {offsets = [0, 256], sizes = [8, 128], strides = [1, 1]} : vector<8x384xf32> to vector<8x128xf32>
    %117 = arith.mulf %115, %91 : vector<8x128xf32>
    %118 = arith.mulf %114, %113 : vector<8x128xf32>
    %119 = arith.addf %117, %118 : vector<8x128xf32>
    %120 = math.tanh %119 : vector<8x128xf32>
    %121 = arith.mulf %116, %120 : vector<8x128xf32>
    %122 = arith.truncf %121 : vector<8x128xf32> to vector<8x128xbf16>
    %123 = arith.index_cast %c3_i32 : i32 to index
    %c0_39 = arith.constant 0 : index
    %c0_40 = arith.constant 0 : index
    %124 = vector.load %arg15[%123, %c0_39, %c0_40] : memref<8x8x128xbf16, #tpu.memory_space<vmem>>, vector<1x8x128xbf16>
    %125 = vector.shape_cast %124 : vector<1x8x128xbf16> to vector<8x128xbf16>
    %126 = vector.shape_cast %122 : vector<8x128xbf16> to vector<1x8x128xbf16>
    tpu.vector_store %arg15[%123, %c0_39, %c0_40], %126 {strides = array<i32>} : memref<8x8x128xbf16, #tpu.memory_space<vmem>>, vector<1x8x128xbf16>,
    %c4_i32 = arith.constant 4 : i32
    %127 = arith.index_cast %c4_i32 : i32 to index
    %c0_41 = arith.constant 0 : index
    %c0_42 = arith.constant 0 : index
    %128 = vector.load %arg16[%127, %c0_41, %c0_42] : memref<8x8x512xbf16, #tpu.memory_space<vmem>>, vector<1x8x512xbf16>
    %129 = vector.shape_cast %128 : vector<1x8x512xbf16> to vector<8x512xbf16>
    %130 = arith.extf %129 : vector<8x512xbf16> to vector<8x512xf32>
    %131 = arith.truncf %121 : vector<8x128xf32> to vector<8x128xbf16>
    %cst_43 = arith.constant dense<0.000000e+00> : vector<8x512xf32>
    %132 = tpu.matmul %131, %10, %cst_43 {dimension_numbers = #tpu.dot_dimension_numbers<[1], [0], [0], [1], [0, 0, 1, 1], [], []>} : vector<8x128xbf16>, vector<128x512xbf16>, vector<8x512xf32> -> vector<8x512xf32>
    %133 = arith.addf %130, %132 : vector<8x512xf32>
    %134 = vector.extract_strided_slice %133 {offsets = [0, 0], sizes = [8, 384], strides = [1, 1]} : vector<8x512xf32> to vector<8x384xf32>
    %135 = arith.negf %134 : vector<8x384xf32>
    %136 = math.exp %135 : vector<8x384xf32>
    %cst_44 = arith.constant 1.000000e+00 : f32
    %137 = vector.broadcast %cst_44 : f32 to vector<8x384xf32>
    %138 = arith.addf %137, %136 : vector<8x384xf32>
    %139 = arith.divf %137, %138 : vector<8x384xf32>
    %140 = vector.extract_strided_slice %133 {offsets = [0, 384], sizes = [8, 128], strides = [1, 1]} : vector<8x512xf32> to vector<8x128xf32>
    %141 = math.tanh %140 : vector<8x128xf32>
    %142 = vector.extract_strided_slice %139 {offsets = [0, 0], sizes = [8, 128], strides = [1, 1]} : vector<8x384xf32> to vector<8x128xf32>
    %143 = vector.extract_strided_slice %139 {offsets = [0, 128], sizes = [8, 128], strides = [1, 1]} : vector<8x384xf32> to vector<8x128xf32>
    %144 = vector.extract_strided_slice %139 {offsets = [0, 256], sizes = [8, 128], strides = [1, 1]} : vector<8x384xf32> to vector<8x128xf32>
    %145 = arith.mulf %143, %119 : vector<8x128xf32>
    %146 = arith.mulf %142, %141 : vector<8x128xf32>
    %147 = arith.addf %145, %146 : vector<8x128xf32>
    %148 = math.tanh %147 : vector<8x128xf32>
    %149 = arith.mulf %144, %148 : vector<8x128xf32>
    %150 = arith.truncf %149 : vector<8x128xf32> to vector<8x128xbf16>
    %151 = arith.index_cast %c4_i32 : i32 to index
    %c0_45 = arith.constant 0 : index
    %c0_46 = arith.constant 0 : index
    %152 = vector.load %arg15[%151, %c0_45, %c0_46] : memref<8x8x128xbf16, #tpu.memory_space<vmem>>, vector<1x8x128xbf16>
    %153 = vector.shape_cast %152 : vector<1x8x128xbf16> to vector<8x128xbf16>
    %154 = vector.shape_cast %150 : vector<8x128xbf16> to vector<1x8x128xbf16>
    tpu.vector_store %arg15[%151, %c0_45, %c0_46], %154 {strides = array<i32>} : memref<8x8x128xbf16, #tpu.memory_space<vmem>>, vector<1x8x128xbf16>,
    %c5_i32 = arith.constant 5 : i32
    %155 = arith.index_cast %c5_i32 : i32 to index
    %c0_47 = arith.constant 0 : index
    %c0_48 = arith.constant 0 : index
    %156 = vector.load %arg16[%155, %c0_47, %c0_48] : memref<8x8x512xbf16, #tpu.memory_space<vmem>>, vector<1x8x512xbf16>
    %157 = vector.shape_cast %156 : vector<1x8x512xbf16> to vector<8x512xbf16>
    %158 = arith.extf %157 : vector<8x512xbf16> to vector<8x512xf32>
    %159 = arith.truncf %149 : vector<8x128xf32> to vector<8x128xbf16>
    %cst_49 = arith.constant dense<0.000000e+00> : vector<8x512xf32>
    %160 = tpu.matmul %159, %10, %cst_49 {dimension_numbers = #tpu.dot_dimension_numbers<[1], [0], [0], [1], [0, 0, 1, 1], [], []>} : vector<8x128xbf16>, vector<128x512xbf16>, vector<8x512xf32> -> vector<8x512xf32>
    %161 = arith.addf %158, %160 : vector<8x512xf32>
    %162 = vector.extract_strided_slice %161 {offsets = [0, 0], sizes = [8, 384], strides = [1, 1]} : vector<8x512xf32> to vector<8x384xf32>
    %163 = arith.negf %162 : vector<8x384xf32>
    %164 = math.exp %163 : vector<8x384xf32>
    %cst_50 = arith.constant 1.000000e+00 : f32
    %165 = vector.broadcast %cst_50 : f32 to vector<8x384xf32>
    %166 = arith.addf %165, %164 : vector<8x384xf32>
    %167 = arith.divf %165, %166 : vector<8x384xf32>
    %168 = vector.extract_strided_slice %161 {offsets = [0, 384], sizes = [8, 128], strides = [1, 1]} : vector<8x512xf32> to vector<8x128xf32>
    %169 = math.tanh %168 : vector<8x128xf32>
    %170 = vector.extract_strided_slice %167 {offsets = [0, 0], sizes = [8, 128], strides = [1, 1]} : vector<8x384xf32> to vector<8x128xf32>
    %171 = vector.extract_strided_slice %167 {offsets = [0, 128], sizes = [8, 128], strides = [1, 1]} : vector<8x384xf32> to vector<8x128xf32>
    %172 = vector.extract_strided_slice %167 {offsets = [0, 256], sizes = [8, 128], strides = [1, 1]} : vector<8x384xf32> to vector<8x128xf32>
    %173 = arith.mulf %171, %147 : vector<8x128xf32>
    %174 = arith.mulf %170, %169 : vector<8x128xf32>
    %175 = arith.addf %173, %174 : vector<8x128xf32>
    %176 = math.tanh %175 : vector<8x128xf32>
    %177 = arith.mulf %172, %176 : vector<8x128xf32>
    %178 = arith.truncf %177 : vector<8x128xf32> to vector<8x128xbf16>
    %179 = arith.index_cast %c5_i32 : i32 to index
    %c0_51 = arith.constant 0 : index
    %c0_52 = arith.constant 0 : index
    %180 = vector.load %arg15[%179, %c0_51, %c0_52] : memref<8x8x128xbf16, #tpu.memory_space<vmem>>, vector<1x8x128xbf16>
    %181 = vector.shape_cast %180 : vector<1x8x128xbf16> to vector<8x128xbf16>
    %182 = vector.shape_cast %178 : vector<8x128xbf16> to vector<1x8x128xbf16>
    tpu.vector_store %arg15[%179, %c0_51, %c0_52], %182 {strides = array<i32>} : memref<8x8x128xbf16, #tpu.memory_space<vmem>>, vector<1x8x128xbf16>,
    %c6_i32 = arith.constant 6 : i32
    %183 = arith.index_cast %c6_i32 : i32 to index
    %c0_53 = arith.constant 0 : index
    %c0_54 = arith.constant 0 : index
    %184 = vector.load %arg16[%183, %c0_53, %c0_54] : memref<8x8x512xbf16, #tpu.memory_space<vmem>>, vector<1x8x512xbf16>
    %185 = vector.shape_cast %184 : vector<1x8x512xbf16> to vector<8x512xbf16>
    %186 = arith.extf %185 : vector<8x512xbf16> to vector<8x512xf32>
    %187 = arith.truncf %177 : vector<8x128xf32> to vector<8x128xbf16>
    %cst_55 = arith.constant dense<0.000000e+00> : vector<8x512xf32>
    %188 = tpu.matmul %187, %10, %cst_55 {dimension_numbers = #tpu.dot_dimension_numbers<[1], [0], [0], [1], [0, 0, 1, 1], [], []>} : vector<8x128xbf16>, vector<128x512xbf16>, vector<8x512xf32> -> vector<8x512xf32>
    %189 = arith.addf %186, %188 : vector<8x512xf32>
    %190 = vector.extract_strided_slice %189 {offsets = [0, 0], sizes = [8, 384], strides = [1, 1]} : vector<8x512xf32> to vector<8x384xf32>
    %191 = arith.negf %190 : vector<8x384xf32>
    %192 = math.exp %191 : vector<8x384xf32>
    %cst_56 = arith.constant 1.000000e+00 : f32
    %193 = vector.broadcast %cst_56 : f32 to vector<8x384xf32>
    %194 = arith.addf %193, %192 : vector<8x384xf32>
    %195 = arith.divf %193, %194 : vector<8x384xf32>
    %196 = vector.extract_strided_slice %189 {offsets = [0, 384], sizes = [8, 128], strides = [1, 1]} : vector<8x512xf32> to vector<8x128xf32>
    %197 = math.tanh %196 : vector<8x128xf32>
    %198 = vector.extract_strided_slice %195 {offsets = [0, 0], sizes = [8, 128], strides = [1, 1]} : vector<8x384xf32> to vector<8x128xf32>
    %199 = vector.extract_strided_slice %195 {offsets = [0, 128], sizes = [8, 128], strides = [1, 1]} : vector<8x384xf32> to vector<8x128xf32>
    %200 = vector.extract_strided_slice %195 {offsets = [0, 256], sizes = [8, 128], strides = [1, 1]} : vector<8x384xf32> to vector<8x128xf32>
    %201 = arith.mulf %199, %175 : vector<8x128xf32>
    %202 = arith.mulf %198, %197 : vector<8x128xf32>
    %203 = arith.addf %201, %202 : vector<8x128xf32>
    %204 = math.tanh %203 : vector<8x128xf32>
    %205 = arith.mulf %200, %204 : vector<8x128xf32>
    %206 = arith.truncf %205 : vector<8x128xf32> to vector<8x128xbf16>
    %207 = arith.index_cast %c6_i32 : i32 to index
    %c0_57 = arith.constant 0 : index
    %c0_58 = arith.constant 0 : index
    %208 = vector.load %arg15[%207, %c0_57, %c0_58] : memref<8x8x128xbf16, #tpu.memory_space<vmem>>, vector<1x8x128xbf16>
    %209 = vector.shape_cast %208 : vector<1x8x128xbf16> to vector<8x128xbf16>
    %210 = vector.shape_cast %206 : vector<8x128xbf16> to vector<1x8x128xbf16>
    tpu.vector_store %arg15[%207, %c0_57, %c0_58], %210 {strides = array<i32>} : memref<8x8x128xbf16, #tpu.memory_space<vmem>>, vector<1x8x128xbf16>,
    %c7_i32 = arith.constant 7 : i32
    %211 = arith.index_cast %c7_i32 : i32 to index
    %c0_59 = arith.constant 0 : index
    %c0_60 = arith.constant 0 : index
    %212 = vector.load %arg16[%211, %c0_59, %c0_60] : memref<8x8x512xbf16, #tpu.memory_space<vmem>>, vector<1x8x512xbf16>
    %213 = vector.shape_cast %212 : vector<1x8x512xbf16> to vector<8x512xbf16>
    %214 = arith.extf %213 : vector<8x512xbf16> to vector<8x512xf32>
    %215 = arith.truncf %205 : vector<8x128xf32> to vector<8x128xbf16>
    %cst_61 = arith.constant dense<0.000000e+00> : vector<8x512xf32>
    %216 = tpu.matmul %215, %10, %cst_61 {dimension_numbers = #tpu.dot_dimension_numbers<[1], [0], [0], [1], [0, 0, 1, 1], [], []>} : vector<8x128xbf16>, vector<128x512xbf16>, vector<8x512xf32> -> vector<8x512xf32>
    %217 = arith.addf %214, %216 : vector<8x512xf32>
    %218 = vector.extract_strided_slice %217 {offsets = [0, 0], sizes = [8, 384], strides = [1, 1]} : vector<8x512xf32> to vector<8x384xf32>
    %219 = arith.negf %218 : vector<8x384xf32>
    %220 = math.exp %219 : vector<8x384xf32>
    %cst_62 = arith.constant 1.000000e+00 : f32
    %221 = vector.broadcast %cst_62 : f32 to vector<8x384xf32>
    %222 = arith.addf %221, %220 : vector<8x384xf32>
    %223 = arith.divf %221, %222 : vector<8x384xf32>
    %224 = vector.extract_strided_slice %217 {offsets = [0, 384], sizes = [8, 128], strides = [1, 1]} : vector<8x512xf32> to vector<8x128xf32>
    %225 = math.tanh %224 : vector<8x128xf32>
    %226 = vector.extract_strided_slice %223 {offsets = [0, 0], sizes = [8, 128], strides = [1, 1]} : vector<8x384xf32> to vector<8x128xf32>
    %227 = vector.extract_strided_slice %223 {offsets = [0, 128], sizes = [8, 128], strides = [1, 1]} : vector<8x384xf32> to vector<8x128xf32>
    %228 = vector.extract_strided_slice %223 {offsets = [0, 256], sizes = [8, 128], strides = [1, 1]} : vector<8x384xf32> to vector<8x128xf32>
    %229 = arith.mulf %227, %203 : vector<8x128xf32>
    %230 = arith.mulf %226, %225 : vector<8x128xf32>
    %231 = arith.addf %229, %230 : vector<8x128xf32>
    %232 = math.tanh %231 : vector<8x128xf32>
    %233 = arith.mulf %228, %232 : vector<8x128xf32>
    %234 = arith.truncf %233 : vector<8x128xf32> to vector<8x128xbf16>
    %235 = arith.index_cast %c7_i32 : i32 to index
    %c0_63 = arith.constant 0 : index
    %c0_64 = arith.constant 0 : index
    %236 = vector.load %arg15[%235, %c0_63, %c0_64] : memref<8x8x128xbf16, #tpu.memory_space<vmem>>, vector<1x8x128xbf16>
    %237 = vector.shape_cast %236 : vector<1x8x128xbf16> to vector<8x128xbf16>
    %238 = vector.shape_cast %234 : vector<8x128xbf16> to vector<1x8x128xbf16>
    tpu.vector_store %arg15[%235, %c0_63, %c0_64], %238 {strides = array<i32>} : memref<8x8x128xbf16, #tpu.memory_space<vmem>>, vector<1x8x128xbf16>,
    %c8_i32 = arith.constant 8 : i32
    %c0_65 = arith.constant 0 : index
    %c0_66 = arith.constant 0 : index
    %c0_67 = arith.constant 0 : index
    %239 = vector.load %arg13[%c0_65, %c0_66, %c0_67] : memref<2x8x128xf32, #tpu.memory_space<vmem>>, vector<1x8x128xf32>
    %240 = vector.shape_cast %239 : vector<1x8x128xf32> to vector<8x128xf32>
    %241 = vector.shape_cast %233 : vector<8x128xf32> to vector<1x8x128xf32>
    tpu.vector_store %arg13[%c0_65, %c0_66, %c0_67], %241 {strides = array<i32>} : memref<2x8x128xf32, #tpu.memory_space<vmem>>, vector<1x8x128xf32>,
    %c0_68 = arith.constant 0 : index
    %c0_69 = arith.constant 0 : index
    %c0_70 = arith.constant 0 : index
    %242 = vector.load %arg14[%c0_68, %c0_69, %c0_70] : memref<2x8x128xf32, #tpu.memory_space<vmem>>, vector<1x8x128xf32>
    %243 = vector.shape_cast %242 : vector<1x8x128xf32> to vector<8x128xf32>
    %244 = vector.shape_cast %231 : vector<8x128xf32> to vector<1x8x128xf32>
    tpu.vector_store %arg14[%c0_68, %c0_69, %c0_70], %244 {strides = array<i32>} : memref<2x8x128xf32, #tpu.memory_space<vmem>>, vector<1x8x128xf32>,
    %c0_71 = arith.constant 0 : index
    %c0_72 = arith.constant 0 : index
    %c0_73 = arith.constant 0 : index
    %245 = vector.load %arg15[%c0_71, %c0_72, %c0_73] : memref<8x8x128xbf16, #tpu.memory_space<vmem>>, vector<8x8x128xbf16>
    %246 = vector.shape_cast %245 : vector<8x8x128xbf16> to vector<64x128xbf16>
    %c0_74 = arith.constant 0 : index
    %c0_75 = arith.constant 0 : index
    %247 = vector.load %arg5[%c0_74, %c0_75] : memref<128x512xbf16, #tpu.memory_space<vmem>>, vector<128x512xbf16>
    %cst_76 = arith.constant dense<0.000000e+00> : vector<64x512xf32>
    %248 = tpu.matmul %246, %247, %cst_76 {dimension_numbers = #tpu.dot_dimension_numbers<[1], [0], [0], [1], [0, 0, 1, 1], [], []>} : vector<64x128xbf16>, vector<128x512xbf16>, vector<64x512xf32> -> vector<64x512xf32>
    %c0_77 = arith.constant 0 : index
    %c0_78 = arith.constant 0 : index
    %249 = vector.load %arg7[%c0_77, %c0_78] : memref<1x512xf32, #tpu.memory_space<vmem>>, vector<1x512xf32>
    %250 = vector.broadcast %249 : vector<1x512xf32> to vector<64x512xf32>
    %251 = arith.addf %248, %250 : vector<64x512xf32>
    %252 = vector.shape_cast %251 : vector<64x512xf32> to vector<8x8x512xf32>
    %253 = arith.truncf %252 : vector<8x8x512xf32> to vector<8x8x512xbf16>
    %c0_79 = arith.constant 0 : index
    %c0_80 = arith.constant 0 : index
    %c0_81 = arith.constant 0 : index
    %254 = vector.load %arg16[%c0_79, %c0_80, %c0_81] : memref<8x8x512xbf16, #tpu.memory_space<vmem>>, vector<8x8x512xbf16>
    tpu.vector_store %arg16[%c0_79, %c0_80, %c0_81], %253 {strides = array<i32>} : memref<8x8x512xbf16, #tpu.memory_space<vmem>>, vector<8x8x512xbf16>,
    %c0_82 = arith.constant 0 : index
    %c0_83 = arith.constant 0 : index
    %255 = vector.load %arg6[%c0_82, %c0_83] : memref<128x512xbf16, #tpu.memory_space<vmem>>, vector<128x512xbf16>
    %c1 = arith.constant 1 : index
    %c0_84 = arith.constant 0 : index
    %c0_85 = arith.constant 0 : index
    %256 = vector.load %arg10[%c1, %c0_84, %c0_85] : memref<2x8x128xf32, #tpu.memory_space<vmem>>, vector<1x8x128xf32>
    %257 = vector.shape_cast %256 : vector<1x8x128xf32> to vector<8x128xf32>
    %c1_86 = arith.constant 1 : index
    %c0_87 = arith.constant 0 : index
    %c0_88 = arith.constant 0 : index
    %258 = vector.load %arg11[%c1_86, %c0_87, %c0_88] : memref<2x8x128xf32, #tpu.memory_space<vmem>>, vector<1x8x128xf32>
    %259 = vector.shape_cast %258 : vector<1x8x128xf32> to vector<8x128xf32>
    %c0_i32_89 = arith.constant 0 : i32
    %260 = arith.index_cast %c0_i32_89 : i32 to index
    %c0_90 = arith.constant 0 : index
    %c0_91 = arith.constant 0 : index
    %261 = vector.load %arg16[%260, %c0_90, %c0_91] : memref<8x8x512xbf16, #tpu.memory_space<vmem>>, vector<1x8x512xbf16>
    %262 = vector.shape_cast %261 : vector<1x8x512xbf16> to vector<8x512xbf16>
    %263 = arith.extf %262 : vector<8x512xbf16> to vector<8x512xf32>
    %264 = arith.truncf %257 : vector<8x128xf32> to vector<8x128xbf16>
    %cst_92 = arith.constant dense<0.000000e+00> : vector<8x512xf32>
    %265 = tpu.matmul %264, %255, %cst_92 {dimension_numbers = #tpu.dot_dimension_numbers<[1], [0], [0], [1], [0, 0, 1, 1], [], []>} : vector<8x128xbf16>, vector<128x512xbf16>, vector<8x512xf32> -> vector<8x512xf32>
    %266 = arith.addf %263, %265 : vector<8x512xf32>
    %267 = vector.extract_strided_slice %266 {offsets = [0, 0], sizes = [8, 384], strides = [1, 1]} : vector<8x512xf32> to vector<8x384xf32>
    %268 = arith.negf %267 : vector<8x384xf32>
    %269 = math.exp %268 : vector<8x384xf32>
    %cst_93 = arith.constant 1.000000e+00 : f32
    %270 = vector.broadcast %cst_93 : f32 to vector<8x384xf32>
    %271 = arith.addf %270, %269 : vector<8x384xf32>
    %272 = arith.divf %270, %271 : vector<8x384xf32>
    %273 = vector.extract_strided_slice %266 {offsets = [0, 384], sizes = [8, 128], strides = [1, 1]} : vector<8x512xf32> to vector<8x128xf32>
    %274 = math.tanh %273 : vector<8x128xf32>
    %275 = vector.extract_strided_slice %272 {offsets = [0, 0], sizes = [8, 128], strides = [1, 1]} : vector<8x384xf32> to vector<8x128xf32>
    %276 = vector.extract_strided_slice %272 {offsets = [0, 128], sizes = [8, 128], strides = [1, 1]} : vector<8x384xf32> to vector<8x128xf32>
    %277 = vector.extract_strided_slice %272 {offsets = [0, 256], sizes = [8, 128], strides = [1, 1]} : vector<8x384xf32> to vector<8x128xf32>
    %278 = arith.mulf %276, %259 : vector<8x128xf32>
    %279 = arith.mulf %275, %274 : vector<8x128xf32>
    %280 = arith.addf %278, %279 : vector<8x128xf32>
    %281 = math.tanh %280 : vector<8x128xf32>
    %282 = arith.mulf %277, %281 : vector<8x128xf32>
    %283 = arith.truncf %282 : vector<8x128xf32> to vector<8x128xbf16>
    %284 = arith.index_cast %c0_i32_89 : i32 to index
    %c0_94 = arith.constant 0 : index
    %c0_95 = arith.constant 0 : index
    %285 = vector.load %arg15[%284, %c0_94, %c0_95] : memref<8x8x128xbf16, #tpu.memory_space<vmem>>, vector<1x8x128xbf16>
    %286 = vector.shape_cast %285 : vector<1x8x128xbf16> to vector<8x128xbf16>
    %287 = vector.shape_cast %283 : vector<8x128xbf16> to vector<1x8x128xbf16>
    tpu.vector_store %arg15[%284, %c0_94, %c0_95], %287 {strides = array<i32>} : memref<8x8x128xbf16, #tpu.memory_space<vmem>>, vector<1x8x128xbf16>,
    %c1_i32_96 = arith.constant 1 : i32
    %288 = arith.index_cast %c1_i32_96 : i32 to index
    %c0_97 = arith.constant 0 : index
    %c0_98 = arith.constant 0 : index
    %289 = vector.load %arg16[%288, %c0_97, %c0_98] : memref<8x8x512xbf16, #tpu.memory_space<vmem>>, vector<1x8x512xbf16>
    %290 = vector.shape_cast %289 : vector<1x8x512xbf16> to vector<8x512xbf16>
    %291 = arith.extf %290 : vector<8x512xbf16> to vector<8x512xf32>
    %292 = arith.truncf %282 : vector<8x128xf32> to vector<8x128xbf16>
    %cst_99 = arith.constant dense<0.000000e+00> : vector<8x512xf32>
    %293 = tpu.matmul %292, %255, %cst_99 {dimension_numbers = #tpu.dot_dimension_numbers<[1], [0], [0], [1], [0, 0, 1, 1], [], []>} : vector<8x128xbf16>, vector<128x512xbf16>, vector<8x512xf32> -> vector<8x512xf32>
    %294 = arith.addf %291, %293 : vector<8x512xf32>
    %295 = vector.extract_strided_slice %294 {offsets = [0, 0], sizes = [8, 384], strides = [1, 1]} : vector<8x512xf32> to vector<8x384xf32>
    %296 = arith.negf %295 : vector<8x384xf32>
    %297 = math.exp %296 : vector<8x384xf32>
    %cst_100 = arith.constant 1.000000e+00 : f32
    %298 = vector.broadcast %cst_100 : f32 to vector<8x384xf32>
    %299 = arith.addf %298, %297 : vector<8x384xf32>
    %300 = arith.divf %298, %299 : vector<8x384xf32>
    %301 = vector.extract_strided_slice %294 {offsets = [0, 384], sizes = [8, 128], strides = [1, 1]} : vector<8x512xf32> to vector<8x128xf32>
    %302 = math.tanh %301 : vector<8x128xf32>
    %303 = vector.extract_strided_slice %300 {offsets = [0, 0], sizes = [8, 128], strides = [1, 1]} : vector<8x384xf32> to vector<8x128xf32>
    %304 = vector.extract_strided_slice %300 {offsets = [0, 128], sizes = [8, 128], strides = [1, 1]} : vector<8x384xf32> to vector<8x128xf32>
    %305 = vector.extract_strided_slice %300 {offsets = [0, 256], sizes = [8, 128], strides = [1, 1]} : vector<8x384xf32> to vector<8x128xf32>
    %306 = arith.mulf %304, %280 : vector<8x128xf32>
    %307 = arith.mulf %303, %302 : vector<8x128xf32>
    %308 = arith.addf %306, %307 : vector<8x128xf32>
    %309 = math.tanh %308 : vector<8x128xf32>
    %310 = arith.mulf %305, %309 : vector<8x128xf32>
    %311 = arith.truncf %310 : vector<8x128xf32> to vector<8x128xbf16>
    %312 = arith.index_cast %c1_i32_96 : i32 to index
    %c0_101 = arith.constant 0 : index
    %c0_102 = arith.constant 0 : index
    %313 = vector.load %arg15[%312, %c0_101, %c0_102] : memref<8x8x128xbf16, #tpu.memory_space<vmem>>, vector<1x8x128xbf16>
    %314 = vector.shape_cast %313 : vector<1x8x128xbf16> to vector<8x128xbf16>
    %315 = vector.shape_cast %311 : vector<8x128xbf16> to vector<1x8x128xbf16>
    tpu.vector_store %arg15[%312, %c0_101, %c0_102], %315 {strides = array<i32>} : memref<8x8x128xbf16, #tpu.memory_space<vmem>>, vector<1x8x128xbf16>,
    %c2_i32_103 = arith.constant 2 : i32
    %316 = arith.index_cast %c2_i32_103 : i32 to index
    %c0_104 = arith.constant 0 : index
    %c0_105 = arith.constant 0 : index
    %317 = vector.load %arg16[%316, %c0_104, %c0_105] : memref<8x8x512xbf16, #tpu.memory_space<vmem>>, vector<1x8x512xbf16>
    %318 = vector.shape_cast %317 : vector<1x8x512xbf16> to vector<8x512xbf16>
    %319 = arith.extf %318 : vector<8x512xbf16> to vector<8x512xf32>
    %320 = arith.truncf %310 : vector<8x128xf32> to vector<8x128xbf16>
    %cst_106 = arith.constant dense<0.000000e+00> : vector<8x512xf32>
    %321 = tpu.matmul %320, %255, %cst_106 {dimension_numbers = #tpu.dot_dimension_numbers<[1], [0], [0], [1], [0, 0, 1, 1], [], []>} : vector<8x128xbf16>, vector<128x512xbf16>, vector<8x512xf32> -> vector<8x512xf32>
    %322 = arith.addf %319, %321 : vector<8x512xf32>
    %323 = vector.extract_strided_slice %322 {offsets = [0, 0], sizes = [8, 384], strides = [1, 1]} : vector<8x512xf32> to vector<8x384xf32>
    %324 = arith.negf %323 : vector<8x384xf32>
    %325 = math.exp %324 : vector<8x384xf32>
    %cst_107 = arith.constant 1.000000e+00 : f32
    %326 = vector.broadcast %cst_107 : f32 to vector<8x384xf32>
    %327 = arith.addf %326, %325 : vector<8x384xf32>
    %328 = arith.divf %326, %327 : vector<8x384xf32>
    %329 = vector.extract_strided_slice %322 {offsets = [0, 384], sizes = [8, 128], strides = [1, 1]} : vector<8x512xf32> to vector<8x128xf32>
    %330 = math.tanh %329 : vector<8x128xf32>
    %331 = vector.extract_strided_slice %328 {offsets = [0, 0], sizes = [8, 128], strides = [1, 1]} : vector<8x384xf32> to vector<8x128xf32>
    %332 = vector.extract_strided_slice %328 {offsets = [0, 128], sizes = [8, 128], strides = [1, 1]} : vector<8x384xf32> to vector<8x128xf32>
    %333 = vector.extract_strided_slice %328 {offsets = [0, 256], sizes = [8, 128], strides = [1, 1]} : vector<8x384xf32> to vector<8x128xf32>
    %334 = arith.mulf %332, %308 : vector<8x128xf32>
    %335 = arith.mulf %331, %330 : vector<8x128xf32>
    %336 = arith.addf %334, %335 : vector<8x128xf32>
    %337 = math.tanh %336 : vector<8x128xf32>
    %338 = arith.mulf %333, %337 : vector<8x128xf32>
    %339 = arith.truncf %338 : vector<8x128xf32> to vector<8x128xbf16>
    %340 = arith.index_cast %c2_i32_103 : i32 to index
    %c0_108 = arith.constant 0 : index
    %c0_109 = arith.constant 0 : index
    %341 = vector.load %arg15[%340, %c0_108, %c0_109] : memref<8x8x128xbf16, #tpu.memory_space<vmem>>, vector<1x8x128xbf16>
    %342 = vector.shape_cast %341 : vector<1x8x128xbf16> to vector<8x128xbf16>
    %343 = vector.shape_cast %339 : vector<8x128xbf16> to vector<1x8x128xbf16>
    tpu.vector_store %arg15[%340, %c0_108, %c0_109], %343 {strides = array<i32>} : memref<8x8x128xbf16, #tpu.memory_space<vmem>>, vector<1x8x128xbf16>,
    %c3_i32_110 = arith.constant 3 : i32
    %344 = arith.index_cast %c3_i32_110 : i32 to index
    %c0_111 = arith.constant 0 : index
    %c0_112 = arith.constant 0 : index
    %345 = vector.load %arg16[%344, %c0_111, %c0_112] : memref<8x8x512xbf16, #tpu.memory_space<vmem>>, vector<1x8x512xbf16>
    %346 = vector.shape_cast %345 : vector<1x8x512xbf16> to vector<8x512xbf16>
    %347 = arith.extf %346 : vector<8x512xbf16> to vector<8x512xf32>
    %348 = arith.truncf %338 : vector<8x128xf32> to vector<8x128xbf16>
    %cst_113 = arith.constant dense<0.000000e+00> : vector<8x512xf32>
    %349 = tpu.matmul %348, %255, %cst_113 {dimension_numbers = #tpu.dot_dimension_numbers<[1], [0], [0], [1], [0, 0, 1, 1], [], []>} : vector<8x128xbf16>, vector<128x512xbf16>, vector<8x512xf32> -> vector<8x512xf32>
    %350 = arith.addf %347, %349 : vector<8x512xf32>
    %351 = vector.extract_strided_slice %350 {offsets = [0, 0], sizes = [8, 384], strides = [1, 1]} : vector<8x512xf32> to vector<8x384xf32>
    %352 = arith.negf %351 : vector<8x384xf32>
    %353 = math.exp %352 : vector<8x384xf32>
    %cst_114 = arith.constant 1.000000e+00 : f32
    %354 = vector.broadcast %cst_114 : f32 to vector<8x384xf32>
    %355 = arith.addf %354, %353 : vector<8x384xf32>
    %356 = arith.divf %354, %355 : vector<8x384xf32>
    %357 = vector.extract_strided_slice %350 {offsets = [0, 384], sizes = [8, 128], strides = [1, 1]} : vector<8x512xf32> to vector<8x128xf32>
    %358 = math.tanh %357 : vector<8x128xf32>
    %359 = vector.extract_strided_slice %356 {offsets = [0, 0], sizes = [8, 128], strides = [1, 1]} : vector<8x384xf32> to vector<8x128xf32>
    %360 = vector.extract_strided_slice %356 {offsets = [0, 128], sizes = [8, 128], strides = [1, 1]} : vector<8x384xf32> to vector<8x128xf32>
    %361 = vector.extract_strided_slice %356 {offsets = [0, 256], sizes = [8, 128], strides = [1, 1]} : vector<8x384xf32> to vector<8x128xf32>
    %362 = arith.mulf %360, %336 : vector<8x128xf32>
    %363 = arith.mulf %359, %358 : vector<8x128xf32>
    %364 = arith.addf %362, %363 : vector<8x128xf32>
    %365 = math.tanh %364 : vector<8x128xf32>
    %366 = arith.mulf %361, %365 : vector<8x128xf32>
    %367 = arith.truncf %366 : vector<8x128xf32> to vector<8x128xbf16>
    %368 = arith.index_cast %c3_i32_110 : i32 to index
    %c0_115 = arith.constant 0 : index
    %c0_116 = arith.constant 0 : index
    %369 = vector.load %arg15[%368, %c0_115, %c0_116] : memref<8x8x128xbf16, #tpu.memory_space<vmem>>, vector<1x8x128xbf16>
    %370 = vector.shape_cast %369 : vector<1x8x128xbf16> to vector<8x128xbf16>
    %371 = vector.shape_cast %367 : vector<8x128xbf16> to vector<1x8x128xbf16>
    tpu.vector_store %arg15[%368, %c0_115, %c0_116], %371 {strides = array<i32>} : memref<8x8x128xbf16, #tpu.memory_space<vmem>>, vector<1x8x128xbf16>,
    %c4_i32_117 = arith.constant 4 : i32
    %372 = arith.index_cast %c4_i32_117 : i32 to index
    %c0_118 = arith.constant 0 : index
    %c0_119 = arith.constant 0 : index
    %373 = vector.load %arg16[%372, %c0_118, %c0_119] : memref<8x8x512xbf16, #tpu.memory_space<vmem>>, vector<1x8x512xbf16>
    %374 = vector.shape_cast %373 : vector<1x8x512xbf16> to vector<8x512xbf16>
    %375 = arith.extf %374 : vector<8x512xbf16> to vector<8x512xf32>
    %376 = arith.truncf %366 : vector<8x128xf32> to vector<8x128xbf16>
    %cst_120 = arith.constant dense<0.000000e+00> : vector<8x512xf32>
    %377 = tpu.matmul %376, %255, %cst_120 {dimension_numbers = #tpu.dot_dimension_numbers<[1], [0], [0], [1], [0, 0, 1, 1], [], []>} : vector<8x128xbf16>, vector<128x512xbf16>, vector<8x512xf32> -> vector<8x512xf32>
    %378 = arith.addf %375, %377 : vector<8x512xf32>
    %379 = vector.extract_strided_slice %378 {offsets = [0, 0], sizes = [8, 384], strides = [1, 1]} : vector<8x512xf32> to vector<8x384xf32>
    %380 = arith.negf %379 : vector<8x384xf32>
    %381 = math.exp %380 : vector<8x384xf32>
    %cst_121 = arith.constant 1.000000e+00 : f32
    %382 = vector.broadcast %cst_121 : f32 to vector<8x384xf32>
    %383 = arith.addf %382, %381 : vector<8x384xf32>
    %384 = arith.divf %382, %383 : vector<8x384xf32>
    %385 = vector.extract_strided_slice %378 {offsets = [0, 384], sizes = [8, 128], strides = [1, 1]} : vector<8x512xf32> to vector<8x128xf32>
    %386 = math.tanh %385 : vector<8x128xf32>
    %387 = vector.extract_strided_slice %384 {offsets = [0, 0], sizes = [8, 128], strides = [1, 1]} : vector<8x384xf32> to vector<8x128xf32>
    %388 = vector.extract_strided_slice %384 {offsets = [0, 128], sizes = [8, 128], strides = [1, 1]} : vector<8x384xf32> to vector<8x128xf32>
    %389 = vector.extract_strided_slice %384 {offsets = [0, 256], sizes = [8, 128], strides = [1, 1]} : vector<8x384xf32> to vector<8x128xf32>
    %390 = arith.mulf %388, %364 : vector<8x128xf32>
    %391 = arith.mulf %387, %386 : vector<8x128xf32>
    %392 = arith.addf %390, %391 : vector<8x128xf32>
    %393 = math.tanh %392 : vector<8x128xf32>
    %394 = arith.mulf %389, %393 : vector<8x128xf32>
    %395 = arith.truncf %394 : vector<8x128xf32> to vector<8x128xbf16>
    %396 = arith.index_cast %c4_i32_117 : i32 to index
    %c0_122 = arith.constant 0 : index
    %c0_123 = arith.constant 0 : index
    %397 = vector.load %arg15[%396, %c0_122, %c0_123] : memref<8x8x128xbf16, #tpu.memory_space<vmem>>, vector<1x8x128xbf16>
    %398 = vector.shape_cast %397 : vector<1x8x128xbf16> to vector<8x128xbf16>
    %399 = vector.shape_cast %395 : vector<8x128xbf16> to vector<1x8x128xbf16>
    tpu.vector_store %arg15[%396, %c0_122, %c0_123], %399 {strides = array<i32>} : memref<8x8x128xbf16, #tpu.memory_space<vmem>>, vector<1x8x128xbf16>,
    %c5_i32_124 = arith.constant 5 : i32
    %400 = arith.index_cast %c5_i32_124 : i32 to index
    %c0_125 = arith.constant 0 : index
    %c0_126 = arith.constant 0 : index
    %401 = vector.load %arg16[%400, %c0_125, %c0_126] : memref<8x8x512xbf16, #tpu.memory_space<vmem>>, vector<1x8x512xbf16>
    %402 = vector.shape_cast %401 : vector<1x8x512xbf16> to vector<8x512xbf16>
    %403 = arith.extf %402 : vector<8x512xbf16> to vector<8x512xf32>
    %404 = arith.truncf %394 : vector<8x128xf32> to vector<8x128xbf16>
    %cst_127 = arith.constant dense<0.000000e+00> : vector<8x512xf32>
    %405 = tpu.matmul %404, %255, %cst_127 {dimension_numbers = #tpu.dot_dimension_numbers<[1], [0], [0], [1], [0, 0, 1, 1], [], []>} : vector<8x128xbf16>, vector<128x512xbf16>, vector<8x512xf32> -> vector<8x512xf32>
    %406 = arith.addf %403, %405 : vector<8x512xf32>
    %407 = vector.extract_strided_slice %406 {offsets = [0, 0], sizes = [8, 384], strides = [1, 1]} : vector<8x512xf32> to vector<8x384xf32>
    %408 = arith.negf %407 : vector<8x384xf32>
    %409 = math.exp %408 : vector<8x384xf32>
    %cst_128 = arith.constant 1.000000e+00 : f32
    %410 = vector.broadcast %cst_128 : f32 to vector<8x384xf32>
    %411 = arith.addf %410, %409 : vector<8x384xf32>
    %412 = arith.divf %410, %411 : vector<8x384xf32>
    %413 = vector.extract_strided_slice %406 {offsets = [0, 384], sizes = [8, 128], strides = [1, 1]} : vector<8x512xf32> to vector<8x128xf32>
    %414 = math.tanh %413 : vector<8x128xf32>
    %415 = vector.extract_strided_slice %412 {offsets = [0, 0], sizes = [8, 128], strides = [1, 1]} : vector<8x384xf32> to vector<8x128xf32>
    %416 = vector.extract_strided_slice %412 {offsets = [0, 128], sizes = [8, 128], strides = [1, 1]} : vector<8x384xf32> to vector<8x128xf32>
    %417 = vector.extract_strided_slice %412 {offsets = [0, 256], sizes = [8, 128], strides = [1, 1]} : vector<8x384xf32> to vector<8x128xf32>
    %418 = arith.mulf %416, %392 : vector<8x128xf32>
    %419 = arith.mulf %415, %414 : vector<8x128xf32>
    %420 = arith.addf %418, %419 : vector<8x128xf32>
    %421 = math.tanh %420 : vector<8x128xf32>
    %422 = arith.mulf %417, %421 : vector<8x128xf32>
    %423 = arith.truncf %422 : vector<8x128xf32> to vector<8x128xbf16>
    %424 = arith.index_cast %c5_i32_124 : i32 to index
    %c0_129 = arith.constant 0 : index
    %c0_130 = arith.constant 0 : index
    %425 = vector.load %arg15[%424, %c0_129, %c0_130] : memref<8x8x128xbf16, #tpu.memory_space<vmem>>, vector<1x8x128xbf16>
    %426 = vector.shape_cast %425 : vector<1x8x128xbf16> to vector<8x128xbf16>
    %427 = vector.shape_cast %423 : vector<8x128xbf16> to vector<1x8x128xbf16>
    tpu.vector_store %arg15[%424, %c0_129, %c0_130], %427 {strides = array<i32>} : memref<8x8x128xbf16, #tpu.memory_space<vmem>>, vector<1x8x128xbf16>,
    %c6_i32_131 = arith.constant 6 : i32
    %428 = arith.index_cast %c6_i32_131 : i32 to index
    %c0_132 = arith.constant 0 : index
    %c0_133 = arith.constant 0 : index
    %429 = vector.load %arg16[%428, %c0_132, %c0_133] : memref<8x8x512xbf16, #tpu.memory_space<vmem>>, vector<1x8x512xbf16>
    %430 = vector.shape_cast %429 : vector<1x8x512xbf16> to vector<8x512xbf16>
    %431 = arith.extf %430 : vector<8x512xbf16> to vector<8x512xf32>
    %432 = arith.truncf %422 : vector<8x128xf32> to vector<8x128xbf16>
    %cst_134 = arith.constant dense<0.000000e+00> : vector<8x512xf32>
    %433 = tpu.matmul %432, %255, %cst_134 {dimension_numbers = #tpu.dot_dimension_numbers<[1], [0], [0], [1], [0, 0, 1, 1], [], []>} : vector<8x128xbf16>, vector<128x512xbf16>, vector<8x512xf32> -> vector<8x512xf32>
    %434 = arith.addf %431, %433 : vector<8x512xf32>
    %435 = vector.extract_strided_slice %434 {offsets = [0, 0], sizes = [8, 384], strides = [1, 1]} : vector<8x512xf32> to vector<8x384xf32>
    %436 = arith.negf %435 : vector<8x384xf32>
    %437 = math.exp %436 : vector<8x384xf32>
    %cst_135 = arith.constant 1.000000e+00 : f32
    %438 = vector.broadcast %cst_135 : f32 to vector<8x384xf32>
    %439 = arith.addf %438, %437 : vector<8x384xf32>
    %440 = arith.divf %438, %439 : vector<8x384xf32>
    %441 = vector.extract_strided_slice %434 {offsets = [0, 384], sizes = [8, 128], strides = [1, 1]} : vector<8x512xf32> to vector<8x128xf32>
    %442 = math.tanh %441 : vector<8x128xf32>
    %443 = vector.extract_strided_slice %440 {offsets = [0, 0], sizes = [8, 128], strides = [1, 1]} : vector<8x384xf32> to vector<8x128xf32>
    %444 = vector.extract_strided_slice %440 {offsets = [0, 128], sizes = [8, 128], strides = [1, 1]} : vector<8x384xf32> to vector<8x128xf32>
    %445 = vector.extract_strided_slice %440 {offsets = [0, 256], sizes = [8, 128], strides = [1, 1]} : vector<8x384xf32> to vector<8x128xf32>
    %446 = arith.mulf %444, %420 : vector<8x128xf32>
    %447 = arith.mulf %443, %442 : vector<8x128xf32>
    %448 = arith.addf %446, %447 : vector<8x128xf32>
    %449 = math.tanh %448 : vector<8x128xf32>
    %450 = arith.mulf %445, %449 : vector<8x128xf32>
    %451 = arith.truncf %450 : vector<8x128xf32> to vector<8x128xbf16>
    %452 = arith.index_cast %c6_i32_131 : i32 to index
    %c0_136 = arith.constant 0 : index
    %c0_137 = arith.constant 0 : index
    %453 = vector.load %arg15[%452, %c0_136, %c0_137] : memref<8x8x128xbf16, #tpu.memory_space<vmem>>, vector<1x8x128xbf16>
    %454 = vector.shape_cast %453 : vector<1x8x128xbf16> to vector<8x128xbf16>
    %455 = vector.shape_cast %451 : vector<8x128xbf16> to vector<1x8x128xbf16>
    tpu.vector_store %arg15[%452, %c0_136, %c0_137], %455 {strides = array<i32>} : memref<8x8x128xbf16, #tpu.memory_space<vmem>>, vector<1x8x128xbf16>,
    %c7_i32_138 = arith.constant 7 : i32
    %456 = arith.index_cast %c7_i32_138 : i32 to index
    %c0_139 = arith.constant 0 : index
    %c0_140 = arith.constant 0 : index
    %457 = vector.load %arg16[%456, %c0_139, %c0_140] : memref<8x8x512xbf16, #tpu.memory_space<vmem>>, vector<1x8x512xbf16>
    %458 = vector.shape_cast %457 : vector<1x8x512xbf16> to vector<8x512xbf16>
    %459 = arith.extf %458 : vector<8x512xbf16> to vector<8x512xf32>
    %460 = arith.truncf %450 : vector<8x128xf32> to vector<8x128xbf16>
    %cst_141 = arith.constant dense<0.000000e+00> : vector<8x512xf32>
    %461 = tpu.matmul %460, %255, %cst_141 {dimension_numbers = #tpu.dot_dimension_numbers<[1], [0], [0], [1], [0, 0, 1, 1], [], []>} : vector<8x128xbf16>, vector<128x512xbf16>, vector<8x512xf32> -> vector<8x512xf32>
    %462 = arith.addf %459, %461 : vector<8x512xf32>
    %463 = vector.extract_strided_slice %462 {offsets = [0, 0], sizes = [8, 384], strides = [1, 1]} : vector<8x512xf32> to vector<8x384xf32>
    %464 = arith.negf %463 : vector<8x384xf32>
    %465 = math.exp %464 : vector<8x384xf32>
    %cst_142 = arith.constant 1.000000e+00 : f32
    %466 = vector.broadcast %cst_142 : f32 to vector<8x384xf32>
    %467 = arith.addf %466, %465 : vector<8x384xf32>
    %468 = arith.divf %466, %467 : vector<8x384xf32>
    %469 = vector.extract_strided_slice %462 {offsets = [0, 384], sizes = [8, 128], strides = [1, 1]} : vector<8x512xf32> to vector<8x128xf32>
    %470 = math.tanh %469 : vector<8x128xf32>
    %471 = vector.extract_strided_slice %468 {offsets = [0, 0], sizes = [8, 128], strides = [1, 1]} : vector<8x384xf32> to vector<8x128xf32>
    %472 = vector.extract_strided_slice %468 {offsets = [0, 128], sizes = [8, 128], strides = [1, 1]} : vector<8x384xf32> to vector<8x128xf32>
    %473 = vector.extract_strided_slice %468 {offsets = [0, 256], sizes = [8, 128], strides = [1, 1]} : vector<8x384xf32> to vector<8x128xf32>
    %474 = arith.mulf %472, %448 : vector<8x128xf32>
    %475 = arith.mulf %471, %470 : vector<8x128xf32>
    %476 = arith.addf %474, %475 : vector<8x128xf32>
    %477 = math.tanh %476 : vector<8x128xf32>
    %478 = arith.mulf %473, %477 : vector<8x128xf32>
    %479 = arith.truncf %478 : vector<8x128xf32> to vector<8x128xbf16>
    %480 = arith.index_cast %c7_i32_138 : i32 to index
    %c0_143 = arith.constant 0 : index
    %c0_144 = arith.constant 0 : index
    %481 = vector.load %arg15[%480, %c0_143, %c0_144] : memref<8x8x128xbf16, #tpu.memory_space<vmem>>, vector<1x8x128xbf16>
    %482 = vector.shape_cast %481 : vector<1x8x128xbf16> to vector<8x128xbf16>
    %483 = vector.shape_cast %479 : vector<8x128xbf16> to vector<1x8x128xbf16>
    tpu.vector_store %arg15[%480, %c0_143, %c0_144], %483 {strides = array<i32>} : memref<8x8x128xbf16, #tpu.memory_space<vmem>>, vector<1x8x128xbf16>,
    %c8_i32_145 = arith.constant 8 : i32
    %c1_146 = arith.constant 1 : index
    %c0_147 = arith.constant 0 : index
    %c0_148 = arith.constant 0 : index
    %484 = vector.load %arg13[%c1_146, %c0_147, %c0_148] : memref<2x8x128xf32, #tpu.memory_space<vmem>>, vector<1x8x128xf32>
    %485 = vector.shape_cast %484 : vector<1x8x128xf32> to vector<8x128xf32>
    %486 = vector.shape_cast %478 : vector<8x128xf32> to vector<1x8x128xf32>
    tpu.vector_store %arg13[%c1_146, %c0_147, %c0_148], %486 {strides = array<i32>} : memref<2x8x128xf32, #tpu.memory_space<vmem>>, vector<1x8x128xf32>,
    %c1_149 = arith.constant 1 : index
    %c0_150 = arith.constant 0 : index
    %c0_151 = arith.constant 0 : index
    %487 = vector.load %arg14[%c1_149, %c0_150, %c0_151] : memref<2x8x128xf32, #tpu.memory_space<vmem>>, vector<1x8x128xf32>
    %488 = vector.shape_cast %487 : vector<1x8x128xf32> to vector<8x128xf32>
    %489 = vector.shape_cast %476 : vector<8x128xf32> to vector<1x8x128xf32>
    tpu.vector_store %arg14[%c1_149, %c0_150, %c0_151], %489 {strides = array<i32>} : memref<2x8x128xf32, #tpu.memory_space<vmem>>, vector<1x8x128xf32>,
    %c0_152 = arith.constant 0 : index
    %c0_153 = arith.constant 0 : index
    %c0_154 = arith.constant 0 : index
    %490 = vector.load %arg15[%c0_152, %c0_153, %c0_154] : memref<8x8x128xbf16, #tpu.memory_space<vmem>>, vector<8x8x128xbf16>
    %491 = vector.shape_cast %490 : vector<8x8x128xbf16> to vector<64x128xbf16>
    %c0_155 = arith.constant 0 : index
    %c0_156 = arith.constant 0 : index
    %492 = vector.load %arg8[%c0_155, %c0_156] : memref<128x128xbf16, #tpu.memory_space<vmem>>, vector<128x128xbf16>
    %cst_157 = arith.constant dense<0.000000e+00> : vector<64x128xf32>
    %493 = tpu.matmul %491, %492, %cst_157 {dimension_numbers = #tpu.dot_dimension_numbers<[1], [0], [0], [1], [0, 0, 1, 1], [], []>} : vector<64x128xbf16>, vector<128x128xbf16>, vector<64x128xf32> -> vector<64x128xf32>
    %c0_158 = arith.constant 0 : index
    %c0_159 = arith.constant 0 : index
    %494 = vector.load %arg9[%c0_158, %c0_159] : memref<1x128xf32, #tpu.memory_space<vmem>>, vector<1x128xf32>
    %495 = vector.broadcast %494 : vector<1x128xf32> to vector<64x128xf32>
    %496 = arith.addf %493, %495 : vector<64x128xf32>
    %497 = vector.shape_cast %496 : vector<64x128xf32> to vector<8x8x128xf32>
    %c0_160 = arith.constant 0 : index
    %c0_161 = arith.constant 0 : index
    %c0_162 = arith.constant 0 : index
    %498 = vector.load %arg12[%c0_160, %c0_161, %c0_162] : memref<8x8x128xf32, #tpu.memory_space<vmem>>, vector<8x8x128xf32>
    tpu.vector_store %arg12[%c0_160, %c0_161, %c0_162], %497 {strides = array<i32>} : memref<8x8x128xf32, #tpu.memory_space<vmem>>, vector<8x8x128xf32>,
    return
  }
  func.func @transform_0(%arg0: i32) -> (i32, i32, i32) {
    %c0_i32 = arith.constant 0 : i32
    %c0_i32_0 = arith.constant 0 : i32
    %c0_i32_1 = arith.constant 0 : i32
    return %c0_i32, %arg0, %c0_i32_0 : i32, i32, i32
  }
  func.func @transform_1(%arg0: i32) -> (i32, i32) {
    %c0_i32 = arith.constant 0 : i32
    %c0_i32_0 = arith.constant 0 : i32
    %c0_i32_1 = arith.constant 0 : i32
    return %c0_i32, %c0_i32_0 : i32, i32
  }
  func.func @transform_2(%arg0: i32) -> (i32, i32) {
    %c0_i32 = arith.constant 0 : i32
    %c0_i32_0 = arith.constant 0 : i32
    %c0_i32_1 = arith.constant 0 : i32
    return %c0_i32, %c0_i32_0 : i32, i32
  }
  func.func @transform_3(%arg0: i32) -> (i32, i32) {
    %c0_i32 = arith.constant 0 : i32
    %c0_i32_0 = arith.constant 0 : i32
    %c0_i32_1 = arith.constant 0 : i32
    return %c0_i32, %c0_i32_0 : i32, i32
  }
  func.func @transform_4(%arg0: i32) -> (i32, i32) {
    %c0_i32 = arith.constant 0 : i32
    %c0_i32_0 = arith.constant 0 : i32
    %c0_i32_1 = arith.constant 0 : i32
    return %c0_i32, %c0_i32_0 : i32, i32
  }
  func.func @transform_5(%arg0: i32) -> (i32, i32) {
    %c0_i32 = arith.constant 0 : i32
    %c0_i32_0 = arith.constant 0 : i32
    %c0_i32_1 = arith.constant 0 : i32
    return %c0_i32, %c0_i32_0 : i32, i32
  }
  func.func @transform_6(%arg0: i32) -> (i32, i32) {
    %c0_i32 = arith.constant 0 : i32
    %c0_i32_0 = arith.constant 0 : i32
    %c0_i32_1 = arith.constant 0 : i32
    return %c0_i32, %c0_i32_0 : i32, i32
  }
  func.func @transform_7(%arg0: i32) -> (i32, i32) {
    %c0_i32 = arith.constant 0 : i32
    %c0_i32_0 = arith.constant 0 : i32
    %c0_i32_1 = arith.constant 0 : i32
    return %c0_i32, %c0_i32_0 : i32, i32
  }
  func.func @transform_8(%arg0: i32) -> (i32, i32) {
    %c0_i32 = arith.constant 0 : i32
    %c0_i32_0 = arith.constant 0 : i32
    %c0_i32_1 = arith.constant 0 : i32
    return %c0_i32, %c0_i32_0 : i32, i32
  }
  func.func @transform_9(%arg0: i32) -> (i32, i32, i32) {
    %c0_i32 = arith.constant 0 : i32
    %c0_i32_0 = arith.constant 0 : i32
    %c0_i32_1 = arith.constant 0 : i32
    return %c0_i32, %arg0, %c0_i32_0 : i32, i32, i32
  }
  func.func @transform_10(%arg0: i32) -> (i32, i32, i32) {
    %c0_i32 = arith.constant 0 : i32
    %c0_i32_0 = arith.constant 0 : i32
    %c0_i32_1 = arith.constant 0 : i32
    return %c0_i32, %arg0, %c0_i32_0 : i32, i32, i32
  }
  func.func @transform_11(%arg0: i32) -> (i32, i32, i32) {
    %c0_i32 = arith.constant 0 : i32
    %c0_i32_0 = arith.constant 0 : i32
    %c0_i32_1 = arith.constant 0 : i32
    return %c0_i32, %arg0, %c0_i32_0 : i32, i32, i32
  }
  func.func @transform_12(%arg0: i32) -> (i32, i32, i32) {
    %c0_i32 = arith.constant 0 : i32
    %c0_i32_0 = arith.constant 0 : i32
    %c0_i32_1 = arith.constant 0 : i32
    return %c0_i32, %arg0, %c0_i32_0 : i32, i32, i32
  }
  func.func @transform_13(%arg0: i32) -> (i32, i32, i32) {
    %c0_i32 = arith.constant 0 : i32
    %c0_i32_0 = arith.constant 0 : i32
    %c0_i32_1 = arith.constant 0 : i32
    return %c0_i32, %arg0, %c0_i32_0 : i32, i32, i32
  }
}

</mosaic_0001>

<llo_original>
// kernel: char_model_forward.1
$region0: #{char_model_forward.1}
  #allocation0 [shape = 'u32[]', space=smem, size = 0x4, offset = 0x4, fixed_abs, tag = 'smem constant byte address 0x4 - core index']
  #allocation1 [shape = 'u32[144,128]{1,0:T(1,128)}', space=vmem, size = 0x12000, scoped, tag = 'internal scratch']
  #allocation2 [shape = 'bf16[8,8,128]{2,1,0:T(8,128)(2,1)}', space=vmem, size = 0x4000, scoped, tag = 'scratch operand']
  #allocation3 [shape = 'bf16[8,8,512]{2,1,0:T(8,128)(2,1)}', space=vmem, size = 0x10000, scoped, tag = 'scratch operand']
  %s0 = inlined_call_operand.vmem [shape: bf16[8,8,128], index: 0, kind: input, shape index: {}]
  %s1 = inlined_call_operand.vmem [shape: bf16[128,512], index: 1, kind: input, shape index: {}]
  %s2 = inlined_call_operand.vmem [shape: bf16[128,512], index: 2, kind: input, shape index: {}]
  %s3 = inlined_call_operand.vmem [shape: f32[1,512], index: 3, kind: input, shape index: {}]
  %s4 = inlined_call_operand.vmem [shape: bf16[128,512], index: 4, kind: input, shape index: {}]
  %s5 = inlined_call_operand.vmem [shape: bf16[128,512], index: 5, kind: input, shape index: {}]
  %s6 = inlined_call_operand.vmem [shape: f32[1,512], index: 6, kind: input, shape index: {}]
  %s7 = inlined_call_operand.vmem [shape: bf16[128,128], index: 7, kind: input, shape index: {}]
  %s8 = inlined_call_operand.vmem [shape: f32[1,128], index: 8, kind: input, shape index: {}]
  %s9 = inlined_call_operand.vmem [shape: f32[2,8,128], index: 9, kind: input, shape index: {}]
  %s10 = inlined_call_operand.vmem [shape: f32[2,8,128], index: 10, kind: input, shape index: {}]
  %s11 = inlined_call_operand.vmem [shape: f32[8,8,128], index: 11, kind: output, shape index: {0}]
  %s12 = inlined_call_operand.vmem [shape: f32[2,8,128], index: 12, kind: output, shape index: {1}]
  %s13 = inlined_call_operand.vmem [shape: f32[2,8,128], index: 13, kind: output, shape index: {2}]
  %14 = xla_tuple %s11, %s12, %s13
  %s15 = sld [smem:[#allocation0]]
  $region70: #{char_model_forward.1} parent=0
    _
  %s17 = ssub.s32 1, %s15
  %s18 = scalar_select 0, %s17, %s15
  // Predicated region
  $region2: #{char_model_forward.1} parent=0 // pred_check
    _
  $region3: #{char_model_forward.1} parent=0 // pred_check_branch
    %20 = sbr.rel (0) target = $region5
  $region4: #{char_model_forward.1} parent=0 // pred_region
    _
  $region5: #{char_model_forward.1} parent=0 // pred_fallthru
    _
  // Predicated region
  $region6: #{char_model_forward.1} parent=0 // pred_check
    _
  $region7: #{char_model_forward.1} parent=0 // pred_check_branch
    %22 = sbr.rel (0) target = $region9
  $region8: #{char_model_forward.1} parent=0 // pred_region
    _
  $region9: #{char_model_forward.1} parent=0 // pred_fallthru
    _
  // Predicated region
  $region10: #{char_model_forward.1} parent=0 // pred_check
    _
  $region11: #{char_model_forward.1} parent=0 // pred_check_branch
    %24 = sbr.rel (0) target = $region13
  $region12: #{char_model_forward.1} parent=0 // pred_region
    _
  $region13: #{char_model_forward.1} parent=0 // pred_fallthru
    _
  // Predicated region
  $region14: #{char_model_forward.1} parent=0 // pred_check
    _
  $region15: #{char_model_forward.1} parent=0 // pred_check_branch
    %26 = sbr.rel (0) target = $region17
  $region16: #{char_model_forward.1} parent=0 // pred_region
    _
  $region17: #{char_model_forward.1} parent=0 // pred_fallthru
    _
  // Predicated region
  $region18: #{char_model_forward.1} parent=0 // pred_check
    _
  $region19: #{char_model_forward.1} parent=0 // pred_check_branch
    %28 = sbr.rel (0) target = $region21
  $region20: #{char_model_forward.1} parent=0 // pred_region
    _
  $region21: #{char_model_forward.1} parent=0 // pred_fallthru
    _
  // Predicated region
  $region22: #{char_model_forward.1} parent=0 // pred_check
    _
  $region23: #{char_model_forward.1} parent=0 // pred_check_branch
    %30 = sbr.rel (0) target = $region25
  $region24: #{char_model_forward.1} parent=0 // pred_region
    _
  $region25: #{char_model_forward.1} parent=0 // pred_fallthru
    _
  // Predicated region
  $region26: #{char_model_forward.1} parent=0 // pred_check
    _
  $region27: #{char_model_forward.1} parent=0 // pred_check_branch
    %32 = sbr.rel (0) target = $region29
  $region28: #{char_model_forward.1} parent=0 // pred_region
    _
  $region29: #{char_model_forward.1} parent=0 // pred_fallthru
    _
  // Predicated region
  $region30: #{char_model_forward.1} parent=0 // pred_check
    _
  $region31: #{char_model_forward.1} parent=0 // pred_check_branch
    %34 = sbr.rel (0) target = $region33
  $region32: #{char_model_forward.1} parent=0 // pred_region
    _
  $region33: #{char_model_forward.1} parent=0 // pred_fallthru
    _
  // Predicated region
  $region34: #{char_model_forward.1} parent=0 // pred_check
    _
  $region35: #{char_model_forward.1} parent=0 // pred_check_branch
    %36 = sbr.rel (0) target = $region37
  $region36: #{char_model_forward.1} parent=0 // pred_region
    _
  $region37: #{char_model_forward.1} parent=0 // pred_fallthru
    _
  // Predicated region
  $region38: #{char_model_forward.1} parent=0 // pred_check
    _
  $region39: #{char_model_forward.1} parent=0 // pred_check_branch
    %38 = sbr.rel (0) target = $region41
  $region40: #{char_model_forward.1} parent=0 // pred_region
    _
  $region41: #{char_model_forward.1} parent=0 // pred_fallthru
    _
  // Predicated region
  $region42: #{char_model_forward.1} parent=0 // pred_check
    _
  $region43: #{char_model_forward.1} parent=0 // pred_check_branch
    %40 = sbr.rel (0) target = $region45
  $region44: #{char_model_forward.1} parent=0 // pred_region
    _
  $region45: #{char_model_forward.1} parent=0 // pred_fallthru
    _
  %v42 = vld [vmem:[%s0] sm:$0xf]
  %v43 = vld [vmem:[%s0 + $0x4] sm:$0xf]
  %v44 = vld [vmem:[%s0 + $0x8] sm:$0xf]
  %v45 = vld [vmem:[%s0 + $0xc] sm:$0xf]
  %v46 = vld [vmem:[%s0 + $0x10] sm:$0xf]
  %v47 = vld [vmem:[%s0 + $0x14] sm:$0xf]
  %v48 = vld [vmem:[%s0 + $0x18] sm:$0xf]
  %v49 = vld [vmem:[%s0 + $0x1c] sm:$0xf]
  %v50 = vld [vmem:[%s1] sm:$0xff]
  %v51 = vld [vmem:[%s1 + $0x8] sm:$0xff]
  %v52 = vld [vmem:[%s1 + $0x10] sm:$0xff]
  %v53 = vld [vmem:[%s1 + $0x18] sm:$0xff]
  %v54 = vld [vmem:[%s1 + $0x20] sm:$0xff]
  %v55 = vld [vmem:[%s1 + $0x28] sm:$0xff]
  %v56 = vld [vmem:[%s1 + $0x30] sm:$0xff]
  %v57 = vld [vmem:[%s1 + $0x38] sm:$0xff]
  %v58 = vld [vmem:[%s1 + $0x40] sm:$0xff]
  %v59 = vld [vmem:[%s1 + $0x48] sm:$0xff]
  %v60 = vld [vmem:[%s1 + $0x50] sm:$0xff]
  %v61 = vld [vmem:[%s1 + $0x58] sm:$0xff]
  %v62 = vld [vmem:[%s1 + $0x60] sm:$0xff]
  %v63 = vld [vmem:[%s1 + $0x68] sm:$0xff]
  %v64 = vld [vmem:[%s1 + $0x70] sm:$0xff]
  %v65 = vld [vmem:[%s1 + $0x78] sm:$0xff]
  %v66 = vld [vmem:[%s1 + $0x80] sm:$0xff]
  %v67 = vld [vmem:[%s1 + $0x88] sm:$0xff]
  %v68 = vld [vmem:[%s1 + $0x90] sm:$0xff]
  %v69 = vld [vmem:[%s1 + $0x98] sm:$0xff]
  %v70 = vld [vmem:[%s1 + $0xa0] sm:$0xff]
  %v71 = vld [vmem:[%s1 + $0xa8] sm:$0xff]
  %v72 = vld [vmem:[%s1 + $0xb0] sm:$0xff]
  %v73 = vld [vmem:[%s1 + $0xb8] sm:$0xff]
  %v74 = vld [vmem:[%s1 + $0xc0] sm:$0xff]
  %v75 = vld [vmem:[%s1 + $0xc8] sm:$0xff]
  %v76 = vld [vmem:[%s1 + $0xd0] sm:$0xff]
  %v77 = vld [vmem:[%s1 + $0xd8] sm:$0xff]
  %v78 = vld [vmem:[%s1 + $0xe0] sm:$0xff]
  %v79 = vld [vmem:[%s1 + $0xe8] sm:$0xff]
  %v80 = vld [vmem:[%s1 + $0xf0] sm:$0xff]
  %v81 = vld [vmem:[%s1 + $0xf8] sm:$0xff]
  %v82 = vld [vmem:[%s3] sm:$0xf]
  %v84 = vlaneseq
  %v85 = vshrl.u32 %v84, 7
  %v86 = vsub.s32 0, %v85
  %v87 = vrot.slane %v82, %v86
  %v88 = vlaneseq
  %v89 = vshrl.u32 %v88, 7
  %v90 = vsub.s32 1, %v89
  %v91 = vrot.slane %v82, %v90
  %v92 = vlaneseq
  %v93 = vshrl.u32 %v92, 7
  %v94 = vsub.s32 2, %v93
  %v95 = vrot.slane %v82, %v94
  %v96 = vlaneseq
  %v97 = vshrl.u32 %v96, 7
  %v98 = vsub.s32 3, %v97
  %v99 = vrot.slane %v82, %v98
  %v112 = vunpack.c.l.b16 %v42
  %v113 = vunpack.c.l.b16 %v43
  %v114 = vunpack.c.l.b16 %v44
  %v115 = vunpack.c.l.b16 %v45
  %v116 = vunpack.c.l.b16 %v46
  %v117 = vunpack.c.l.b16 %v47
  %v118 = vunpack.c.l.b16 %v48
  %v119 = vunpack.c.l.b16 %v49
  %v120 = vpack.c.b16 %v113, %v112
  %v121 = vpack.c.b16 %v115, %v114
  %v122 = vpack.c.b16 %v117, %v116
  %v123 = vpack.c.b16 %v119, %v118
  %v160 = vunpack.c.l.b16 %v50
  %v161 = vunpack.c.h.b16 %v50
  %v162 = vunpack.c.l.b16 %v51
  %v163 = vunpack.c.h.b16 %v51
  %v164 = vunpack.c.l.b16 %v52
  %v165 = vunpack.c.h.b16 %v52
  %v166 = vunpack.c.l.b16 %v53
  %v167 = vunpack.c.h.b16 %v53
  %v168 = vunpack.c.l.b16 %v54
  %v169 = vunpack.c.h.b16 %v54
  %v170 = vunpack.c.l.b16 %v55
  %v171 = vunpack.c.h.b16 %v55
  %v172 = vunpack.c.l.b16 %v56
  %v173 = vunpack.c.h.b16 %v56
  %v174 = vunpack.c.l.b16 %v57
  %v175 = vunpack.c.h.b16 %v57
  %v176 = vunpack.c.l.b16 %v58
  %v177 = vunpack.c.h.b16 %v58
  %v178 = vunpack.c.l.b16 %v59
  %v179 = vunpack.c.h.b16 %v59
  %v180 = vunpack.c.l.b16 %v60
  %v181 = vunpack.c.h.b16 %v60
  %v182 = vunpack.c.l.b16 %v61
  %v183 = vunpack.c.h.b16 %v61
  %v184 = vunpack.c.l.b16 %v62
  %v185 = vunpack.c.h.b16 %v62
  %v186 = vunpack.c.l.b16 %v63
  %v187 = vunpack.c.h.b16 %v63
  %v188 = vunpack.c.l.b16 %v64
  %v189 = vunpack.c.h.b16 %v64
  %v190 = vunpack.c.l.b16 %v65
  %v191 = vunpack.c.h.b16 %v65
  %v192 = vunpack.c.l.b16 %v66
  %v193 = vunpack.c.h.b16 %v66
  %v194 = vunpack.c.l.b16 %v67
  %v195 = vunpack.c.h.b16 %v67
  %v196 = vunpack.c.l.b16 %v68
  %v197 = vunpack.c.h.b16 %v68
  %v198 = vunpack.c.l.b16 %v69
  %v199 = vunpack.c.h.b16 %v69
  %v200 = vunpack.c.l.b16 %v70
  %v201 = vunpack.c.h.b16 %v70
  %v202 = vunpack.c.l.b16 %v71
  %v203 = vunpack.c.h.b16 %v71
  %v204 = vunpack.c.l.b16 %v72
  %v205 = vunpack.c.h.b16 %v72
  %v206 = vunpack.c.l.b16 %v73
  %v207 = vunpack.c.h.b16 %v73
  %v208 = vunpack.c.l.b16 %v74
  %v209 = vunpack.c.h.b16 %v74
  %v210 = vunpack.c.l.b16 %v75
  %v211 = vunpack.c.h.b16 %v75
  %v212 = vunpack.c.l.b16 %v76
  %v213 = vunpack.c.h.b16 %v76
  %v214 = vunpack.c.l.b16 %v77
  %v215 = vunpack.c.h.b16 %v77
  %v216 = vunpack.c.l.b16 %v78
  %v217 = vunpack.c.h.b16 %v78
  %v218 = vunpack.c.l.b16 %v79
  %v219 = vunpack.c.h.b16 %v79
  %v220 = vunpack.c.l.b16 %v80
  %v221 = vunpack.c.h.b16 %v80
  %v222 = vunpack.c.l.b16 %v81
  %v223 = vunpack.c.h.b16 %v81
  %v224 = vpack.c.b16 %v164, %v160
  %v225 = vpack.c.b16 %v165, %v161
  %v226 = vpack.c.b16 %v166, %v162
  %v227 = vpack.c.b16 %v167, %v163
  %v228 = vpack.c.b16 %v172, %v168
  %v229 = vpack.c.b16 %v173, %v169
  %v230 = vpack.c.b16 %v174, %v170
  %v231 = vpack.c.b16 %v175, %v171
  %v232 = vpack.c.b16 %v180, %v176
  %v233 = vpack.c.b16 %v181, %v177
  %v234 = vpack.c.b16 %v182, %v178
  %v235 = vpack.c.b16 %v183, %v179
  %v236 = vpack.c.b16 %v188, %v184
  %v237 = vpack.c.b16 %v189, %v185
  %v238 = vpack.c.b16 %v190, %v186
  %v239 = vpack.c.b16 %v191, %v187
  %v240 = vpack.c.b16 %v196, %v192
  %v241 = vpack.c.b16 %v197, %v193
  %v242 = vpack.c.b16 %v198, %v194
  %v243 = vpack.c.b16 %v199, %v195
  %v244 = vpack.c.b16 %v204, %v200
  %v245 = vpack.c.b16 %v205, %v201
  %v246 = vpack.c.b16 %v206, %v202
  %v247 = vpack.c.b16 %v207, %v203
  %v248 = vpack.c.b16 %v212, %v208
  %v249 = vpack.c.b16 %v213, %v209
  %v250 = vpack.c.b16 %v214, %v210
  %v251 = vpack.c.b16 %v215, %v211
  %v252 = vpack.c.b16 %v220, %v216
  %v253 = vpack.c.b16 %v221, %v217
  %v254 = vpack.c.b16 %v222, %v218
  %v255 = vpack.c.b16 %v223, %v219
  %288 = vmatprep.subr.bf16.mxu0 %v225
  %289 = vmatpush1.bf16.msra.mxu0 %v224
  %290 = vmatprep.subr.bf16.mxu0 %v229
  %291 = vmatpush1.bf16.msra.mxu0 %v228
  %292 = vmatprep.subr.bf16.mxu0 %v233
  %293 = vmatpush1.bf16.msra.mxu0 %v232
  %294 = vmatprep.subr.bf16.mxu0 %v237
  %295 = vmatpush1.bf16.msra.mxu0 %v236
  %296 = vmatprep.subr.bf16.mxu0 %v241
  %297 = vmatpush1.bf16.msra.mxu0 %v240
  %298 = vmatprep.subr.bf16.mxu0 %v245
  %299 = vmatpush1.bf16.msra.mxu0 %v244
  %300 = vmatprep.subr.bf16.mxu0 %v249
  %301 = vmatpush1.bf16.msra.mxu0 %v248
  %302 = vmatprep.subr.bf16.mxu0 %v253
  %303 = vmatpush1.bf16.msra.mxu0 %v252
  %304 = vmatprep.subr.bf16.mxu0 0
  %305 = vmatpush1.bf16.msra.mxu0 0
  %306 = vmatprep.subr.bf16.mxu0 0
  %307 = vmatpush1.bf16.msra.mxu0 0
  %308 = vmatprep.subr.bf16.mxu0 0
  %309 = vmatpush1.bf16.msra.mxu0 0
  %310 = vmatprep.subr.bf16.mxu0 0
  %311 = vmatpush1.bf16.msra.mxu0 0
  %312 = vmatprep.subr.bf16.mxu0 0
  %313 = vmatpush1.bf16.msra.mxu0 0
  %314 = vmatprep.subr.bf16.mxu0 0
  %315 = vmatpush1.bf16.msra.mxu0 0
  %316 = vmatprep.subr.bf16.mxu0 0
  %317 = vmatpush1.bf16.msra.mxu0 0
  %318 = vmatprep.subr.bf16.mxu0 0
  %319 = vmatpush1.bf16.msra.mxu0 0
  %320 = vmatprep.mubr.bf16.mxu0 0
  %321 = vmatmul.mubr.bf16.gmra.mrb[0].mxu0 %v120
  %v322 = vpop.f32.mrb[0].mxu0
  %v323 = vadd.f32 %v87, %v322
  %v324 = vpop.f32.mrb[0].mxu0
  %v325 = vadd.f32 %v91, %v324
  %v326 = vpop.f32.mrb[0].mxu0
  %v327 = vadd.f32 %v87, %v326
  %v328 = vpop.f32.mrb[0].mxu0
  %v329 = vadd.f32 %v91, %v328
  %330 = vmatprep.mubr.bf16.mxu0 0
  %331 = vmatmul.mubr.bf16.gmra.mrb[0].mxu0 %v121
  %v332 = vpop.f32.mrb[0].mxu0
  %v333 = vadd.f32 %v87, %v332
  %v334 = vpop.f32.mrb[0].mxu0
  %v335 = vadd.f32 %v91, %v334
  %v336 = vpop.f32.mrb[0].mxu0
  %v337 = vadd.f32 %v87, %v336
  %v338 = vpop.f32.mrb[0].mxu0
  %v339 = vadd.f32 %v91, %v338
  %340 = vmatprep.mubr.bf16.mxu0 0
  %341 = vmatmul.mubr.bf16.gmra.mrb[0].mxu0 %v122
  %v342 = vpop.f32.mrb[0].mxu0
  %v343 = vadd.f32 %v87, %v342
  %v344 = vpop.f32.mrb[0].mxu0
  %v345 = vadd.f32 %v91, %v344
  %v346 = vpop.f32.mrb[0].mxu0
  %v347 = vadd.f32 %v87, %v346
  %v348 = vpop.f32.mrb[0].mxu0
  %v349 = vadd.f32 %v91, %v348
  %350 = vmatprep.mubr.bf16.mxu0 0
  %351 = vmatmul.mubr.bf16.gmra.mrb[0].mxu0 %v123
  %v352 = vpop.f32.mrb[0].mxu0
  %v353 = vadd.f32 %v87, %v352
  %v354 = vpop.f32.mrb[0].mxu0
  %v355 = vadd.f32 %v91, %v354
  %v356 = vpop.f32.mrb[0].mxu0
  %v357 = vadd.f32 %v87, %v356
  %v358 = vpop.f32.mrb[0].mxu0
  %v359 = vadd.f32 %v91, %v358
  %360 = vdwg.mxu0
  %361 = vmatprep.subr.bf16.mxu0 %v227
  %362 = vmatpush1.bf16.msra.mxu0 %v226
  %363 = vmatprep.subr.bf16.mxu0 %v231
  %364 = vmatpush1.bf16.msra.mxu0 %v230
  %365 = vmatprep.subr.bf16.mxu0 %v235
  %366 = vmatpush1.bf16.msra.mxu0 %v234
  %367 = vmatprep.subr.bf16.mxu0 %v239
  %368 = vmatpush1.bf16.msra.mxu0 %v238
  %369 = vmatprep.subr.bf16.mxu0 %v243
  %370 = vmatpush1.bf16.msra.mxu0 %v242
  %371 = vmatprep.subr.bf16.mxu0 %v247
  %372 = vmatpush1.bf16.msra.mxu0 %v246
  %373 = vmatprep.subr.bf16.mxu0 %v251
  %374 = vmatpush1.bf16.msra.mxu0 %v250
  %375 = vmatprep.subr.bf16.mxu0 %v255
  %376 = vmatpush1.bf16.msra.mxu0 %v254
  %377 = vmatprep.subr.bf16.mxu0 0
  %378 = vmatpush1.bf16.msra.mxu0 0
  %379 = vmatprep.subr.bf16.mxu0 0
  %380 = vmatpush1.bf16.msra.mxu0 0
  %381 = vmatprep.subr.bf16.mxu0 0
  %382 = vmatpush1.bf16.msra.mxu0 0
  %383 = vmatprep.subr.bf16.mxu0 0
  %384 = vmatpush1.bf16.msra.mxu0 0
  %385 = vmatprep.subr.bf16.mxu0 0
  %386 = vmatpush1.bf16.msra.mxu0 0
  %387 = vmatprep.subr.bf16.mxu0 0
  %388 = vmatpush1.bf16.msra.mxu0 0
  %389 = vmatprep.subr.bf16.mxu0 0
  %390 = vmatpush1.bf16.msra.mxu0 0
  %391 = vmatprep.subr.bf16.mxu0 0
  %392 = vmatpush1.bf16.msra.mxu0 0
  %393 = vmatprep.mubr.bf16.mxu0 0
  %394 = vmatmul.mubr.bf16.gmra.mrb[0].mxu0 %v120
  %v395 = vpop.f32.mrb[0].mxu0
  %v396 = vadd.f32 %v95, %v395
  %v397 = vpop.f32.mrb[0].mxu0
  %v398 = vadd.f32 %v99, %v397
  %v399 = vpop.f32.mrb[0].mxu0
  %v400 = vadd.f32 %v95, %v399
  %v401 = vpop.f32.mrb[0].mxu0
  %v402 = vadd.f32 %v99, %v401
  %403 = vmatprep.mubr.bf16.mxu0 0
  %404 = vmatmul.mubr.bf16.gmra.mrb[0].mxu0 %v121
  %v405 = vpop.f32.mrb[0].mxu0
  %v406 = vadd.f32 %v95, %v405
  %v407 = vpop.f32.mrb[0].mxu0
  %v408 = vadd.f32 %v99, %v407
  %v409 = vpop.f32.mrb[0].mxu0
  %v410 = vadd.f32 %v95, %v409
  %v411 = vpop.f32.mrb[0].mxu0
  %v412 = vadd.f32 %v99, %v411
  %413 = vmatprep.mubr.bf16.mxu0 0
  %414 = vmatmul.mubr.bf16.gmra.mrb[0].mxu0 %v122
  %v415 = vpop.f32.mrb[0].mxu0
  %v416 = vadd.f32 %v95, %v415
  %v417 = vpop.f32.mrb[0].mxu0
  %v418 = vadd.f32 %v99, %v417
  %v419 = vpop.f32.mrb[0].mxu0
  %v420 = vadd.f32 %v95, %v419
  %v421 = vpop.f32.mrb[0].mxu0
  %v422 = vadd.f32 %v99, %v421
  %423 = vmatprep.mubr.bf16.mxu0 0
  %424 = vmatmul.mubr.bf16.gmra.mrb[0].mxu0 %v123
  %v425 = vpop.f32.mrb[0].mxu0
  %v426 = vadd.f32 %v95, %v425
  %v427 = vpop.f32.mrb[0].mxu0
  %v428 = vadd.f32 %v99, %v427
  %v429 = vpop.f32.mrb[0].mxu0
  %v430 = vadd.f32 %v95, %v429
  %v431 = vpop.f32.mrb[0].mxu0
  %v432 = vadd.f32 %v99, %v431
  %433 = vdwg.mxu0
  %v434 = vpack.c.bf16 %v323, %v323
  %v435 = vpack.c.bf16 %v325, %v325
  %v436 = vpack.c.bf16 %v396, %v396
  %v437 = vpack.c.bf16 %v398, %v398
  %v438 = vpack.c.bf16 %v327, %v327
  %v439 = vpack.c.bf16 %v329, %v329
  %v440 = vpack.c.bf16 %v400, %v400
  %v441 = vpack.c.bf16 %v402, %v402
  %v442 = vpack.c.bf16 %v333, %v333
  %v443 = vpack.c.bf16 %v335, %v335
  %v444 = vpack.c.bf16 %v406, %v406
  %v445 = vpack.c.bf16 %v408, %v408
  %v446 = vpack.c.bf16 %v337, %v337
  %v447 = vpack.c.bf16 %v339, %v339
  %v448 = vpack.c.bf16 %v410, %v410
  %v449 = vpack.c.bf16 %v412, %v412
  %v450 = vpack.c.bf16 %v343, %v343
  %v451 = vpack.c.bf16 %v345, %v345
  %v452 = vpack.c.bf16 %v416, %v416
  %v453 = vpack.c.bf16 %v418, %v418
  %v454 = vpack.c.bf16 %v347, %v347
  %v455 = vpack.c.bf16 %v349, %v349
  %v456 = vpack.c.bf16 %v420, %v420
  %v457 = vpack.c.bf16 %v422, %v422
  %v458 = vpack.c.bf16 %v353, %v353
  %v459 = vpack.c.bf16 %v355, %v355
  %v460 = vpack.c.bf16 %v426, %v426
  %v461 = vpack.c.bf16 %v428, %v428
  %v462 = vpack.c.bf16 %v357, %v357
  %v463 = vpack.c.bf16 %v359, %v359
  %v464 = vpack.c.bf16 %v430, %v430
  %v465 = vpack.c.bf16 %v432, %v432
  %v498 = vunpack.c.l.b16 %v434
  %v499 = vunpack.c.l.b16 %v435
  %v500 = vunpack.c.l.b16 %v436
  %v501 = vunpack.c.l.b16 %v437
  %v502 = vunpack.c.l.b16 %v438
  %v503 = vunpack.c.l.b16 %v439
  %v504 = vunpack.c.l.b16 %v440
  %v505 = vunpack.c.l.b16 %v441
  %v506 = vunpack.c.l.b16 %v442
  %v507 = vunpack.c.l.b16 %v443
  %v508 = vunpack.c.l.b16 %v444
  %v509 = vunpack.c.l.b16 %v445
  %v510 = vunpack.c.l.b16 %v446
  %v511 = vunpack.c.l.b16 %v447
  %v512 = vunpack.c.l.b16 %v448
  %v513 = vunpack.c.l.b16 %v449
  %v514 = vunpack.c.l.b16 %v450
  %v515 = vunpack.c.l.b16 %v451
  %v516 = vunpack.c.l.b16 %v452
  %v517 = vunpack.c.l.b16 %v453
  %v518 = vunpack.c.l.b16 %v454
  %v519 = vunpack.c.l.b16 %v455
  %v520 = vunpack.c.l.b16 %v456
  %v521 = vunpack.c.l.b16 %v457
  %v522 = vunpack.c.l.b16 %v458
  %v523 = vunpack.c.l.b16 %v459
  %v524 = vunpack.c.l.b16 %v460
  %v525 = vunpack.c.l.b16 %v461
  %v526 = vunpack.c.l.b16 %v462
  %v527 = vunpack.c.l.b16 %v463
  %v528 = vunpack.c.l.b16 %v464
  %v529 = vunpack.c.l.b16 %v465
  %v530 = vpack.c.b16 %v499, %v498
  %v531 = vpack.c.b16 %v501, %v500
  %v532 = vpack.c.b16 %v503, %v502
  %v533 = vpack.c.b16 %v505, %v504
  %v534 = vpack.c.b16 %v507, %v506
  %v535 = vpack.c.b16 %v509, %v508
  %v536 = vpack.c.b16 %v511, %v510
  %v537 = vpack.c.b16 %v513, %v512
  %v538 = vpack.c.b16 %v515, %v514
  %v539 = vpack.c.b16 %v517, %v516
  %v540 = vpack.c.b16 %v519, %v518
  %v541 = vpack.c.b16 %v521, %v520
  %v542 = vpack.c.b16 %v523, %v522
  %v543 = vpack.c.b16 %v525, %v524
  %v544 = vpack.c.b16 %v527, %v526
  %v545 = vpack.c.b16 %v529, %v528
  %562 = vst [vmem:[#allocation3] sm:$0xff] %v530
  %563 = vst [vmem:[#allocation3 + $0x8] sm:$0xff] %v531
  %564 = vst [vmem:[#allocation3 + $0x10] sm:$0xff] %v532
  %565 = vst [vmem:[#allocation3 + $0x18] sm:$0xff] %v533
  %566 = vst [vmem:[#allocation3 + $0x20] sm:$0xff] %v534
  %567 = vst [vmem:[#allocation3 + $0x28] sm:$0xff] %v535
  %568 = vst [vmem:[#allocation3 + $0x30] sm:$0xff] %v536
  %569 = vst [vmem:[#allocation3 + $0x38] sm:$0xff] %v537
  %570 = vst [vmem:[#allocation3 + $0x40] sm:$0xff] %v538
  %571 = vst [vmem:[#allocation3 + $0x48] sm:$0xff] %v539
  %572 = vst [vmem:[#allocation3 + $0x50] sm:$0xff] %v540
  %573 = vst [vmem:[#allocation3 + $0x58] sm:$0xff] %v541
  %574 = vst [vmem:[#allocation3 + $0x60] sm:$0xff] %v542
  %575 = vst [vmem:[#allocation3 + $0x68] sm:$0xff] %v543
  %576 = vst [vmem:[#allocation3 + $0x70] sm:$0xff] %v544
  %577 = vst [vmem:[#allocation3 + $0x78] sm:$0xff] %v545
  %v578 = vld [vmem:[%s2] sm:$0xff]
  %v579 = vld [vmem:[%s2 + $0x8] sm:$0xff]
  %v580 = vld [vmem:[%s2 + $0x10] sm:$0xff]
  %v581 = vld [vmem:[%s2 + $0x18] sm:$0xff]
  %v582 = vld [vmem:[%s2 + $0x20] sm:$0xff]
  %v583 = vld [vmem:[%s2 + $0x28] sm:$0xff]
  %v584 = vld [vmem:[%s2 + $0x30] sm:$0xff]
  %v585 = vld [vmem:[%s2 + $0x38] sm:$0xff]
  %v586 = vld [vmem:[%s2 + $0x40] sm:$0xff]
  %v587 = vld [vmem:[%s2 + $0x48] sm:$0xff]
  %v588 = vld [vmem:[%s2 + $0x50] sm:$0xff]
  %v589 = vld [vmem:[%s2 + $0x58] sm:$0xff]
  %v590 = vld [vmem:[%s2 + $0x60] sm:$0xff]
  %v591 = vld [vmem:[%s2 + $0x68] sm:$0xff]
  %v592 = vld [vmem:[%s2 + $0x70] sm:$0xff]
  %v593 = vld [vmem:[%s2 + $0x78] sm:$0xff]
  %v594 = vld [vmem:[%s2 + $0x80] sm:$0xff]
  %v595 = vld [vmem:[%s2 + $0x88] sm:$0xff]
  %v596 = vld [vmem:[%s2 + $0x90] sm:$0xff]
  %v597 = vld [vmem:[%s2 + $0x98] sm:$0xff]
  %v598 = vld [vmem:[%s2 + $0xa0] sm:$0xff]
  %v599 = vld [vmem:[%s2 + $0xa8] sm:$0xff]
  %v600 = vld [vmem:[%s2 + $0xb0] sm:$0xff]
  %v601 = vld [vmem:[%s2 + $0xb8] sm:$0xff]
  %v602 = vld [vmem:[%s2 + $0xc0] sm:$0xff]
  %v603 = vld [vmem:[%s2 + $0xc8] sm:$0xff]
  %v604 = vld [vmem:[%s2 + $0xd0] sm:$0xff]
  %v605 = vld [vmem:[%s2 + $0xd8] sm:$0xff]
  %v606 = vld [vmem:[%s2 + $0xe0] sm:$0xff]
  %v607 = vld [vmem:[%s2 + $0xe8] sm:$0xff]
  %v608 = vld [vmem:[%s2 + $0xf0] sm:$0xff]
  %v609 = vld [vmem:[%s2 + $0xf8] sm:$0xff]
  %v610 = vld [vmem:[%s9] sm:$0xff]
  %v611 = vld [vmem:[%s10] sm:$0xff]
  %v612 = vld [vmem:[#allocation3] sm:$0xff]
  %v613 = vld [vmem:[#allocation3 + $0x8] sm:$0xff]
  %v614 = vunpack.c.l.bf16 %v612
  %v615 = vunpack.c.h.bf16 %v612
  %v616 = vunpack.c.l.bf16 %v613
  %v617 = vunpack.c.h.bf16 %v613
  %v618 = vpack.c.bf16 %v610, %v610
  %v651 = vunpack.c.l.b16 %v578
  %v652 = vunpack.c.h.b16 %v578
  %v653 = vunpack.c.l.b16 %v579
  %v654 = vunpack.c.h.b16 %v579
  %v655 = vunpack.c.l.b16 %v580
  %v656 = vunpack.c.h.b16 %v580
  %v657 = vunpack.c.l.b16 %v581
  %v658 = vunpack.c.h.b16 %v581
  %v659 = vunpack.c.l.b16 %v582
  %v660 = vunpack.c.h.b16 %v582
  %v661 = vunpack.c.l.b16 %v583
  %v662 = vunpack.c.h.b16 %v583
  %v663 = vunpack.c.l.b16 %v584
  %v664 = vunpack.c.h.b16 %v584
  %v665 = vunpack.c.l.b16 %v585
  %v666 = vunpack.c.h.b16 %v585
  %v667 = vunpack.c.l.b16 %v586
  %v668 = vunpack.c.h.b16 %v586
  %v669 = vunpack.c.l.b16 %v587
  %v670 = vunpack.c.h.b16 %v587
  %v671 = vunpack.c.l.b16 %v588
  %v672 = vunpack.c.h.b16 %v588
  %v673 = vunpack.c.l.b16 %v589
  %v674 = vunpack.c.h.b16 %v589
  %v675 = vunpack.c.l.b16 %v590
  %v676 = vunpack.c.h.b16 %v590
  %v677 = vunpack.c.l.b16 %v591
  %v678 = vunpack.c.h.b16 %v591
  %v679 = vunpack.c.l.b16 %v592
  %v680 = vunpack.c.h.b16 %v592
  %v681 = vunpack.c.l.b16 %v593
  %v682 = vunpack.c.h.b16 %v593
  %v683 = vunpack.c.l.b16 %v594
  %v684 = vunpack.c.h.b16 %v594
  %v685 = vunpack.c.l.b16 %v595
  %v686 = vunpack.c.h.b16 %v595
  %v687 = vunpack.c.l.b16 %v596
  %v688 = vunpack.c.h.b16 %v596
  %v689 = vunpack.c.l.b16 %v597
  %v690 = vunpack.c.h.b16 %v597
  %v691 = vunpack.c.l.b16 %v598
  %v692 = vunpack.c.h.b16 %v598
  %v693 = vunpack.c.l.b16 %v599
  %v694 = vunpack.c.h.b16 %v599
  %v695 = vunpack.c.l.b16 %v600
  %v696 = vunpack.c.h.b16 %v600
  %v697 = vunpack.c.l.b16 %v601
  %v698 = vunpack.c.h.b16 %v601
  %v699 = vunpack.c.l.b16 %v602
  %v700 = vunpack.c.h.b16 %v602
  %v701 = vunpack.c.l.b16 %v603
  %v702 = vunpack.c.h.b16 %v603
  %v703 = vunpack.c.l.b16 %v604
  %v704 = vunpack.c.h.b16 %v604
  %v705 = vunpack.c.l.b16 %v605
  %v706 = vunpack.c.h.b16 %v605
  %v707 = vunpack.c.l.b16 %v606
  %v708 = vunpack.c.h.b16 %v606
  %v709 = vunpack.c.l.b16 %v607
  %v710 = vunpack.c.h.b16 %v607
  %v711 = vunpack.c.l.b16 %v608
  %v712 = vunpack.c.h.b16 %v608
  %v713 = vunpack.c.l.b16 %v609
  %v714 = vunpack.c.h.b16 %v609
  %v715 = vpack.c.b16 %v655, %v651
  %v716 = vpack.c.b16 %v656, %v652
  %v717 = vpack.c.b16 %v657, %v653
  %v718 = vpack.c.b16 %v658, %v654
  %v719 = vpack.c.b16 %v663, %v659
  %v720 = vpack.c.b16 %v664, %v660
  %v721 = vpack.c.b16 %v665, %v661
  %v722 = vpack.c.b16 %v666, %v662
  %v723 = vpack.c.b16 %v671, %v667
  %v724 = vpack.c.b16 %v672, %v668
  %v725 = vpack.c.b16 %v673, %v669
  %v726 = vpack.c.b16 %v674, %v670
  %v727 = vpack.c.b16 %v679, %v675
  %v728 = vpack.c.b16 %v680, %v676
  %v729 = vpack.c.b16 %v681, %v677
  %v730 = vpack.c.b16 %v682, %v678
  %v731 = vpack.c.b16 %v687, %v683
  %v732 = vpack.c.b16 %v688, %v684
  %v733 = vpack.c.b16 %v689, %v685
  %v734 = vpack.c.b16 %v690, %v686
  %v735 = vpack.c.b16 %v695, %v691
  %v736 = vpack.c.b16 %v696, %v692
  %v737 = vpack.c.b16 %v697, %v693
  %v738 = vpack.c.b16 %v698, %v694
  %v739 = vpack.c.b16 %v703, %v699
  %v740 = vpack.c.b16 %v704, %v700
  %v741 = vpack.c.b16 %v705, %v701
  %v742 = vpack.c.b16 %v706, %v702
  %v743 = vpack.c.b16 %v711, %v707
  %v744 = vpack.c.b16 %v712, %v708
  %v745 = vpack.c.b16 %v713, %v709
  %v746 = vpack.c.b16 %v714, %v710
  %779 = vmatprep.subr.bf16.mxu0 %v716
  %780 = vmatpush1.bf16.msra.mxu0 %v715
  %781 = vmatprep.subr.bf16.mxu0 %v720
  %782 = vmatpush1.bf16.msra.mxu0 %v719
  %783 = vmatprep.subr.bf16.mxu0 %v724
  %784 = vmatpush1.bf16.msra.mxu0 %v723
  %785 = vmatprep.subr.bf16.mxu0 %v728
  %786 = vmatpush1.bf16.msra.mxu0 %v727
  %787 = vmatprep.subr.bf16.mxu0 %v732
  %788 = vmatpush1.bf16.msra.mxu0 %v731
  %789 = vmatprep.subr.bf16.mxu0 %v736
  %790 = vmatpush1.bf16.msra.mxu0 %v735
  %791 = vmatprep.subr.bf16.mxu0 %v740
  %792 = vmatpush1.bf16.msra.mxu0 %v739
  %793 = vmatprep.subr.bf16.mxu0 %v744
  %794 = vmatpush1.bf16.msra.mxu0 %v743
  %795 = vmatprep.subr.bf16.mxu0 0
  %796 = vmatpush1.bf16.msra.mxu0 0
  %797 = vmatprep.subr.bf16.mxu0 0
  %798 = vmatpush1.bf16.msra.mxu0 0
  %799 = vmatprep.subr.bf16.mxu0 0
  %800 = vmatpush1.bf16.msra.mxu0 0
  %801 = vmatprep.subr.bf16.mxu0 0
  %802 = vmatpush1.bf16.msra.mxu0 0
  %803 = vmatprep.subr.bf16.mxu0 0
  %804 = vmatpush1.bf16.msra.mxu0 0
  %805 = vmatprep.subr.bf16.mxu0 0
  %806 = vmatpush1.bf16.msra.mxu0 0
  %807 = vmatprep.subr.bf16.mxu0 0
  %808 = vmatpush1.bf16.msra.mxu0 0
  %809 = vmatprep.subr.bf16.mxu0 0
  %810 = vmatpush1.bf16.msra.mxu0 0
  %811 = vmatprep.mubr.bf16.mxu0 0
  %812 = vmatmul.mubr.bf16.gmra.mrb[0].mxu0 %v618
  %v813 = vpop.f32.mrb[0].mxu0
  %v814 = vadd.f32 0.0, %v813
  %v815 = vpop.f32.mrb[0].mxu0
  %v816 = vadd.f32 0.0, %v815
  %v817 = vpop.f32.mrb[0].mxu0
  %v818 = vpop.f32.mrb[0].mxu0
  %819 = vdwg.mxu0
  %820 = vmatprep.subr.bf16.mxu0 %v718
  %821 = vmatpush1.bf16.msra.mxu0 %v717
  %822 = vmatprep.subr.bf16.mxu0 %v722
  %823 = vmatpush1.bf16.msra.mxu0 %v721
  %824 = vmatprep.subr.bf16.mxu0 %v726
  %825 = vmatpush1.bf16.msra.mxu0 %v725
  %826 = vmatprep.subr.bf16.mxu0 %v730
  %827 = vmatpush1.bf16.msra.mxu0 %v729
  %828 = vmatprep.subr.bf16.mxu0 %v734
  %829 = vmatpush1.bf16.msra.mxu0 %v733
  %830 = vmatprep.subr.bf16.mxu0 %v738
  %831 = vmatpush1.bf16.msra.mxu0 %v737
  %832 = vmatprep.subr.bf16.mxu0 %v742
  %833 = vmatpush1.bf16.msra.mxu0 %v741
  %834 = vmatprep.subr.bf16.mxu0 %v746
  %835 = vmatpush1.bf16.msra.mxu0 %v745
  %836 = vmatprep.subr.bf16.mxu0 0
  %837 = vmatpush1.bf16.msra.mxu0 0
  %838 = vmatprep.subr.bf16.mxu0 0
  %839 = vmatpush1.bf16.msra.mxu0 0
  %840 = vmatprep.subr.bf16.mxu0 0
  %841 = vmatpush1.bf16.msra.mxu0 0
  %842 = vmatprep.subr.bf16.mxu0 0
  %843 = vmatpush1.bf16.msra.mxu0 0
  %844 = vmatprep.subr.bf16.mxu0 0
  %845 = vmatpush1.bf16.msra.mxu0 0
  %846 = vmatprep.subr.bf16.mxu0 0
  %847 = vmatpush1.bf16.msra.mxu0 0
  %848 = vmatprep.subr.bf16.mxu0 0
  %849 = vmatpush1.bf16.msra.mxu0 0
  %850 = vmatprep.subr.bf16.mxu0 0
  %851 = vmatpush1.bf16.msra.mxu0 0
  %852 = vmatprep.mubr.bf16.mxu0 0
  %853 = vmatmul.mubr.bf16.gmra.mrb[0].mxu0 %v618
  %v854 = vpop.f32.mrb[0].mxu0
  %v855 = vadd.f32 0.0, %v854
  %v856 = vpop.f32.mrb[0].mxu0
  %v857 = vadd.f32 0.0, %v856
  %v858 = vpop.f32.mrb[0].mxu0
  %v859 = vpop.f32.mrb[0].mxu0
  %860 = vdwg.mxu0
  %v861 = vadd.f32 %v614, %v814
  %v862 = vadd.f32 %v615, %v816
  %v863 = vadd.f32 %v616, %v855
  %v864 = vadd.f32 %v617, %v857
  %v865 = vxor.u32 %v861, 2147483648
  %v866 = vxor.u32 %v862, 2147483648
  %v867 = vxor.u32 %v863, 2147483648
  %v868 = vmul.f32 %v865, 1.442695
  %v869 = vpow.pop %v868
  %v870 = vmul.f32 %v866, 1.442695
  %v871 = vpow.pop %v870
  %v872 = vmul.f32 %v867, 1.442695
  %v873 = vpow.pop %v872
  %v874 = vadd.f32 %v869, 1.0
  %v875 = vadd.f32 %v871, 1.0
  %v876 = vadd.f32 %v873, 1.0
  %v877 = vrcp.pop %v874
  %v878 = vmul.f32 1.0, %v877
  %v879 = vrcp.pop %v875
  %v880 = vmul.f32 1.0, %v879
  %v881 = vrcp.pop %v876
  %v882 = vmul.f32 1.0, %v881
  %v883 = vtanh.pop %v864
  %v884 = vmul.f32 %v880, %v611
  %v885 = vmul.f32 %v878, %v883
  %v886 = vadd.f32 %v884, %v885
  %v887 = vtanh.pop %v886
  %v888 = vmul.f32 %v882, %v887
  %v889 = vpack.c.bf16 %v888, %v888
  %890 = vst [vmem:[#allocation2] sm:$0xf] %v889
  %s891 = scalar_lea.vmem [#allocation3], 16
  %v892 = vld [vmem:[%s891] sm:$0xff]
  %v893 = vld [vmem:[%s891 + $0x8] sm:$0xff]
  %v894 = vunpack.c.l.bf16 %v892
  %v895 = vunpack.c.h.bf16 %v892
  %v896 = vunpack.c.l.bf16 %v893
  %v897 = vunpack.c.h.bf16 %v893
  %898 = vmatprep.subr.bf16.mxu0 %v716
  %899 = vmatpush1.bf16.msra.mxu0 %v715
  %900 = vmatprep.subr.bf16.mxu0 %v720
  %901 = vmatpush1.bf16.msra.mxu0 %v719
  %902 = vmatprep.subr.bf16.mxu0 %v724
  %903 = vmatpush1.bf16.msra.mxu0 %v723
  %904 = vmatprep.subr.bf16.mxu0 %v728
  %905 = vmatpush1.bf16.msra.mxu0 %v727
  %906 = vmatprep.subr.bf16.mxu0 %v732
  %907 = vmatpush1.bf16.msra.mxu0 %v731
  %908 = vmatprep.subr.bf16.mxu0 %v736
  %909 = vmatpush1.bf16.msra.mxu0 %v735
  %910 = vmatprep.subr.bf16.mxu0 %v740
  %911 = vmatpush1.bf16.msra.mxu0 %v739
  %912 = vmatprep.subr.bf16.mxu0 %v744
  %913 = vmatpush1.bf16.msra.mxu0 %v743
  %914 = vmatprep.subr.bf16.mxu0 0
  %915 = vmatpush1.bf16.msra.mxu0 0
  %916 = vmatprep.subr.bf16.mxu0 0
  %917 = vmatpush1.bf16.msra.mxu0 0
  %918 = vmatprep.subr.bf16.mxu0 0
  %919 = vmatpush1.bf16.msra.mxu0 0
  %920 = vmatprep.subr.bf16.mxu0 0
  %921 = vmatpush1.bf16.msra.mxu0 0
  %922 = vmatprep.subr.bf16.mxu0 0
  %923 = vmatpush1.bf16.msra.mxu0 0
  %924 = vmatprep.subr.bf16.mxu0 0
  %925 = vmatpush1.bf16.msra.mxu0 0
  %926 = vmatprep.subr.bf16.mxu0 0
  %927 = vmatpush1.bf16.msra.mxu0 0
  %928 = vmatprep.subr.bf16.mxu0 0
  %929 = vmatpush1.bf16.msra.mxu0 0
  %930 = vmatprep.mubr.bf16.mxu0 0
  %931 = vmatmul.mubr.bf16.gmra.mrb[0].mxu0 %v889
  %v932 = vpop.f32.mrb[0].mxu0
  %v933 = vadd.f32 0.0, %v932
  %v934 = vpop.f32.mrb[0].mxu0
  %v935 = vadd.f32 0.0, %v934
  %v936 = vpop.f32.mrb[0].mxu0
  %v937 = vpop.f32.mrb[0].mxu0
  %938 = vdwg.mxu0
  %939 = vmatprep.subr.bf16.mxu0 %v718
  %940 = vmatpush1.bf16.msra.mxu0 %v717
  %941 = vmatprep.subr.bf16.mxu0 %v722
  %942 = vmatpush1.bf16.msra.mxu0 %v721
  %943 = vmatprep.subr.bf16.mxu0 %v726
  %944 = vmatpush1.bf16.msra.mxu0 %v725
  %945 = vmatprep.subr.bf16.mxu0 %v730
  %946 = vmatpush1.bf16.msra.mxu0 %v729
  %947 = vmatprep.subr.bf16.mxu0 %v734
  %948 = vmatpush1.bf16.msra.mxu0 %v733
  %949 = vmatprep.subr.bf16.mxu0 %v738
  %950 = vmatpush1.bf16.msra.mxu0 %v737
  %951 = vmatprep.subr.bf16.mxu0 %v742
  %952 = vmatpush1.bf16.msra.mxu0 %v741
  %953 = vmatprep.subr.bf16.mxu0 %v746
  %954 = vmatpush1.bf16.msra.mxu0 %v745
  %955 = vmatprep.subr.bf16.mxu0 0
  %956 = vmatpush1.bf16.msra.mxu0 0
  %957 = vmatprep.subr.bf16.mxu0 0
  %958 = vmatpush1.bf16.msra.mxu0 0
  %959 = vmatprep.subr.bf16.mxu0 0
  %960 = vmatpush1.bf16.msra.mxu0 0
  %961 = vmatprep.subr.bf16.mxu0 0
  %962 = vmatpush1.bf16.msra.mxu0 0
  %963 = vmatprep.subr.bf16.mxu0 0
  %964 = vmatpush1.bf16.msra.mxu0 0
  %965 = vmatprep.subr.bf16.mxu0 0
  %966 = vmatpush1.bf16.msra.mxu0 0
  %967 = vmatprep.subr.bf16.mxu0 0
  %968 = vmatpush1.bf16.msra.mxu0 0
  %969 = vmatprep.subr.bf16.mxu0 0
  %970 = vmatpush1.bf16.msra.mxu0 0
  %971 = vmatprep.mubr.bf16.mxu0 0
  %972 = vmatmul.mubr.bf16.gmra.mrb[0].mxu0 %v889
  %v973 = vpop.f32.mrb[0].mxu0
  %v974 = vadd.f32 0.0, %v973
  %v975 = vpop.f32.mrb[0].mxu0
  %v976 = vadd.f32 0.0, %v975
  %v977 = vpop.f32.mrb[0].mxu0
  %v978 = vpop.f32.mrb[0].mxu0
  %979 = vdwg.mxu0
  %v980 = vadd.f32 %v894, %v933
  %v981 = vadd.f32 %v895, %v935
  %v982 = vadd.f32 %v896, %v974
  %v983 = vadd.f32 %v897, %v976
  %v984 = vxor.u32 %v980, 2147483648
  %v985 = vxor.u32 %v981, 2147483648
  %v986 = vxor.u32 %v982, 2147483648
  %v987 = vmul.f32 %v984, 1.442695
  %v988 = vpow.pop %v987
  %v989 = vmul.f32 %v985, 1.442695
  %v990 = vpow.pop %v989
  %v991 = vmul.f32 %v986, 1.442695
  %v992 = vpow.pop %v991
  %v993 = vadd.f32 %v988, 1.0
  %v994 = vadd.f32 %v990, 1.0
  %v995 = vadd.f32 %v992, 1.0
  %v996 = vrcp.pop %v993
  %v997 = vmul.f32 1.0, %v996
  %v998 = vrcp.pop %v994
  %v999 = vmul.f32 1.0, %v998
  %v1000 = vrcp.pop %v995
  %v1001 = vmul.f32 1.0, %v1000
  %v1002 = vtanh.pop %v983
  %v1003 = vmul.f32 %v999, %v886
  %v1004 = vmul.f32 %v997, %v1002
  %v1005 = vadd.f32 %v1003, %v1004
  %v1006 = vtanh.pop %v1005
  %v1007 = vmul.f32 %v1001, %v1006
  %v1008 = vpack.c.bf16 %v1007, %v1007
  %s1009 = scalar_lea.vmem [#allocation2], 4
  %1010 = vst [vmem:[%s1009] sm:$0xf] %v1008
  %s1011 = scalar_lea.vmem [#allocation3], 32
  %v1012 = vld [vmem:[%s1011] sm:$0xff]
  %v1013 = vld [vmem:[%s1011 + $0x8] sm:$0xff]
  %v1014 = vunpack.c.l.bf16 %v1012
  %v1015 = vunpack.c.h.bf16 %v1012
  %v1016 = vunpack.c.l.bf16 %v1013
  %v1017 = vunpack.c.h.bf16 %v1013
  %1018 = vmatprep.subr.bf16.mxu0 %v716
  %1019 = vmatpush1.bf16.msra.mxu0 %v715
  %1020 = vmatprep.subr.bf16.mxu0 %v720
  %1021 = vmatpush1.bf16.msra.mxu0 %v719
  %1022 = vmatprep.subr.bf16.mxu0 %v724
  %1023 = vmatpush1.bf16.msra.mxu0 %v723
  %1024 = vmatprep.subr.bf16.mxu0 %v728
  %1025 = vmatpush1.bf16.msra.mxu0 %v727
  %1026 = vmatprep.subr.bf16.mxu0 %v732
  %1027 = vmatpush1.bf16.msra.mxu0 %v731
  %1028 = vmatprep.subr.bf16.mxu0 %v736
  %1029 = vmatpush1.bf16.msra.mxu0 %v735
  %1030 = vmatprep.subr.bf16.mxu0 %v740
  %1031 = vmatpush1.bf16.msra.mxu0 %v739
  %1032 = vmatprep.subr.bf16.mxu0 %v744
  %1033 = vmatpush1.bf16.msra.mxu0 %v743
  %1034 = vmatprep.subr.bf16.mxu0 0
  %1035 = vmatpush1.bf16.msra.mxu0 0
  %1036 = vmatprep.subr.bf16.mxu0 0
  %1037 = vmatpush1.bf16.msra.mxu0 0
  %1038 = vmatprep.subr.bf16.mxu0 0
  %1039 = vmatpush1.bf16.msra.mxu0 0
  %1040 = vmatprep.subr.bf16.mxu0 0
  %1041 = vmatpush1.bf16.msra.mxu0 0
  %1042 = vmatprep.subr.bf16.mxu0 0
  %1043 = vmatpush1.bf16.msra.mxu0 0
  %1044 = vmatprep.subr.bf16.mxu0 0
  %1045 = vmatpush1.bf16.msra.mxu0 0
  %1046 = vmatprep.subr.bf16.mxu0 0
  %1047 = vmatpush1.bf16.msra.mxu0 0
  %1048 = vmatprep.subr.bf16.mxu0 0
  %1049 = vmatpush1.bf16.msra.mxu0 0
  %1050 = vmatprep.mubr.bf16.mxu0 0
  %1051 = vmatmul.mubr.bf16.gmra.mrb[0].mxu0 %v1008
  %v1052 = vpop.f32.mrb[0].mxu0
  %v1053 = vadd.f32 0.0, %v1052
  %v1054 = vpop.f32.mrb[0].mxu0
  %v1055 = vadd.f32 0.0, %v1054
  %v1056 = vpop.f32.mrb[0].mxu0
  %v1057 = vpop.f32.mrb[0].mxu0
  %1058 = vdwg.mxu0
  %1059 = vmatprep.subr.bf16.mxu0 %v718
  %1060 = vmatpush1.bf16.msra.mxu0 %v717
  %1061 = vmatprep.subr.bf16.mxu0 %v722
  %1062 = vmatpush1.bf16.msra.mxu0 %v721
  %1063 = vmatprep.subr.bf16.mxu0 %v726
  %1064 = vmatpush1.bf16.msra.mxu0 %v725
  %1065 = vmatprep.subr.bf16.mxu0 %v730
  %1066 = vmatpush1.bf16.msra.mxu0 %v729
  %1067 = vmatprep.subr.bf16.mxu0 %v734
  %1068 = vmatpush1.bf16.msra.mxu0 %v733
  %1069 = vmatprep.subr.bf16.mxu0 %v738
  %1070 = vmatpush1.bf16.msra.mxu0 %v737
  %1071 = vmatprep.subr.bf16.mxu0 %v742
  %1072 = vmatpush1.bf16.msra.mxu0 %v741
  %1073 = vmatprep.subr.bf16.mxu0 %v746
  %1074 = vmatpush1.bf16.msra.mxu0 %v745
  %1075 = vmatprep.subr.bf16.mxu0 0
  %1076 = vmatpush1.bf16.msra.mxu0 0
  %1077 = vmatprep.subr.bf16.mxu0 0
  %1078 = vmatpush1.bf16.msra.mxu0 0
  %1079 = vmatprep.subr.bf16.mxu0 0
  %1080 = vmatpush1.bf16.msra.mxu0 0
  %1081 = vmatprep.subr.bf16.mxu0 0
  %1082 = vmatpush1.bf16.msra.mxu0 0
  %1083 = vmatprep.subr.bf16.mxu0 0
  %1084 = vmatpush1.bf16.msra.mxu0 0
  %1085 = vmatprep.subr.bf16.mxu0 0
  %1086 = vmatpush1.bf16.msra.mxu0 0
  %1087 = vmatprep.subr.bf16.mxu0 0
  %1088 = vmatpush1.bf16.msra.mxu0 0
  %1089 = vmatprep.subr.bf16.mxu0 0
  %1090 = vmatpush1.bf16.msra.mxu0 0
  %1091 = vmatprep.mubr.bf16.mxu0 0
  %1092 = vmatmul.mubr.bf16.gmra.mrb[0].mxu0 %v1008
  %v1093 = vpop.f32.mrb[0].mxu0
  %v1094 = vadd.f32 0.0, %v1093
  %v1095 = vpop.f32.mrb[0].mxu0
  %v1096 = vadd.f32 0.0, %v1095
  %v1097 = vpop.f32.mrb[0].mxu0
  %v1098 = vpop.f32.mrb[0].mxu0
  %1099 = vdwg.mxu0
  %v1100 = vadd.f32 %v1014, %v1053
  %v1101 = vadd.f32 %v1015, %v1055
  %v1102 = vadd.f32 %v1016, %v1094
  %v1103 = vadd.f32 %v1017, %v1096
  %v1104 = vxor.u32 %v1100, 2147483648
  %v1105 = vxor.u32 %v1101, 2147483648
  %v1106 = vxor.u32 %v1102, 2147483648
  %v1107 = vmul.f32 %v1104, 1.442695
  %v1108 = vpow.pop %v1107
  %v1109 = vmul.f32 %v1105, 1.442695
  %v1110 = vpow.pop %v1109
  %v1111 = vmul.f32 %v1106, 1.442695
  %v1112 = vpow.pop %v1111
  %v1113 = vadd.f32 %v1108, 1.0
  %v1114 = vadd.f32 %v1110, 1.0
  %v1115 = vadd.f32 %v1112, 1.0
  %v1116 = vrcp.pop %v1113
  %v1117 = vmul.f32 1.0, %v1116
  %v1118 = vrcp.pop %v1114
  %v1119 = vmul.f32 1.0, %v1118
  %v1120 = vrcp.pop %v1115
  %v1121 = vmul.f32 1.0, %v1120
  %v1122 = vtanh.pop %v1103
  %v1123 = vmul.f32 %v1119, %v1005
  %v1124 = vmul.f32 %v1117, %v1122
  %v1125 = vadd.f32 %v1123, %v1124
  %v1126 = vtanh.pop %v1125
  %v1127 = vmul.f32 %v1121, %v1126
  %v1128 = vpack.c.bf16 %v1127, %v1127
  %s1129 = scalar_lea.vmem [#allocation2], 8
  %1130 = vst [vmem:[%s1129] sm:$0xf] %v1128
  %s1131 = scalar_lea.vmem [#allocation3], 48
  %v1132 = vld [vmem:[%s1131] sm:$0xff]
  %v1133 = vld [vmem:[%s1131 + $0x8] sm:$0xff]
  %v1134 = vunpack.c.l.bf16 %v1132
  %v1135 = vunpack.c.h.bf16 %v1132
  %v1136 = vunpack.c.l.bf16 %v1133
  %v1137 = vunpack.c.h.bf16 %v1133
  %1138 = vmatprep.subr.bf16.mxu0 %v716
  %1139 = vmatpush1.bf16.msra.mxu0 %v715
  %1140 = vmatprep.subr.bf16.mxu0 %v720
  %1141 = vmatpush1.bf16.msra.mxu0 %v719
  %1142 = vmatprep.subr.bf16.mxu0 %v724
  %1143 = vmatpush1.bf16.msra.mxu0 %v723
  %1144 = vmatprep.subr.bf16.mxu0 %v728
  %1145 = vmatpush1.bf16.msra.mxu0 %v727
  %1146 = vmatprep.subr.bf16.mxu0 %v732
  %1147 = vmatpush1.bf16.msra.mxu0 %v731
  %1148 = vmatprep.subr.bf16.mxu0 %v736
  %1149 = vmatpush1.bf16.msra.mxu0 %v735
  %1150 = vmatprep.subr.bf16.mxu0 %v740
  %1151 = vmatpush1.bf16.msra.mxu0 %v739
  %1152 = vmatprep.subr.bf16.mxu0 %v744
  %1153 = vmatpush1.bf16.msra.mxu0 %v743
  %1154 = vmatprep.subr.bf16.mxu0 0
  %1155 = vmatpush1.bf16.msra.mxu0 0
  %1156 = vmatprep.subr.bf16.mxu0 0
  %1157 = vmatpush1.bf16.msra.mxu0 0
  %1158 = vmatprep.subr.bf16.mxu0 0
  %1159 = vmatpush1.bf16.msra.mxu0 0
  %1160 = vmatprep.subr.bf16.mxu0 0
  %1161 = vmatpush1.bf16.msra.mxu0 0
  %1162 = vmatprep.subr.bf16.mxu0 0
  %1163 = vmatpush1.bf16.msra.mxu0 0
  %1164 = vmatprep.subr.bf16.mxu0 0
  %1165 = vmatpush1.bf16.msra.mxu0 0
  %1166 = vmatprep.subr.bf16.mxu0 0
  %1167 = vmatpush1.bf16.msra.mxu0 0
  %1168 = vmatprep.subr.bf16.mxu0 0
  %1169 = vmatpush1.bf16.msra.mxu0 0
  %1170 = vmatprep.mubr.bf16.mxu0 0
  %1171 = vmatmul.mubr.bf16.gmra.mrb[0].mxu0 %v1128
  %v1172 = vpop.f32.mrb[0].mxu0
  %v1173 = vadd.f32 0.0, %v1172
  %v1174 = vpop.f32.mrb[0].mxu0
  %v1175 = vadd.f32 0.0, %v1174
  %v1176 = vpop.f32.mrb[0].mxu0
  %v1177 = vpop.f32.mrb[0].mxu0
  %1178 = vdwg.mxu0
  %1179 = vmatprep.subr.bf16.mxu0 %v718
  %1180 = vmatpush1.bf16.msra.mxu0 %v717
  %1181 = vmatprep.subr.bf16.mxu0 %v722
  %1182 = vmatpush1.bf16.msra.mxu0 %v721
  %1183 = vmatprep.subr.bf16.mxu0 %v726
  %1184 = vmatpush1.bf16.msra.mxu0 %v725
  %1185 = vmatprep.subr.bf16.mxu0 %v730
  %1186 = vmatpush1.bf16.msra.mxu0 %v729
  %1187 = vmatprep.subr.bf16.mxu0 %v734
  %1188 = vmatpush1.bf16.msra.mxu0 %v733
  %1189 = vmatprep.subr.bf16.mxu0 %v738
  %1190 = vmatpush1.bf16.msra.mxu0 %v737
  %1191 = vmatprep.subr.bf16.mxu0 %v742
  %1192 = vmatpush1.bf16.msra.mxu0 %v741
  %1193 = vmatprep.subr.bf16.mxu0 %v746
  %1194 = vmatpush1.bf16.msra.mxu0 %v745
  %1195 = vmatprep.subr.bf16.mxu0 0
  %1196 = vmatpush1.bf16.msra.mxu0 0
  %1197 = vmatprep.subr.bf16.mxu0 0
  %1198 = vmatpush1.bf16.msra.mxu0 0
  %1199 = vmatprep.subr.bf16.mxu0 0
  %1200 = vmatpush1.bf16.msra.mxu0 0
  %1201 = vmatprep.subr.bf16.mxu0 0
  %1202 = vmatpush1.bf16.msra.mxu0 0
  %1203 = vmatprep.subr.bf16.mxu0 0
  %1204 = vmatpush1.bf16.msra.mxu0 0
  %1205 = vmatprep.subr.bf16.mxu0 0
  %1206 = vmatpush1.bf16.msra.mxu0 0
  %1207 = vmatprep.subr.bf16.mxu0 0
  %1208 = vmatpush1.bf16.msra.mxu0 0
  %1209 = vmatprep.subr.bf16.mxu0 0
  %1210 = vmatpush1.bf16.msra.mxu0 0
  %1211 = vmatprep.mubr.bf16.mxu0 0
  %1212 = vmatmul.mubr.bf16.gmra.mrb[0].mxu0 %v1128
  %v1213 = vpop.f32.mrb[0].mxu0
  %v1214 = vadd.f32 0.0, %v1213
  %v1215 = vpop.f32.mrb[0].mxu0
  %v1216 = vadd.f32 0.0, %v1215
  %v1217 = vpop.f32.mrb[0].mxu0
  %v1218 = vpop.f32.mrb[0].mxu0
  %1219 = vdwg.mxu0
  %v1220 = vadd.f32 %v1134, %v1173
  %v1221 = vadd.f32 %v1135, %v1175
  %v1222 = vadd.f32 %v1136, %v1214
  %v1223 = vadd.f32 %v1137, %v1216
  %v1224 = vxor.u32 %v1220, 2147483648
  %v1225 = vxor.u32 %v1221, 2147483648
  %v1226 = vxor.u32 %v1222, 2147483648
  %v1227 = vmul.f32 %v1224, 1.442695
  %v1228 = vpow.pop %v1227
  %v1229 = vmul.f32 %v1225, 1.442695
  %v1230 = vpow.pop %v1229
  %v1231 = vmul.f32 %v1226, 1.442695
  %v1232 = vpow.pop %v1231
  %v1233 = vadd.f32 %v1228, 1.0
  %v1234 = vadd.f32 %v1230, 1.0
  %v1235 = vadd.f32 %v1232, 1.0
  %v1236 = vrcp.pop %v1233
  %v1237 = vmul.f32 1.0, %v1236
  %v1238 = vrcp.pop %v1234
  %v1239 = vmul.f32 1.0, %v1238
  %v1240 = vrcp.pop %v1235
  %v1241 = vmul.f32 1.0, %v1240
  %v1242 = vtanh.pop %v1223
  %v1243 = vmul.f32 %v1239, %v1125
  %v1244 = vmul.f32 %v1237, %v1242
  %v1245 = vadd.f32 %v1243, %v1244
  %v1246 = vtanh.pop %v1245
  %v1247 = vmul.f32 %v1241, %v1246
  %v1248 = vpack.c.bf16 %v1247, %v1247
  %s1249 = scalar_lea.vmem [#allocation2], 12
  %1250 = vst [vmem:[%s1249] sm:$0xf] %v1248
  %s1251 = scalar_lea.vmem [#allocation3], 64
  %v1252 = vld [vmem:[%s1251] sm:$0xff]
  %v1253 = vld [vmem:[%s1251 + $0x8] sm:$0xff]
  %v1254 = vunpack.c.l.bf16 %v1252
  %v1255 = vunpack.c.h.bf16 %v1252
  %v1256 = vunpack.c.l.bf16 %v1253
  %v1257 = vunpack.c.h.bf16 %v1253
  %1258 = vmatprep.subr.bf16.mxu0 %v716
  %1259 = vmatpush1.bf16.msra.mxu0 %v715
  %1260 = vmatprep.subr.bf16.mxu0 %v720
  %1261 = vmatpush1.bf16.msra.mxu0 %v719
  %1262 = vmatprep.subr.bf16.mxu0 %v724
  %1263 = vmatpush1.bf16.msra.mxu0 %v723
  %1264 = vmatprep.subr.bf16.mxu0 %v728
  %1265 = vmatpush1.bf16.msra.mxu0 %v727
  %1266 = vmatprep.subr.bf16.mxu0 %v732
  %1267 = vmatpush1.bf16.msra.mxu0 %v731
  %1268 = vmatprep.subr.bf16.mxu0 %v736
  %1269 = vmatpush1.bf16.msra.mxu0 %v735
  %1270 = vmatprep.subr.bf16.mxu0 %v740
  %1271 = vmatpush1.bf16.msra.mxu0 %v739
  %1272 = vmatprep.subr.bf16.mxu0 %v744
  %1273 = vmatpush1.bf16.msra.mxu0 %v743
  %1274 = vmatprep.subr.bf16.mxu0 0
  %1275 = vmatpush1.bf16.msra.mxu0 0
  %1276 = vmatprep.subr.bf16.mxu0 0
  %1277 = vmatpush1.bf16.msra.mxu0 0
  %1278 = vmatprep.subr.bf16.mxu0 0
  %1279 = vmatpush1.bf16.msra.mxu0 0
  %1280 = vmatprep.subr.bf16.mxu0 0
  %1281 = vmatpush1.bf16.msra.mxu0 0
  %1282 = vmatprep.subr.bf16.mxu0 0
  %1283 = vmatpush1.bf16.msra.mxu0 0
  %1284 = vmatprep.subr.bf16.mxu0 0
  %1285 = vmatpush1.bf16.msra.mxu0 0
  %1286 = vmatprep.subr.bf16.mxu0 0
  %1287 = vmatpush1.bf16.msra.mxu0 0
  %1288 = vmatprep.subr.bf16.mxu0 0
  %1289 = vmatpush1.bf16.msra.mxu0 0
  %1290 = vmatprep.mubr.bf16.mxu0 0
  %1291 = vmatmul.mubr.bf16.gmra.mrb[0].mxu0 %v1248
  %v1292 = vpop.f32.mrb[0].mxu0
  %v1293 = vadd.f32 0.0, %v1292
  %v1294 = vpop.f32.mrb[0].mxu0
  %v1295 = vadd.f32 0.0, %v1294
  %v1296 = vpop.f32.mrb[0].mxu0
  %v1297 = vpop.f32.mrb[0].mxu0
  %1298 = vdwg.mxu0
  %1299 = vmatprep.subr.bf16.mxu0 %v718
  %1300 = vmatpush1.bf16.msra.mxu0 %v717
  %1301 = vmatprep.subr.bf16.mxu0 %v722
  %1302 = vmatpush1.bf16.msra.mxu0 %v721
  %1303 = vmatprep.subr.bf16.mxu0 %v726
  %1304 = vmatpush1.bf16.msra.mxu0 %v725
  %1305 = vmatprep.subr.bf16.mxu0 %v730
  %1306 = vmatpush1.bf16.msra.mxu0 %v729
  %1307 = vmatprep.subr.bf16.mxu0 %v734
  %1308 = vmatpush1.bf16.msra.mxu0 %v733
  %1309 = vmatprep.subr.bf16.mxu0 %v738
  %1310 = vmatpush1.bf16.msra.mxu0 %v737
  %1311 = vmatprep.subr.bf16.mxu0 %v742
  %1312 = vmatpush1.bf16.msra.mxu0 %v741
  %1313 = vmatprep.subr.bf16.mxu0 %v746
  %1314 = vmatpush1.bf16.msra.mxu0 %v745
  %1315 = vmatprep.subr.bf16.mxu0 0
  %1316 = vmatpush1.bf16.msra.mxu0 0
  %1317 = vmatprep.subr.bf16.mxu0 0
  %1318 = vmatpush1.bf16.msra.mxu0 0
  %1319 = vmatprep.subr.bf16.mxu0 0
  %1320 = vmatpush1.bf16.msra.mxu0 0
  %1321 = vmatprep.subr.bf16.mxu0 0
  %1322 = vmatpush1.bf16.msra.mxu0 0
  %1323 = vmatprep.subr.bf16.mxu0 0
  %1324 = vmatpush1.bf16.msra.mxu0 0
  %1325 = vmatprep.subr.bf16.mxu0 0
  %1326 = vmatpush1.bf16.msra.mxu0 0
  %1327 = vmatprep.subr.bf16.mxu0 0
  %1328 = vmatpush1.bf16.msra.mxu0 0
  %1329 = vmatprep.subr.bf16.mxu0 0
  %1330 = vmatpush1.bf16.msra.mxu0 0
  %1331 = vmatprep.mubr.bf16.mxu0 0
  %1332 = vmatmul.mubr.bf16.gmra.mrb[0].mxu0 %v1248
  %v1333 = vpop.f32.mrb[0].mxu0
  %v1334 = vadd.f32 0.0, %v1333
  %v1335 = vpop.f32.mrb[0].mxu0
  %v1336 = vadd.f32 0.0, %v1335
  %v1337 = vpop.f32.mrb[0].mxu0
  %v1338 = vpop.f32.mrb[0].mxu0
  %1339 = vdwg.mxu0
  %v1340 = vadd.f32 %v1254, %v1293
  %v1341 = vadd.f32 %v1255, %v1295
  %v1342 = vadd.f32 %v1256, %v1334
  %v1343 = vadd.f32 %v1257, %v1336
  %v1344 = vxor.u32 %v1340, 2147483648
  %v1345 = vxor.u32 %v1341, 2147483648
  %v1346 = vxor.u32 %v1342, 2147483648
  %v1347 = vmul.f32 %v1344, 1.442695
  %v1348 = vpow.pop %v1347
  %v1349 = vmul.f32 %v1345, 1.442695
  %v1350 = vpow.pop %v1349
  %v1351 = vmul.f32 %v1346, 1.442695
  %v1352 = vpow.pop %v1351
  %v1353 = vadd.f32 %v1348, 1.0
  %v1354 = vadd.f32 %v1350, 1.0
  %v1355 = vadd.f32 %v1352, 1.0
  %v1356 = vrcp.pop %v1353
  %v1357 = vmul.f32 1.0, %v1356
  %v1358 = vrcp.pop %v1354
  %v1359 = vmul.f32 1.0, %v1358
  %v1360 = vrcp.pop %v1355
  %v1361 = vmul.f32 1.0, %v1360
  %v1362 = vtanh.pop %v1343
  %v1363 = vmul.f32 %v1359, %v1245
  %v1364 = vmul.f32 %v1357, %v1362
  %v1365 = vadd.f32 %v1363, %v1364
  %v1366 = vtanh.pop %v1365
  %v1367 = vmul.f32 %v1361, %v1366
  %v1368 = vpack.c.bf16 %v1367, %v1367
  %s1369 = scalar_lea.vmem [#allocation2], 16
  %1370 = vst [vmem:[%s1369] sm:$0xf] %v1368
  %s1371 = scalar_lea.vmem [#allocation3], 80
  %v1372 = vld [vmem:[%s1371] sm:$0xff]
  %v1373 = vld [vmem:[%s1371 + $0x8] sm:$0xff]
  %v1374 = vunpack.c.l.bf16 %v1372
  %v1375 = vunpack.c.h.bf16 %v1372
  %v1376 = vunpack.c.l.bf16 %v1373
  %v1377 = vunpack.c.h.bf16 %v1373
  %1378 = vmatprep.subr.bf16.mxu0 %v716
  %1379 = vmatpush1.bf16.msra.mxu0 %v715
  %1380 = vmatprep.subr.bf16.mxu0 %v720
  %1381 = vmatpush1.bf16.msra.mxu0 %v719
  %1382 = vmatprep.subr.bf16.mxu0 %v724
  %1383 = vmatpush1.bf16.msra.mxu0 %v723
  %1384 = vmatprep.subr.bf16.mxu0 %v728
  %1385 = vmatpush1.bf16.msra.mxu0 %v727
  %1386 = vmatprep.subr.bf16.mxu0 %v732
  %1387 = vmatpush1.bf16.msra.mxu0 %v731
  %1388 = vmatprep.subr.bf16.mxu0 %v736
  %1389 = vmatpush1.bf16.msra.mxu0 %v735
  %1390 = vmatprep.subr.bf16.mxu0 %v740
  %1391 = vmatpush1.bf16.msra.mxu0 %v739
  %1392 = vmatprep.subr.bf16.mxu0 %v744
  %1393 = vmatpush1.bf16.msra.mxu0 %v743
  %1394 = vmatprep.subr.bf16.mxu0 0
  %1395 = vmatpush1.bf16.msra.mxu0 0
  %1396 = vmatprep.subr.bf16.mxu0 0
  %1397 = vmatpush1.bf16.msra.mxu0 0
  %1398 = vmatprep.subr.bf16.mxu0 0
  %1399 = vmatpush1.bf16.msra.mxu0 0
  %1400 = vmatprep.subr.bf16.mxu0 0
  %1401 = vmatpush1.bf16.msra.mxu0 0
  %1402 = vmatprep.subr.bf16.mxu0 0
  %1403 = vmatpush1.bf16.msra.mxu0 0
  %1404 = vmatprep.subr.bf16.mxu0 0
  %1405 = vmatpush1.bf16.msra.mxu0 0
  %1406 = vmatprep.subr.bf16.mxu0 0
  %1407 = vmatpush1.bf16.msra.mxu0 0
  %1408 = vmatprep.subr.bf16.mxu0 0
  %1409 = vmatpush1.bf16.msra.mxu0 0
  %1410 = vmatprep.mubr.bf16.mxu0 0
  %1411 = vmatmul.mubr.bf16.gmra.mrb[0].mxu0 %v1368
  %v1412 = vpop.f32.mrb[0].mxu0
  %v1413 = vadd.f32 0.0, %v1412
  %v1414 = vpop.f32.mrb[0].mxu0
  %v1415 = vadd.f32 0.0, %v1414
  %v1416 = vpop.f32.mrb[0].mxu0
  %v1417 = vpop.f32.mrb[0].mxu0
  %1418 = vdwg.mxu0
  %1419 = vmatprep.subr.bf16.mxu0 %v718
  %1420 = vmatpush1.bf16.msra.mxu0 %v717
  %1421 = vmatprep.subr.bf16.mxu0 %v722
  %1422 = vmatpush1.bf16.msra.mxu0 %v721
  %1423 = vmatprep.subr.bf16.mxu0 %v726
  %1424 = vmatpush1.bf16.msra.mxu0 %v725
  %1425 = vmatprep.subr.bf16.mxu0 %v730
  %1426 = vmatpush1.bf16.msra.mxu0 %v729
  %1427 = vmatprep.subr.bf16.mxu0 %v734
  %1428 = vmatpush1.bf16.msra.mxu0 %v733
  %1429 = vmatprep.subr.bf16.mxu0 %v738
  %1430 = vmatpush1.bf16.msra.mxu0 %v737
  %1431 = vmatprep.subr.bf16.mxu0 %v742
  %1432 = vmatpush1.bf16.msra.mxu0 %v741
  %1433 = vmatprep.subr.bf16.mxu0 %v746
  %1434 = vmatpush1.bf16.msra.mxu0 %v745
  %1435 = vmatprep.subr.bf16.mxu0 0
  %1436 = vmatpush1.bf16.msra.mxu0 0
  %1437 = vmatprep.subr.bf16.mxu0 0
  %1438 = vmatpush1.bf16.msra.mxu0 0
  %1439 = vmatprep.subr.bf16.mxu0 0
  %1440 = vmatpush1.bf16.msra.mxu0 0
  %1441 = vmatprep.subr.bf16.mxu0 0
  %1442 = vmatpush1.bf16.msra.mxu0 0
  %1443 = vmatprep.subr.bf16.mxu0 0
  %1444 = vmatpush1.bf16.msra.mxu0 0
  %1445 = vmatprep.subr.bf16.mxu0 0
  %1446 = vmatpush1.bf16.msra.mxu0 0
  %1447 = vmatprep.subr.bf16.mxu0 0
  %1448 = vmatpush1.bf16.msra.mxu0 0
  %1449 = vmatprep.subr.bf16.mxu0 0
  %1450 = vmatpush1.bf16.msra.mxu0 0
  %1451 = vmatprep.mubr.bf16.mxu0 0
  %1452 = vmatmul.mubr.bf16.gmra.mrb[0].mxu0 %v1368
  %v1453 = vpop.f32.mrb[0].mxu0
  %v1454 = vadd.f32 0.0, %v1453
  %v1455 = vpop.f32.mrb[0].mxu0
  %v1456 = vadd.f32 0.0, %v1455
  %v1457 = vpop.f32.mrb[0].mxu0
  %v1458 = vpop.f32.mrb[0].mxu0
  %1459 = vdwg.mxu0
  %v1460 = vadd.f32 %v1374, %v1413
  %v1461 = vadd.f32 %v1375, %v1415
  %v1462 = vadd.f32 %v1376, %v1454
  %v1463 = vadd.f32 %v1377, %v1456
  %v1464 = vxor.u32 %v1460, 2147483648
  %v1465 = vxor.u32 %v1461, 2147483648
  %v1466 = vxor.u32 %v1462, 2147483648
  %v1467 = vmul.f32 %v1464, 1.442695
  %v1468 = vpow.pop %v1467
  %v1469 = vmul.f32 %v1465, 1.442695
  %v1470 = vpow.pop %v1469
  %v1471 = vmul.f32 %v1466, 1.442695
  %v1472 = vpow.pop %v1471
  %v1473 = vadd.f32 %v1468, 1.0
  %v1474 = vadd.f32 %v1470, 1.0
  %v1475 = vadd.f32 %v1472, 1.0
  %v1476 = vrcp.pop %v1473
  %v1477 = vmul.f32 1.0, %v1476
  %v1478 = vrcp.pop %v1474
  %v1479 = vmul.f32 1.0, %v1478
  %v1480 = vrcp.pop %v1475
  %v1481 = vmul.f32 1.0, %v1480
  %v1482 = vtanh.pop %v1463
  %v1483 = vmul.f32 %v1479, %v1365
  %v1484 = vmul.f32 %v1477, %v1482
  %v1485 = vadd.f32 %v1483, %v1484
  %v1486 = vtanh.pop %v1485
  %v1487 = vmul.f32 %v1481, %v1486
  %v1488 = vpack.c.bf16 %v1487, %v1487
  %s1489 = scalar_lea.vmem [#allocation2], 20
  %1490 = vst [vmem:[%s1489] sm:$0xf] %v1488
  %s1491 = scalar_lea.vmem [#allocation3], 96
  %v1492 = vld [vmem:[%s1491] sm:$0xff]
  %v1493 = vld [vmem:[%s1491 + $0x8] sm:$0xff]
  %v1494 = vunpack.c.l.bf16 %v1492
  %v1495 = vunpack.c.h.bf16 %v1492
  %v1496 = vunpack.c.l.bf16 %v1493
  %v1497 = vunpack.c.h.bf16 %v1493
  %1498 = vmatprep.subr.bf16.mxu0 %v716
  %1499 = vmatpush1.bf16.msra.mxu0 %v715
  %1500 = vmatprep.subr.bf16.mxu0 %v720
  %1501 = vmatpush1.bf16.msra.mxu0 %v719
  %1502 = vmatprep.subr.bf16.mxu0 %v724
  %1503 = vmatpush1.bf16.msra.mxu0 %v723
  %1504 = vmatprep.subr.bf16.mxu0 %v728
  %1505 = vmatpush1.bf16.msra.mxu0 %v727
  %1506 = vmatprep.subr.bf16.mxu0 %v732
  %1507 = vmatpush1.bf16.msra.mxu0 %v731
  %1508 = vmatprep.subr.bf16.mxu0 %v736
  %1509 = vmatpush1.bf16.msra.mxu0 %v735
  %1510 = vmatprep.subr.bf16.mxu0 %v740
  %1511 = vmatpush1.bf16.msra.mxu0 %v739
  %1512 = vmatprep.subr.bf16.mxu0 %v744
  %1513 = vmatpush1.bf16.msra.mxu0 %v743
  %1514 = vmatprep.subr.bf16.mxu0 0
  %1515 = vmatpush1.bf16.msra.mxu0 0
  %1516 = vmatprep.subr.bf16.mxu0 0
  %1517 = vmatpush1.bf16.msra.mxu0 0
  %1518 = vmatprep.subr.bf16.mxu0 0
  %1519 = vmatpush1.bf16.msra.mxu0 0
  %1520 = vmatprep.subr.bf16.mxu0 0
  %1521 = vmatpush1.bf16.msra.mxu0 0
  %1522 = vmatprep.subr.bf16.mxu0 0
  %1523 = vmatpush1.bf16.msra.mxu0 0
  %1524 = vmatprep.subr.bf16.mxu0 0
  %1525 = vmatpush1.bf16.msra.mxu0 0
  %1526 = vmatprep.subr.bf16.mxu0 0
  %1527 = vmatpush1.bf16.msra.mxu0 0
  %1528 = vmatprep.subr.bf16.mxu0 0
  %1529 = vmatpush1.bf16.msra.mxu0 0
  %1530 = vmatprep.mubr.bf16.mxu0 0
  %1531 = vmatmul.mubr.bf16.gmra.mrb[0].mxu0 %v1488
  %v1532 = vpop.f32.mrb[0].mxu0
  %v1533 = vadd.f32 0.0, %v1532
  %v1534 = vpop.f32.mrb[0].mxu0
  %v1535 = vadd.f32 0.0, %v1534
  %v1536 = vpop.f32.mrb[0].mxu0
  %v1537 = vpop.f32.mrb[0].mxu0
  %1538 = vdwg.mxu0
  %1539 = vmatprep.subr.bf16.mxu0 %v718
  %1540 = vmatpush1.bf16.msra.mxu0 %v717
  %1541 = vmatprep.subr.bf16.mxu0 %v722
  %1542 = vmatpush1.bf16.msra.mxu0 %v721
  %1543 = vmatprep.subr.bf16.mxu0 %v726
  %1544 = vmatpush1.bf16.msra.mxu0 %v725
  %1545 = vmatprep.subr.bf16.mxu0 %v730
  %1546 = vmatpush1.bf16.msra.mxu0 %v729
  %1547 = vmatprep.subr.bf16.mxu0 %v734
  %1548 = vmatpush1.bf16.msra.mxu0 %v733
  %1549 = vmatprep.subr.bf16.mxu0 %v738
  %1550 = vmatpush1.bf16.msra.mxu0 %v737
  %1551 = vmatprep.subr.bf16.mxu0 %v742
  %1552 = vmatpush1.bf16.msra.mxu0 %v741
  %1553 = vmatprep.subr.bf16.mxu0 %v746
  %1554 = vmatpush1.bf16.msra.mxu0 %v745
  %1555 = vmatprep.subr.bf16.mxu0 0
  %1556 = vmatpush1.bf16.msra.mxu0 0
  %1557 = vmatprep.subr.bf16.mxu0 0
  %1558 = vmatpush1.bf16.msra.mxu0 0
  %1559 = vmatprep.subr.bf16.mxu0 0
  %1560 = vmatpush1.bf16.msra.mxu0 0
  %1561 = vmatprep.subr.bf16.mxu0 0
  %1562 = vmatpush1.bf16.msra.mxu0 0
  %1563 = vmatprep.subr.bf16.mxu0 0
  %1564 = vmatpush1.bf16.msra.mxu0 0
  %1565 = vmatprep.subr.bf16.mxu0 0
  %1566 = vmatpush1.bf16.msra.mxu0 0
  %1567 = vmatprep.subr.bf16.mxu0 0
  %1568 = vmatpush1.bf16.msra.mxu0 0
  %1569 = vmatprep.subr.bf16.mxu0 0
  %1570 = vmatpush1.bf16.msra.mxu0 0
  %1571 = vmatprep.mubr.bf16.mxu0 0
  %1572 = vmatmul.mubr.bf16.gmra.mrb[0].mxu0 %v1488
  %v1573 = vpop.f32.mrb[0].mxu0
  %v1574 = vadd.f32 0.0, %v1573
  %v1575 = vpop.f32.mrb[0].mxu0
  %v1576 = vadd.f32 0.0, %v1575
  %v1577 = vpop.f32.mrb[0].mxu0
  %v1578 = vpop.f32.mrb[0].mxu0
  %1579 = vdwg.mxu0
  %v1580 = vadd.f32 %v1494, %v1533
  %v1581 = vadd.f32 %v1495, %v1535
  %v1582 = vadd.f32 %v1496, %v1574
  %v1583 = vadd.f32 %v1497, %v1576
  %v1584 = vxor.u32 %v1580, 2147483648
  %v1585 = vxor.u32 %v1581, 2147483648
  %v1586 = vxor.u32 %v1582, 2147483648
  %v1587 = vmul.f32 %v1584, 1.442695
  %v1588 = vpow.pop %v1587
  %v1589 = vmul.f32 %v1585, 1.442695
  %v1590 = vpow.pop %v1589
  %v1591 = vmul.f32 %v1586, 1.442695
  %v1592 = vpow.pop %v1591
  %v1593 = vadd.f32 %v1588, 1.0
  %v1594 = vadd.f32 %v1590, 1.0
  %v1595 = vadd.f32 %v1592, 1.0
  %v1596 = vrcp.pop %v1593
  %v1597 = vmul.f32 1.0, %v1596
  %v1598 = vrcp.pop %v1594
  %v1599 = vmul.f32 1.0, %v1598
  %v1600 = vrcp.pop %v1595
  %v1601 = vmul.f32 1.0, %v1600
  %v1602 = vtanh.pop %v1583
  %v1603 = vmul.f32 %v1599, %v1485
  %v1604 = vmul.f32 %v1597, %v1602
  %v1605 = vadd.f32 %v1603, %v1604
  %v1606 = vtanh.pop %v1605
  %v1607 = vmul.f32 %v1601, %v1606
  %v1608 = vpack.c.bf16 %v1607, %v1607
  %s1609 = scalar_lea.vmem [#allocation2], 24
  %1610 = vst [vmem:[%s1609] sm:$0xf] %v1608
  %s1611 = scalar_lea.vmem [#allocation3], 112
  %v1612 = vld [vmem:[%s1611] sm:$0xff]
  %v1613 = vld [vmem:[%s1611 + $0x8] sm:$0xff]
  %v1614 = vunpack.c.l.bf16 %v1612
  %v1615 = vunpack.c.h.bf16 %v1612
  %v1616 = vunpack.c.l.bf16 %v1613
  %v1617 = vunpack.c.h.bf16 %v1613
  %1618 = vmatprep.subr.bf16.mxu0 %v716
  %1619 = vmatpush1.bf16.msra.mxu0 %v715
  %1620 = vmatprep.subr.bf16.mxu0 %v720
  %1621 = vmatpush1.bf16.msra.mxu0 %v719
  %1622 = vmatprep.subr.bf16.mxu0 %v724
  %1623 = vmatpush1.bf16.msra.mxu0 %v723
  %1624 = vmatprep.subr.bf16.mxu0 %v728
  %1625 = vmatpush1.bf16.msra.mxu0 %v727
  %1626 = vmatprep.subr.bf16.mxu0 %v732
  %1627 = vmatpush1.bf16.msra.mxu0 %v731
  %1628 = vmatprep.subr.bf16.mxu0 %v736
  %1629 = vmatpush1.bf16.msra.mxu0 %v735
  %1630 = vmatprep.subr.bf16.mxu0 %v740
  %1631 = vmatpush1.bf16.msra.mxu0 %v739
  %1632 = vmatprep.subr.bf16.mxu0 %v744
  %1633 = vmatpush1.bf16.msra.mxu0 %v743
  %1634 = vmatprep.subr.bf16.mxu0 0
  %1635 = vmatpush1.bf16.msra.mxu0 0
  %1636 = vmatprep.subr.bf16.mxu0 0
  %1637 = vmatpush1.bf16.msra.mxu0 0
  %1638 = vmatprep.subr.bf16.mxu0 0
  %1639 = vmatpush1.bf16.msra.mxu0 0
  %1640 = vmatprep.subr.bf16.mxu0 0
  %1641 = vmatpush1.bf16.msra.mxu0 0
  %1642 = vmatprep.subr.bf16.mxu0 0
  %1643 = vmatpush1.bf16.msra.mxu0 0
  %1644 = vmatprep.subr.bf16.mxu0 0
  %1645 = vmatpush1.bf16.msra.mxu0 0
  %1646 = vmatprep.subr.bf16.mxu0 0
  %1647 = vmatpush1.bf16.msra.mxu0 0
  %1648 = vmatprep.subr.bf16.mxu0 0
  %1649 = vmatpush1.bf16.msra.mxu0 0
  %1650 = vmatprep.mubr.bf16.mxu0 0
  %1651 = vmatmul.mubr.bf16.gmra.mrb[0].mxu0 %v1608
  %v1652 = vpop.f32.mrb[0].mxu0
  %v1653 = vadd.f32 0.0, %v1652
  %v1654 = vpop.f32.mrb[0].mxu0
  %v1655 = vadd.f32 0.0, %v1654
  %v1656 = vpop.f32.mrb[0].mxu0
  %v1657 = vpop.f32.mrb[0].mxu0
  %1658 = vdwg.mxu0
  %1659 = vmatprep.subr.bf16.mxu0 %v718
  %1660 = vmatpush1.bf16.msra.mxu0 %v717
  %1661 = vmatprep.subr.bf16.mxu0 %v722
  %1662 = vmatpush1.bf16.msra.mxu0 %v721
  %1663 = vmatprep.subr.bf16.mxu0 %v726
  %1664 = vmatpush1.bf16.msra.mxu0 %v725
  %1665 = vmatprep.subr.bf16.mxu0 %v730
  %1666 = vmatpush1.bf16.msra.mxu0 %v729
  %1667 = vmatprep.subr.bf16.mxu0 %v734
  %1668 = vmatpush1.bf16.msra.mxu0 %v733
  %1669 = vmatprep.subr.bf16.mxu0 %v738
  %1670 = vmatpush1.bf16.msra.mxu0 %v737
  %1671 = vmatprep.subr.bf16.mxu0 %v742
  %1672 = vmatpush1.bf16.msra.mxu0 %v741
  %1673 = vmatprep.subr.bf16.mxu0 %v746
  %1674 = vmatpush1.bf16.msra.mxu0 %v745
  %1675 = vmatprep.subr.bf16.mxu0 0
  %1676 = vmatpush1.bf16.msra.mxu0 0
  %1677 = vmatprep.subr.bf16.mxu0 0
  %1678 = vmatpush1.bf16.msra.mxu0 0
  %1679 = vmatprep.subr.bf16.mxu0 0
  %1680 = vmatpush1.bf16.msra.mxu0 0
  %1681 = vmatprep.subr.bf16.mxu0 0
  %1682 = vmatpush1.bf16.msra.mxu0 0
  %1683 = vmatprep.subr.bf16.mxu0 0
  %1684 = vmatpush1.bf16.msra.mxu0 0
  %1685 = vmatprep.subr.bf16.mxu0 0
  %1686 = vmatpush1.bf16.msra.mxu0 0
  %1687 = vmatprep.subr.bf16.mxu0 0
  %1688 = vmatpush1.bf16.msra.mxu0 0
  %1689 = vmatprep.subr.bf16.mxu0 0
  %1690 = vmatpush1.bf16.msra.mxu0 0
  %1691 = vmatprep.mubr.bf16.mxu0 0
  %1692 = vmatmul.mubr.bf16.gmra.mrb[0].mxu0 %v1608
  %v1693 = vpop.f32.mrb[0].mxu0
  %v1694 = vadd.f32 0.0, %v1693
  %v1695 = vpop.f32.mrb[0].mxu0
  %v1696 = vadd.f32 0.0, %v1695
  %v1697 = vpop.f32.mrb[0].mxu0
  %v1698 = vpop.f32.mrb[0].mxu0
  %1699 = vdwg.mxu0
  %v1700 = vadd.f32 %v1614, %v1653
  %v1701 = vadd.f32 %v1615, %v1655
  %v1702 = vadd.f32 %v1616, %v1694
  %v1703 = vadd.f32 %v1617, %v1696
  %v1704 = vxor.u32 %v1700, 2147483648
  %v1705 = vxor.u32 %v1701, 2147483648
  %v1706 = vxor.u32 %v1702, 2147483648
  %v1707 = vmul.f32 %v1704, 1.442695
  %v1708 = vpow.pop %v1707
  %v1709 = vmul.f32 %v1705, 1.442695
  %v1710 = vpow.pop %v1709
  %v1711 = vmul.f32 %v1706, 1.442695
  %v1712 = vpow.pop %v1711
  %v1713 = vadd.f32 %v1708, 1.0
  %v1714 = vadd.f32 %v1710, 1.0
  %v1715 = vadd.f32 %v1712, 1.0
  %v1716 = vrcp.pop %v1713
  %v1717 = vmul.f32 1.0, %v1716
  %v1718 = vrcp.pop %v1714
  %v1719 = vmul.f32 1.0, %v1718
  %v1720 = vrcp.pop %v1715
  %v1721 = vmul.f32 1.0, %v1720
  %v1722 = vtanh.pop %v1703
  %v1723 = vmul.f32 %v1719, %v1605
  %v1724 = vmul.f32 %v1717, %v1722
  %v1725 = vadd.f32 %v1723, %v1724
  %v1726 = vtanh.pop %v1725
  %v1727 = vmul.f32 %v1721, %v1726
  %v1728 = vpack.c.bf16 %v1727, %v1727
  %s1729 = scalar_lea.vmem [#allocation2], 28
  %1730 = vst [vmem:[%s1729] sm:$0xf] %v1728
  %1731 = vst [vmem:[%s12] sm:$0xff] %v1727
  %1732 = vst [vmem:[%s13] sm:$0xff] %v1725
  %v1733 = vld [vmem:[#allocation2] sm:$0xf]
  %v1734 = vld [vmem:[#allocation2 + $0x4] sm:$0xf]
  %v1735 = vld [vmem:[#allocation2 + $0x8] sm:$0xf]
  %v1736 = vld [vmem:[#allocation2 + $0xc] sm:$0xf]
  %v1737 = vld [vmem:[#allocation2 + $0x10] sm:$0xf]
  %v1738 = vld [vmem:[#allocation2 + $0x14] sm:$0xf]
  %v1739 = vld [vmem:[#allocation2 + $0x18] sm:$0xf]
  %v1740 = vld [vmem:[#allocation2 + $0x1c] sm:$0xf]
  %v1741 = vld [vmem:[%s4] sm:$0xff]
  %v1742 = vld [vmem:[%s4 + $0x8] sm:$0xff]
  %v1743 = vld [vmem:[%s4 + $0x10] sm:$0xff]
  %v1744 = vld [vmem:[%s4 + $0x18] sm:$0xff]
  %v1745 = vld [vmem:[%s4 + $0x20] sm:$0xff]
  %v1746 = vld [vmem:[%s4 + $0x28] sm:$0xff]
  %v1747 = vld [vmem:[%s4 + $0x30] sm:$0xff]
  %v1748 = vld [vmem:[%s4 + $0x38] sm:$0xff]
  %v1749 = vld [vmem:[%s4 + $0x40] sm:$0xff]
  %v1750 = vld [vmem:[%s4 + $0x48] sm:$0xff]
  %v1751 = vld [vmem:[%s4 + $0x50] sm:$0xff]
  %v1752 = vld [vmem:[%s4 + $0x58] sm:$0xff]
  %v1753 = vld [vmem:[%s4 + $0x60] sm:$0xff]
  %v1754 = vld [vmem:[%s4 + $0x68] sm:$0xff]
  %v1755 = vld [vmem:[%s4 + $0x70] sm:$0xff]
  %v1756 = vld [vmem:[%s4 + $0x78] sm:$0xff]
  %v1757 = vld [vmem:[%s4 + $0x80] sm:$0xff]
  %v1758 = vld [vmem:[%s4 + $0x88] sm:$0xff]
  %v1759 = vld [vmem:[%s4 + $0x90] sm:$0xff]
  %v1760 = vld [vmem:[%s4 + $0x98] sm:$0xff]
  %v1761 = vld [vmem:[%s4 + $0xa0] sm:$0xff]
  %v1762 = vld [vmem:[%s4 + $0xa8] sm:$0xff]
  %v1763 = vld [vmem:[%s4 + $0xb0] sm:$0xff]
  %v1764 = vld [vmem:[%s4 + $0xb8] sm:$0xff]
  %v1765 = vld [vmem:[%s4 + $0xc0] sm:$0xff]
  %v1766 = vld [vmem:[%s4 + $0xc8] sm:$0xff]
  %v1767 = vld [vmem:[%s4 + $0xd0] sm:$0xff]
  %v1768 = vld [vmem:[%s4 + $0xd8] sm:$0xff]
  %v1769 = vld [vmem:[%s4 + $0xe0] sm:$0xff]
  %v1770 = vld [vmem:[%s4 + $0xe8] sm:$0xff]
  %v1771 = vld [vmem:[%s4 + $0xf0] sm:$0xff]
  %v1772 = vld [vmem:[%s4 + $0xf8] sm:$0xff]
  %v1773 = vld [vmem:[%s6] sm:$0xf]
  %v1775 = vlaneseq
  %v1776 = vshrl.u32 %v1775, 7
  %v1777 = vsub.s32 0, %v1776
  %v1778 = vrot.slane %v1773, %v1777
  %v1779 = vlaneseq
  %v1780 = vshrl.u32 %v1779, 7
  %v1781 = vsub.s32 1, %v1780
  %v1782 = vrot.slane %v1773, %v1781
  %v1783 = vlaneseq
  %v1784 = vshrl.u32 %v1783, 7
  %v1785 = vsub.s32 2, %v1784
  %v1786 = vrot.slane %v1773, %v1785
  %v1787 = vlaneseq
  %v1788 = vshrl.u32 %v1787, 7
  %v1789 = vsub.s32 3, %v1788
  %v1790 = vrot.slane %v1773, %v1789
  %v1803 = vunpack.c.l.b16 %v1733
  %v1804 = vunpack.c.l.b16 %v1734
  %v1805 = vunpack.c.l.b16 %v1735
  %v1806 = vunpack.c.l.b16 %v1736
  %v1807 = vunpack.c.l.b16 %v1737
  %v1808 = vunpack.c.l.b16 %v1738
  %v1809 = vunpack.c.l.b16 %v1739
  %v1810 = vunpack.c.l.b16 %v1740
  %v1811 = vpack.c.b16 %v1804, %v1803
  %v1812 = vpack.c.b16 %v1806, %v1805
  %v1813 = vpack.c.b16 %v1808, %v1807
  %v1814 = vpack.c.b16 %v1810, %v1809
  %v1851 = vunpack.c.l.b16 %v1741
  %v1852 = vunpack.c.h.b16 %v1741
  %v1853 = vunpack.c.l.b16 %v1742
  %v1854 = vunpack.c.h.b16 %v1742
  %v1855 = vunpack.c.l.b16 %v1743
  %v1856 = vunpack.c.h.b16 %v1743
  %v1857 = vunpack.c.l.b16 %v1744
  %v1858 = vunpack.c.h.b16 %v1744
  %v1859 = vunpack.c.l.b16 %v1745
  %v1860 = vunpack.c.h.b16 %v1745
  %v1861 = vunpack.c.l.b16 %v1746
  %v1862 = vunpack.c.h.b16 %v1746
  %v1863 = vunpack.c.l.b16 %v1747
  %v1864 = vunpack.c.h.b16 %v1747
  %v1865 = vunpack.c.l.b16 %v1748
  %v1866 = vunpack.c.h.b16 %v1748
  %v1867 = vunpack.c.l.b16 %v1749
  %v1868 = vunpack.c.h.b16 %v1749
  %v1869 = vunpack.c.l.b16 %v1750
  %v1870 = vunpack.c.h.b16 %v1750
  %v1871 = vunpack.c.l.b16 %v1751
  %v1872 = vunpack.c.h.b16 %v1751
  %v1873 = vunpack.c.l.b16 %v1752
  %v1874 = vunpack.c.h.b16 %v1752
  %v1875 = vunpack.c.l.b16 %v1753
  %v1876 = vunpack.c.h.b16 %v1753
  %v1877 = vunpack.c.l.b16 %v1754
  %v1878 = vunpack.c.h.b16 %v1754
  %v1879 = vunpack.c.l.b16 %v1755
  %v1880 = vunpack.c.h.b16 %v1755
  %v1881 = vunpack.c.l.b16 %v1756
  %v1882 = vunpack.c.h.b16 %v1756
  %v1883 = vunpack.c.l.b16 %v1757
  %v1884 = vunpack.c.h.b16 %v1757
  %v1885 = vunpack.c.l.b16 %v1758
  %v1886 = vunpack.c.h.b16 %v1758
  %v1887 = vunpack.c.l.b16 %v1759
  %v1888 = vunpack.c.h.b16 %v1759
  %v1889 = vunpack.c.l.b16 %v1760
  %v1890 = vunpack.c.h.b16 %v1760
  %v1891 = vunpack.c.l.b16 %v1761
  %v1892 = vunpack.c.h.b16 %v1761
  %v1893 = vunpack.c.l.b16 %v1762
  %v1894 = vunpack.c.h.b16 %v1762
  %v1895 = vunpack.c.l.b16 %v1763
  %v1896 = vunpack.c.h.b16 %v1763
  %v1897 = vunpack.c.l.b16 %v1764
  %v1898 = vunpack.c.h.b16 %v1764
  %v1899 = vunpack.c.l.b16 %v1765
  %v1900 = vunpack.c.h.b16 %v1765
  %v1901 = vunpack.c.l.b16 %v1766
  %v1902 = vunpack.c.h.b16 %v1766
  %v1903 = vunpack.c.l.b16 %v1767
  %v1904 = vunpack.c.h.b16 %v1767
  %v1905 = vunpack.c.l.b16 %v1768
  %v1906 = vunpack.c.h.b16 %v1768
  %v1907 = vunpack.c.l.b16 %v1769
  %v1908 = vunpack.c.h.b16 %v1769
  %v1909 = vunpack.c.l.b16 %v1770
  %v1910 = vunpack.c.h.b16 %v1770
  %v1911 = vunpack.c.l.b16 %v1771
  %v1912 = vunpack.c.h.b16 %v1771
  %v1913 = vunpack.c.l.b16 %v1772
  %v1914 = vunpack.c.h.b16 %v1772
  %v1915 = vpack.c.b16 %v1855, %v1851
  %v1916 = vpack.c.b16 %v1856, %v1852
  %v1917 = vpack.c.b16 %v1857, %v1853
  %v1918 = vpack.c.b16 %v1858, %v1854
  %v1919 = vpack.c.b16 %v1863, %v1859
  %v1920 = vpack.c.b16 %v1864, %v1860
  %v1921 = vpack.c.b16 %v1865, %v1861
  %v1922 = vpack.c.b16 %v1866, %v1862
  %v1923 = vpack.c.b16 %v1871, %v1867
  %v1924 = vpack.c.b16 %v1872, %v1868
  %v1925 = vpack.c.b16 %v1873, %v1869
  %v1926 = vpack.c.b16 %v1874, %v1870
  %v1927 = vpack.c.b16 %v1879, %v1875
  %v1928 = vpack.c.b16 %v1880, %v1876
  %v1929 = vpack.c.b16 %v1881, %v1877
  %v1930 = vpack.c.b16 %v1882, %v1878
  %v1931 = vpack.c.b16 %v1887, %v1883
  %v1932 = vpack.c.b16 %v1888, %v1884
  %v1933 = vpack.c.b16 %v1889, %v1885
  %v1934 = vpack.c.b16 %v1890, %v1886
  %v1935 = vpack.c.b16 %v1895, %v1891
  %v1936 = vpack.c.b16 %v1896, %v1892
  %v1937 = vpack.c.b16 %v1897, %v1893
  %v1938 = vpack.c.b16 %v1898, %v1894
  %v1939 = vpack.c.b16 %v1903, %v1899
  %v1940 = vpack.c.b16 %v1904, %v1900
  %v1941 = vpack.c.b16 %v1905, %v1901
  %v1942 = vpack.c.b16 %v1906, %v1902
  %v1943 = vpack.c.b16 %v1911, %v1907
  %v1944 = vpack.c.b16 %v1912, %v1908
  %v1945 = vpack.c.b16 %v1913, %v1909
  %v1946 = vpack.c.b16 %v1914, %v1910
  %1979 = vmatprep.subr.bf16.mxu0 %v1916
  %1980 = vmatpush1.bf16.msra.mxu0 %v1915
  %1981 = vmatprep.subr.bf16.mxu0 %v1920
  %1982 = vmatpush1.bf16.msra.mxu0 %v1919
  %1983 = vmatprep.subr.bf16.mxu0 %v1924
  %1984 = vmatpush1.bf16.msra.mxu0 %v1923
  %1985 = vmatprep.subr.bf16.mxu0 %v1928
  %1986 = vmatpush1.bf16.msra.mxu0 %v1927
  %1987 = vmatprep.subr.bf16.mxu0 %v1932
  %1988 = vmatpush1.bf16.msra.mxu0 %v1931
  %1989 = vmatprep.subr.bf16.mxu0 %v1936
  %1990 = vmatpush1.bf16.msra.mxu0 %v1935
  %1991 = vmatprep.subr.bf16.mxu0 %v1940
  %1992 = vmatpush1.bf16.msra.mxu0 %v1939
  %1993 = vmatprep.subr.bf16.mxu0 %v1944
  %1994 = vmatpush1.bf16.msra.mxu0 %v1943
  %1995 = vmatprep.subr.bf16.mxu0 0
  %1996 = vmatpush1.bf16.msra.mxu0 0
  %1997 = vmatprep.subr.bf16.mxu0 0
  %1998 = vmatpush1.bf16.msra.mxu0 0
  %1999 = vmatprep.subr.bf16.mxu0 0
  %2000 = vmatpush1.bf16.msra.mxu0 0
  %2001 = vmatprep.subr.bf16.mxu0 0
  %2002 = vmatpush1.bf16.msra.mxu0 0
  %2003 = vmatprep.subr.bf16.mxu0 0
  %2004 = vmatpush1.bf16.msra.mxu0 0
  %2005 = vmatprep.subr.bf16.mxu0 0
  %2006 = vmatpush1.bf16.msra.mxu0 0
  %2007 = vmatprep.subr.bf16.mxu0 0
  %2008 = vmatpush1.bf16.msra.mxu0 0
  %2009 = vmatprep.subr.bf16.mxu0 0
  %2010 = vmatpush1.bf16.msra.mxu0 0
  %2011 = vmatprep.mubr.bf16.mxu0 0
  %2012 = vmatmul.mubr.bf16.gmra.mrb[0].mxu0 %v1811
  %v2013 = vpop.f32.mrb[0].mxu0
  %v2014 = vadd.f32 %v1778, %v2013
  %v2015 = vpop.f32.mrb[0].mxu0
  %v2016 = vadd.f32 %v1782, %v2015
  %v2017 = vpop.f32.mrb[0].mxu0
  %v2018 = vadd.f32 %v1778, %v2017
  %v2019 = vpop.f32.mrb[0].mxu0
  %v2020 = vadd.f32 %v1782, %v2019
  %2021 = vmatprep.mubr.bf16.mxu0 0
  %2022 = vmatmul.mubr.bf16.gmra.mrb[0].mxu0 %v1812
  %v2023 = vpop.f32.mrb[0].mxu0
  %v2024 = vadd.f32 %v1778, %v2023
  %v2025 = vpop.f32.mrb[0].mxu0
  %v2026 = vadd.f32 %v1782, %v2025
  %v2027 = vpop.f32.mrb[0].mxu0
  %v2028 = vadd.f32 %v1778, %v2027
  %v2029 = vpop.f32.mrb[0].mxu0
  %v2030 = vadd.f32 %v1782, %v2029
  %2031 = vmatprep.mubr.bf16.mxu0 0
  %2032 = vmatmul.mubr.bf16.gmra.mrb[0].mxu0 %v1813
  %v2033 = vpop.f32.mrb[0].mxu0
  %v2034 = vadd.f32 %v1778, %v2033
  %v2035 = vpop.f32.mrb[0].mxu0
  %v2036 = vadd.f32 %v1782, %v2035
  %v2037 = vpop.f32.mrb[0].mxu0
  %v2038 = vadd.f32 %v1778, %v2037
  %v2039 = vpop.f32.mrb[0].mxu0
  %v2040 = vadd.f32 %v1782, %v2039
  %2041 = vmatprep.mubr.bf16.mxu0 0
  %2042 = vmatmul.mubr.bf16.gmra.mrb[0].mxu0 %v1814
  %v2043 = vpop.f32.mrb[0].mxu0
  %v2044 = vadd.f32 %v1778, %v2043
  %v2045 = vpop.f32.mrb[0].mxu0
  %v2046 = vadd.f32 %v1782, %v2045
  %v2047 = vpop.f32.mrb[0].mxu0
  %v2048 = vadd.f32 %v1778, %v2047
  %v2049 = vpop.f32.mrb[0].mxu0
  %v2050 = vadd.f32 %v1782, %v2049
  %2051 = vdwg.mxu0
  %2052 = vmatprep.subr.bf16.mxu0 %v1918
  %2053 = vmatpush1.bf16.msra.mxu0 %v1917
  %2054 = vmatprep.subr.bf16.mxu0 %v1922
  %2055 = vmatpush1.bf16.msra.mxu0 %v1921
  %2056 = vmatprep.subr.bf16.mxu0 %v1926
  %2057 = vmatpush1.bf16.msra.mxu0 %v1925
  %2058 = vmatprep.subr.bf16.mxu0 %v1930
  %2059 = vmatpush1.bf16.msra.mxu0 %v1929
  %2060 = vmatprep.subr.bf16.mxu0 %v1934
  %2061 = vmatpush1.bf16.msra.mxu0 %v1933
  %2062 = vmatprep.subr.bf16.mxu0 %v1938
  %2063 = vmatpush1.bf16.msra.mxu0 %v1937
  %2064 = vmatprep.subr.bf16.mxu0 %v1942
  %2065 = vmatpush1.bf16.msra.mxu0 %v1941
  %2066 = vmatprep.subr.bf16.mxu0 %v1946
  %2067 = vmatpush1.bf16.msra.mxu0 %v1945
  %2068 = vmatprep.subr.bf16.mxu0 0
  %2069 = vmatpush1.bf16.msra.mxu0 0
  %2070 = vmatprep.subr.bf16.mxu0 0
  %2071 = vmatpush1.bf16.msra.mxu0 0
  %2072 = vmatprep.subr.bf16.mxu0 0
  %2073 = vmatpush1.bf16.msra.mxu0 0
  %2074 = vmatprep.subr.bf16.mxu0 0
  %2075 = vmatpush1.bf16.msra.mxu0 0
  %2076 = vmatprep.subr.bf16.mxu0 0
  %2077 = vmatpush1.bf16.msra.mxu0 0
  %2078 = vmatprep.subr.bf16.mxu0 0
  %2079 = vmatpush1.bf16.msra.mxu0 0
  %2080 = vmatprep.subr.bf16.mxu0 0
  %2081 = vmatpush1.bf16.msra.mxu0 0
  %2082 = vmatprep.subr.bf16.mxu0 0
  %2083 = vmatpush1.bf16.msra.mxu0 0
  %2084 = vmatprep.mubr.bf16.mxu0 0
  %2085 = vmatmul.mubr.bf16.gmra.mrb[0].mxu0 %v1811
  %v2086 = vpop.f32.mrb[0].mxu0
  %v2087 = vadd.f32 %v1786, %v2086
  %v2088 = vpop.f32.mrb[0].mxu0
  %v2089 = vadd.f32 %v1790, %v2088
  %v2090 = vpop.f32.mrb[0].mxu0
  %v2091 = vadd.f32 %v1786, %v2090
  %v2092 = vpop.f32.mrb[0].mxu0
  %v2093 = vadd.f32 %v1790, %v2092
  %2094 = vmatprep.mubr.bf16.mxu0 0
  %2095 = vmatmul.mubr.bf16.gmra.mrb[0].mxu0 %v1812
  %v2096 = vpop.f32.mrb[0].mxu0
  %v2097 = vadd.f32 %v1786, %v2096
  %v2098 = vpop.f32.mrb[0].mxu0
  %v2099 = vadd.f32 %v1790, %v2098
  %v2100 = vpop.f32.mrb[0].mxu0
  %v2101 = vadd.f32 %v1786, %v2100
  %v2102 = vpop.f32.mrb[0].mxu0
  %v2103 = vadd.f32 %v1790, %v2102
  %2104 = vmatprep.mubr.bf16.mxu0 0
  %2105 = vmatmul.mubr.bf16.gmra.mrb[0].mxu0 %v1813
  %v2106 = vpop.f32.mrb[0].mxu0
  %v2107 = vadd.f32 %v1786, %v2106
  %v2108 = vpop.f32.mrb[0].mxu0
  %v2109 = vadd.f32 %v1790, %v2108
  %v2110 = vpop.f32.mrb[0].mxu0
  %v2111 = vadd.f32 %v1786, %v2110
  %v2112 = vpop.f32.mrb[0].mxu0
  %v2113 = vadd.f32 %v1790, %v2112
  %2114 = vmatprep.mubr.bf16.mxu0 0
  %2115 = vmatmul.mubr.bf16.gmra.mrb[0].mxu0 %v1814
  %v2116 = vpop.f32.mrb[0].mxu0
  %v2117 = vadd.f32 %v1786, %v2116
  %v2118 = vpop.f32.mrb[0].mxu0
  %v2119 = vadd.f32 %v1790, %v2118
  %v2120 = vpop.f32.mrb[0].mxu0
  %v2121 = vadd.f32 %v1786, %v2120
  %v2122 = vpop.f32.mrb[0].mxu0
  %v2123 = vadd.f32 %v1790, %v2122
  %2124 = vdwg.mxu0
  %v2125 = vpack.c.bf16 %v2014, %v2014
  %v2126 = vpack.c.bf16 %v2016, %v2016
  %v2127 = vpack.c.bf16 %v2087, %v2087
  %v2128 = vpack.c.bf16 %v2089, %v2089
  %v2129 = vpack.c.bf16 %v2018, %v2018
  %v2130 = vpack.c.bf16 %v2020, %v2020
  %v2131 = vpack.c.bf16 %v2091, %v2091
  %v2132 = vpack.c.bf16 %v2093, %v2093
  %v2133 = vpack.c.bf16 %v2024, %v2024
  %v2134 = vpack.c.bf16 %v2026, %v2026
  %v2135 = vpack.c.bf16 %v2097, %v2097
  %v2136 = vpack.c.bf16 %v2099, %v2099
  %v2137 = vpack.c.bf16 %v2028, %v2028
  %v2138 = vpack.c.bf16 %v2030, %v2030
  %v2139 = vpack.c.bf16 %v2101, %v2101
  %v2140 = vpack.c.bf16 %v2103, %v2103
  %v2141 = vpack.c.bf16 %v2034, %v2034
  %v2142 = vpack.c.bf16 %v2036, %v2036
  %v2143 = vpack.c.bf16 %v2107, %v2107
  %v2144 = vpack.c.bf16 %v2109, %v2109
  %v2145 = vpack.c.bf16 %v2038, %v2038
  %v2146 = vpack.c.bf16 %v2040, %v2040
  %v2147 = vpack.c.bf16 %v2111, %v2111
  %v2148 = vpack.c.bf16 %v2113, %v2113
  %v2149 = vpack.c.bf16 %v2044, %v2044
  %v2150 = vpack.c.bf16 %v2046, %v2046
  %v2151 = vpack.c.bf16 %v2117, %v2117
  %v2152 = vpack.c.bf16 %v2119, %v2119
  %v2153 = vpack.c.bf16 %v2048, %v2048
  %v2154 = vpack.c.bf16 %v2050, %v2050
  %v2155 = vpack.c.bf16 %v2121, %v2121
  %v2156 = vpack.c.bf16 %v2123, %v2123
  %v2189 = vunpack.c.l.b16 %v2125
  %v2190 = vunpack.c.l.b16 %v2126
  %v2191 = vunpack.c.l.b16 %v2127
  %v2192 = vunpack.c.l.b16 %v2128
  %v2193 = vunpack.c.l.b16 %v2129
  %v2194 = vunpack.c.l.b16 %v2130
  %v2195 = vunpack.c.l.b16 %v2131
  %v2196 = vunpack.c.l.b16 %v2132
  %v2197 = vunpack.c.l.b16 %v2133
  %v2198 = vunpack.c.l.b16 %v2134
  %v2199 = vunpack.c.l.b16 %v2135
  %v2200 = vunpack.c.l.b16 %v2136
  %v2201 = vunpack.c.l.b16 %v2137
  %v2202 = vunpack.c.l.b16 %v2138
  %v2203 = vunpack.c.l.b16 %v2139
  %v2204 = vunpack.c.l.b16 %v2140
  %v2205 = vunpack.c.l.b16 %v2141
  %v2206 = vunpack.c.l.b16 %v2142
  %v2207 = vunpack.c.l.b16 %v2143
  %v2208 = vunpack.c.l.b16 %v2144
  %v2209 = vunpack.c.l.b16 %v2145
  %v2210 = vunpack.c.l.b16 %v2146
  %v2211 = vunpack.c.l.b16 %v2147
  %v2212 = vunpack.c.l.b16 %v2148
  %v2213 = vunpack.c.l.b16 %v2149
  %v2214 = vunpack.c.l.b16 %v2150
  %v2215 = vunpack.c.l.b16 %v2151
  %v2216 = vunpack.c.l.b16 %v2152
  %v2217 = vunpack.c.l.b16 %v2153
  %v2218 = vunpack.c.l.b16 %v2154
  %v2219 = vunpack.c.l.b16 %v2155
  %v2220 = vunpack.c.l.b16 %v2156
  %v2221 = vpack.c.b16 %v2190, %v2189
  %v2222 = vpack.c.b16 %v2192, %v2191
  %v2223 = vpack.c.b16 %v2194, %v2193
  %v2224 = vpack.c.b16 %v2196, %v2195
  %v2225 = vpack.c.b16 %v2198, %v2197
  %v2226 = vpack.c.b16 %v2200, %v2199
  %v2227 = vpack.c.b16 %v2202, %v2201
  %v2228 = vpack.c.b16 %v2204, %v2203
  %v2229 = vpack.c.b16 %v2206, %v2205
  %v2230 = vpack.c.b16 %v2208, %v2207
  %v2231 = vpack.c.b16 %v2210, %v2209
  %v2232 = vpack.c.b16 %v2212, %v2211
  %v2233 = vpack.c.b16 %v2214, %v2213
  %v2234 = vpack.c.b16 %v2216, %v2215
  %v2235 = vpack.c.b16 %v2218, %v2217
  %v2236 = vpack.c.b16 %v2220, %v2219
  %2253 = vst [vmem:[#allocation3] sm:$0xff] %v2221
  %2254 = vst [vmem:[#allocation3 + $0x8] sm:$0xff] %v2222
  %2255 = vst [vmem:[#allocation3 + $0x10] sm:$0xff] %v2223
  %2256 = vst [vmem:[#allocation3 + $0x18] sm:$0xff] %v2224
  %2257 = vst [vmem:[#allocation3 + $0x20] sm:$0xff] %v2225
  %2258 = vst [vmem:[#allocation3 + $0x28] sm:$0xff] %v2226
  %2259 = vst [vmem:[#allocation3 + $0x30] sm:$0xff] %v2227
  %2260 = vst [vmem:[#allocation3 + $0x38] sm:$0xff] %v2228
  %2261 = vst [vmem:[#allocation3 + $0x40] sm:$0xff] %v2229
  %2262 = vst [vmem:[#allocation3 + $0x48] sm:$0xff] %v2230
  %2263 = vst [vmem:[#allocation3 + $0x50] sm:$0xff] %v2231
  %2264 = vst [vmem:[#allocation3 + $0x58] sm:$0xff] %v2232
  %2265 = vst [vmem:[#allocation3 + $0x60] sm:$0xff] %v2233
  %2266 = vst [vmem:[#allocation3 + $0x68] sm:$0xff] %v2234
  %2267 = vst [vmem:[#allocation3 + $0x70] sm:$0xff] %v2235
  %2268 = vst [vmem:[#allocation3 + $0x78] sm:$0xff] %v2236
  %v2269 = vld [vmem:[%s5] sm:$0xff]
  %v2270 = vld [vmem:[%s5 + $0x8] sm:$0xff]
  %v2271 = vld [vmem:[%s5 + $0x10] sm:$0xff]
  %v2272 = vld [vmem:[%s5 + $0x18] sm:$0xff]
  %v2273 = vld [vmem:[%s5 + $0x20] sm:$0xff]
  %v2274 = vld [vmem:[%s5 + $0x28] sm:$0xff]
  %v2275 = vld [vmem:[%s5 + $0x30] sm:$0xff]
  %v2276 = vld [vmem:[%s5 + $0x38] sm:$0xff]
  %v2277 = vld [vmem:[%s5 + $0x40] sm:$0xff]
  %v2278 = vld [vmem:[%s5 + $0x48] sm:$0xff]
  %v2279 = vld [vmem:[%s5 + $0x50] sm:$0xff]
  %v2280 = vld [vmem:[%s5 + $0x58] sm:$0xff]
  %v2281 = vld [vmem:[%s5 + $0x60] sm:$0xff]
  %v2282 = vld [vmem:[%s5 + $0x68] sm:$0xff]
  %v2283 = vld [vmem:[%s5 + $0x70] sm:$0xff]
  %v2284 = vld [vmem:[%s5 + $0x78] sm:$0xff]
  %v2285 = vld [vmem:[%s5 + $0x80] sm:$0xff]
  %v2286 = vld [vmem:[%s5 + $0x88] sm:$0xff]
  %v2287 = vld [vmem:[%s5 + $0x90] sm:$0xff]
  %v2288 = vld [vmem:[%s5 + $0x98] sm:$0xff]
  %v2289 = vld [vmem:[%s5 + $0xa0] sm:$0xff]
  %v2290 = vld [vmem:[%s5 + $0xa8] sm:$0xff]
  %v2291 = vld [vmem:[%s5 + $0xb0] sm:$0xff]
  %v2292 = vld [vmem:[%s5 + $0xb8] sm:$0xff]
  %v2293 = vld [vmem:[%s5 + $0xc0] sm:$0xff]
  %v2294 = vld [vmem:[%s5 + $0xc8] sm:$0xff]
  %v2295 = vld [vmem:[%s5 + $0xd0] sm:$0xff]
  %v2296 = vld [vmem:[%s5 + $0xd8] sm:$0xff]
  %v2297 = vld [vmem:[%s5 + $0xe0] sm:$0xff]
  %v2298 = vld [vmem:[%s5 + $0xe8] sm:$0xff]
  %v2299 = vld [vmem:[%s5 + $0xf0] sm:$0xff]
  %v2300 = vld [vmem:[%s5 + $0xf8] sm:$0xff]
  %s2301 = scalar_lea.vmem %s9, 8
  %v2302 = vld [vmem:[%s2301] sm:$0xff]
  %s2303 = scalar_lea.vmem %s10, 8
  %v2304 = vld [vmem:[%s2303] sm:$0xff]
  %v2305 = vld [vmem:[#allocation3] sm:$0xff]
  %v2306 = vld [vmem:[#allocation3 + $0x8] sm:$0xff]
  %v2307 = vunpack.c.l.bf16 %v2305
  %v2308 = vunpack.c.h.bf16 %v2305
  %v2309 = vunpack.c.l.bf16 %v2306
  %v2310 = vunpack.c.h.bf16 %v2306
  %v2311 = vpack.c.bf16 %v2302, %v2302
  %v2344 = vunpack.c.l.b16 %v2269
  %v2345 = vunpack.c.h.b16 %v2269
  %v2346 = vunpack.c.l.b16 %v2270
  %v2347 = vunpack.c.h.b16 %v2270
  %v2348 = vunpack.c.l.b16 %v2271
  %v2349 = vunpack.c.h.b16 %v2271
  %v2350 = vunpack.c.l.b16 %v2272
  %v2351 = vunpack.c.h.b16 %v2272
  %v2352 = vunpack.c.l.b16 %v2273
  %v2353 = vunpack.c.h.b16 %v2273
  %v2354 = vunpack.c.l.b16 %v2274
  %v2355 = vunpack.c.h.b16 %v2274
  %v2356 = vunpack.c.l.b16 %v2275
  %v2357 = vunpack.c.h.b16 %v2275
  %v2358 = vunpack.c.l.b16 %v2276
  %v2359 = vunpack.c.h.b16 %v2276
  %v2360 = vunpack.c.l.b16 %v2277
  %v2361 = vunpack.c.h.b16 %v2277
  %v2362 = vunpack.c.l.b16 %v2278
  %v2363 = vunpack.c.h.b16 %v2278
  %v2364 = vunpack.c.l.b16 %v2279
  %v2365 = vunpack.c.h.b16 %v2279
  %v2366 = vunpack.c.l.b16 %v2280
  %v2367 = vunpack.c.h.b16 %v2280
  %v2368 = vunpack.c.l.b16 %v2281
  %v2369 = vunpack.c.h.b16 %v2281
  %v2370 = vunpack.c.l.b16 %v2282
  %v2371 = vunpack.c.h.b16 %v2282
  %v2372 = vunpack.c.l.b16 %v2283
  %v2373 = vunpack.c.h.b16 %v2283
  %v2374 = vunpack.c.l.b16 %v2284
  %v2375 = vunpack.c.h.b16 %v2284
  %v2376 = vunpack.c.l.b16 %v2285
  %v2377 = vunpack.c.h.b16 %v2285
  %v2378 = vunpack.c.l.b16 %v2286
  %v2379 = vunpack.c.h.b16 %v2286
  %v2380 = vunpack.c.l.b16 %v2287
  %v2381 = vunpack.c.h.b16 %v2287
  %v2382 = vunpack.c.l.b16 %v2288
  %v2383 = vunpack.c.h.b16 %v2288
  %v2384 = vunpack.c.l.b16 %v2289
  %v2385 = vunpack.c.h.b16 %v2289
  %v2386 = vunpack.c.l.b16 %v2290
  %v2387 = vunpack.c.h.b16 %v2290
  %v2388 = vunpack.c.l.b16 %v2291
  %v2389 = vunpack.c.h.b16 %v2291
  %v2390 = vunpack.c.l.b16 %v2292
  %v2391 = vunpack.c.h.b16 %v2292
  %v2392 = vunpack.c.l.b16 %v2293
  %v2393 = vunpack.c.h.b16 %v2293
  %v2394 = vunpack.c.l.b16 %v2294
  %v2395 = vunpack.c.h.b16 %v2294
  %v2396 = vunpack.c.l.b16 %v2295
  %v2397 = vunpack.c.h.b16 %v2295
  %v2398 = vunpack.c.l.b16 %v2296
  %v2399 = vunpack.c.h.b16 %v2296
  %v2400 = vunpack.c.l.b16 %v2297
  %v2401 = vunpack.c.h.b16 %v2297
  %v2402 = vunpack.c.l.b16 %v2298
  %v2403 = vunpack.c.h.b16 %v2298
  %v2404 = vunpack.c.l.b16 %v2299
  %v2405 = vunpack.c.h.b16 %v2299
  %v2406 = vunpack.c.l.b16 %v2300
  %v2407 = vunpack.c.h.b16 %v2300
  %v2408 = vpack.c.b16 %v2348, %v2344
  %v2409 = vpack.c.b16 %v2349, %v2345
  %v2410 = vpack.c.b16 %v2350, %v2346
  %v2411 = vpack.c.b16 %v2351, %v2347
  %v2412 = vpack.c.b16 %v2356, %v2352
  %v2413 = vpack.c.b16 %v2357, %v2353
  %v2414 = vpack.c.b16 %v2358, %v2354
  %v2415 = vpack.c.b16 %v2359, %v2355
  %v2416 = vpack.c.b16 %v2364, %v2360
  %v2417 = vpack.c.b16 %v2365, %v2361
  %v2418 = vpack.c.b16 %v2366, %v2362
  %v2419 = vpack.c.b16 %v2367, %v2363
  %v2420 = vpack.c.b16 %v2372, %v2368
  %v2421 = vpack.c.b16 %v2373, %v2369
  %v2422 = vpack.c.b16 %v2374, %v2370
  %v2423 = vpack.c.b16 %v2375, %v2371
  %v2424 = vpack.c.b16 %v2380, %v2376
  %v2425 = vpack.c.b16 %v2381, %v2377
  %v2426 = vpack.c.b16 %v2382, %v2378
  %v2427 = vpack.c.b16 %v2383, %v2379
  %v2428 = vpack.c.b16 %v2388, %v2384
  %v2429 = vpack.c.b16 %v2389, %v2385
  %v2430 = vpack.c.b16 %v2390, %v2386
  %v2431 = vpack.c.b16 %v2391, %v2387
  %v2432 = vpack.c.b16 %v2396, %v2392
  %v2433 = vpack.c.b16 %v2397, %v2393
  %v2434 = vpack.c.b16 %v2398, %v2394
  %v2435 = vpack.c.b16 %v2399, %v2395
  %v2436 = vpack.c.b16 %v2404, %v2400
  %v2437 = vpack.c.b16 %v2405, %v2401
  %v2438 = vpack.c.b16 %v2406, %v2402
  %v2439 = vpack.c.b16 %v2407, %v2403
  %2472 = vmatprep.subr.bf16.mxu0 %v2409
  %2473 = vmatpush1.bf16.msra.mxu0 %v2408
  %2474 = vmatprep.subr.bf16.mxu0 %v2413
  %2475 = vmatpush1.bf16.msra.mxu0 %v2412
  %2476 = vmatprep.subr.bf16.mxu0 %v2417
  %2477 = vmatpush1.bf16.msra.mxu0 %v2416
  %2478 = vmatprep.subr.bf16.mxu0 %v2421
  %2479 = vmatpush1.bf16.msra.mxu0 %v2420
  %2480 = vmatprep.subr.bf16.mxu0 %v2425
  %2481 = vmatpush1.bf16.msra.mxu0 %v2424
  %2482 = vmatprep.subr.bf16.mxu0 %v2429
  %2483 = vmatpush1.bf16.msra.mxu0 %v2428
  %2484 = vmatprep.subr.bf16.mxu0 %v2433
  %2485 = vmatpush1.bf16.msra.mxu0 %v2432
  %2486 = vmatprep.subr.bf16.mxu0 %v2437
  %2487 = vmatpush1.bf16.msra.mxu0 %v2436
  %2488 = vmatprep.subr.bf16.mxu0 0
  %2489 = vmatpush1.bf16.msra.mxu0 0
  %2490 = vmatprep.subr.bf16.mxu0 0
  %2491 = vmatpush1.bf16.msra.mxu0 0
  %2492 = vmatprep.subr.bf16.mxu0 0
  %2493 = vmatpush1.bf16.msra.mxu0 0
  %2494 = vmatprep.subr.bf16.mxu0 0
  %2495 = vmatpush1.bf16.msra.mxu0 0
  %2496 = vmatprep.subr.bf16.mxu0 0
  %2497 = vmatpush1.bf16.msra.mxu0 0
  %2498 = vmatprep.subr.bf16.mxu0 0
  %2499 = vmatpush1.bf16.msra.mxu0 0
  %2500 = vmatprep.subr.bf16.mxu0 0
  %2501 = vmatpush1.bf16.msra.mxu0 0
  %2502 = vmatprep.subr.bf16.mxu0 0
  %2503 = vmatpush1.bf16.msra.mxu0 0
  %2504 = vmatprep.mubr.bf16.mxu0 0
  %2505 = vmatmul.mubr.bf16.gmra.mrb[0].mxu0 %v2311
  %v2506 = vpop.f32.mrb[0].mxu0
  %v2507 = vadd.f32 0.0, %v2506
  %v2508 = vpop.f32.mrb[0].mxu0
  %v2509 = vadd.f32 0.0, %v2508
  %v2510 = vpop.f32.mrb[0].mxu0
  %v2511 = vpop.f32.mrb[0].mxu0
  %2512 = vdwg.mxu0
  %2513 = vmatprep.subr.bf16.mxu0 %v2411
  %2514 = vmatpush1.bf16.msra.mxu0 %v2410
  %2515 = vmatprep.subr.bf16.mxu0 %v2415
  %2516 = vmatpush1.bf16.msra.mxu0 %v2414
  %2517 = vmatprep.subr.bf16.mxu0 %v2419
  %2518 = vmatpush1.bf16.msra.mxu0 %v2418
  %2519 = vmatprep.subr.bf16.mxu0 %v2423
  %2520 = vmatpush1.bf16.msra.mxu0 %v2422
  %2521 = vmatprep.subr.bf16.mxu0 %v2427
  %2522 = vmatpush1.bf16.msra.mxu0 %v2426
  %2523 = vmatprep.subr.bf16.mxu0 %v2431
  %2524 = vmatpush1.bf16.msra.mxu0 %v2430
  %2525 = vmatprep.subr.bf16.mxu0 %v2435
  %2526 = vmatpush1.bf16.msra.mxu0 %v2434
  %2527 = vmatprep.subr.bf16.mxu0 %v2439
  %2528 = vmatpush1.bf16.msra.mxu0 %v2438
  %2529 = vmatprep.subr.bf16.mxu0 0
  %2530 = vmatpush1.bf16.msra.mxu0 0
  %2531 = vmatprep.subr.bf16.mxu0 0
  %2532 = vmatpush1.bf16.msra.mxu0 0
  %2533 = vmatprep.subr.bf16.mxu0 0
  %2534 = vmatpush1.bf16.msra.mxu0 0
  %2535 = vmatprep.subr.bf16.mxu0 0
  %2536 = vmatpush1.bf16.msra.mxu0 0
  %2537 = vmatprep.subr.bf16.mxu0 0
  %2538 = vmatpush1.bf16.msra.mxu0 0
  %2539 = vmatprep.subr.bf16.mxu0 0
  %2540 = vmatpush1.bf16.msra.mxu0 0
  %2541 = vmatprep.subr.bf16.mxu0 0
  %2542 = vmatpush1.bf16.msra.mxu0 0
  %2543 = vmatprep.subr.bf16.mxu0 0
  %2544 = vmatpush1.bf16.msra.mxu0 0
  %2545 = vmatprep.mubr.bf16.mxu0 0
  %2546 = vmatmul.mubr.bf16.gmra.mrb[0].mxu0 %v2311
  %v2547 = vpop.f32.mrb[0].mxu0
  %v2548 = vadd.f32 0.0, %v2547
  %v2549 = vpop.f32.mrb[0].mxu0
  %v2550 = vadd.f32 0.0, %v2549
  %v2551 = vpop.f32.mrb[0].mxu0
  %v2552 = vpop.f32.mrb[0].mxu0
  %2553 = vdwg.mxu0
  %v2554 = vadd.f32 %v2307, %v2507
  %v2555 = vadd.f32 %v2308, %v2509
  %v2556 = vadd.f32 %v2309, %v2548
  %v2557 = vadd.f32 %v2310, %v2550
  %v2558 = vxor.u32 %v2554, 2147483648
  %v2559 = vxor.u32 %v2555, 2147483648
  %v2560 = vxor.u32 %v2556, 2147483648
  %v2561 = vmul.f32 %v2558, 1.442695
  %v2562 = vpow.pop %v2561
  %v2563 = vmul.f32 %v2559, 1.442695
  %v2564 = vpow.pop %v2563
  %v2565 = vmul.f32 %v2560, 1.442695
  %v2566 = vpow.pop %v2565
  %v2567 = vadd.f32 %v2562, 1.0
  %v2568 = vadd.f32 %v2564, 1.0
  %v2569 = vadd.f32 %v2566, 1.0
  %v2570 = vrcp.pop %v2567
  %v2571 = vmul.f32 1.0, %v2570
  %v2572 = vrcp.pop %v2568
  %v2573 = vmul.f32 1.0, %v2572
  %v2574 = vrcp.pop %v2569
  %v2575 = vmul.f32 1.0, %v2574
  %v2576 = vtanh.pop %v2557
  %v2577 = vmul.f32 %v2573, %v2304
  %v2578 = vmul.f32 %v2571, %v2576
  %v2579 = vadd.f32 %v2577, %v2578
  %v2580 = vtanh.pop %v2579
  %v2581 = vmul.f32 %v2575, %v2580
  %v2582 = vpack.c.bf16 %v2581, %v2581
  %2583 = vst [vmem:[#allocation2] sm:$0xf] %v2582
  %v2584 = vld [vmem:[%s891] sm:$0xff]
  %v2585 = vld [vmem:[%s891 + $0x8] sm:$0xff]
  %v2586 = vunpack.c.l.bf16 %v2584
  %v2587 = vunpack.c.h.bf16 %v2584
  %v2588 = vunpack.c.l.bf16 %v2585
  %v2589 = vunpack.c.h.bf16 %v2585
  %2590 = vmatprep.subr.bf16.mxu0 %v2409
  %2591 = vmatpush1.bf16.msra.mxu0 %v2408
  %2592 = vmatprep.subr.bf16.mxu0 %v2413
  %2593 = vmatpush1.bf16.msra.mxu0 %v2412
  %2594 = vmatprep.subr.bf16.mxu0 %v2417
  %2595 = vmatpush1.bf16.msra.mxu0 %v2416
  %2596 = vmatprep.subr.bf16.mxu0 %v2421
  %2597 = vmatpush1.bf16.msra.mxu0 %v2420
  %2598 = vmatprep.subr.bf16.mxu0 %v2425
  %2599 = vmatpush1.bf16.msra.mxu0 %v2424
  %2600 = vmatprep.subr.bf16.mxu0 %v2429
  %2601 = vmatpush1.bf16.msra.mxu0 %v2428
  %2602 = vmatprep.subr.bf16.mxu0 %v2433
  %2603 = vmatpush1.bf16.msra.mxu0 %v2432
  %2604 = vmatprep.subr.bf16.mxu0 %v2437
  %2605 = vmatpush1.bf16.msra.mxu0 %v2436
  %2606 = vmatprep.subr.bf16.mxu0 0
  %2607 = vmatpush1.bf16.msra.mxu0 0
  %2608 = vmatprep.subr.bf16.mxu0 0
  %2609 = vmatpush1.bf16.msra.mxu0 0
  %2610 = vmatprep.subr.bf16.mxu0 0
  %2611 = vmatpush1.bf16.msra.mxu0 0
  %2612 = vmatprep.subr.bf16.mxu0 0
  %2613 = vmatpush1.bf16.msra.mxu0 0
  %2614 = vmatprep.subr.bf16.mxu0 0
  %2615 = vmatpush1.bf16.msra.mxu0 0
  %2616 = vmatprep.subr.bf16.mxu0 0
  %2617 = vmatpush1.bf16.msra.mxu0 0
  %2618 = vmatprep.subr.bf16.mxu0 0
  %2619 = vmatpush1.bf16.msra.mxu0 0
  %2620 = vmatprep.subr.bf16.mxu0 0
  %2621 = vmatpush1.bf16.msra.mxu0 0
  %2622 = vmatprep.mubr.bf16.mxu0 0
  %2623 = vmatmul.mubr.bf16.gmra.mrb[0].mxu0 %v2582
  %v2624 = vpop.f32.mrb[0].mxu0
  %v2625 = vadd.f32 0.0, %v2624
  %v2626 = vpop.f32.mrb[0].mxu0
  %v2627 = vadd.f32 0.0, %v2626
  %v2628 = vpop.f32.mrb[0].mxu0
  %v2629 = vpop.f32.mrb[0].mxu0
  %2630 = vdwg.mxu0
  %2631 = vmatprep.subr.bf16.mxu0 %v2411
  %2632 = vmatpush1.bf16.msra.mxu0 %v2410
  %2633 = vmatprep.subr.bf16.mxu0 %v2415
  %2634 = vmatpush1.bf16.msra.mxu0 %v2414
  %2635 = vmatprep.subr.bf16.mxu0 %v2419
  %2636 = vmatpush1.bf16.msra.mxu0 %v2418
  %2637 = vmatprep.subr.bf16.mxu0 %v2423
  %2638 = vmatpush1.bf16.msra.mxu0 %v2422
  %2639 = vmatprep.subr.bf16.mxu0 %v2427
  %2640 = vmatpush1.bf16.msra.mxu0 %v2426
  %2641 = vmatprep.subr.bf16.mxu0 %v2431
  %2642 = vmatpush1.bf16.msra.mxu0 %v2430
  %2643 = vmatprep.subr.bf16.mxu0 %v2435
  %2644 = vmatpush1.bf16.msra.mxu0 %v2434
  %2645 = vmatprep.subr.bf16.mxu0 %v2439
  %2646 = vmatpush1.bf16.msra.mxu0 %v2438
  %2647 = vmatprep.subr.bf16.mxu0 0
  %2648 = vmatpush1.bf16.msra.mxu0 0
  %2649 = vmatprep.subr.bf16.mxu0 0
  %2650 = vmatpush1.bf16.msra.mxu0 0
  %2651 = vmatprep.subr.bf16.mxu0 0
  %2652 = vmatpush1.bf16.msra.mxu0 0
  %2653 = vmatprep.subr.bf16.mxu0 0
  %2654 = vmatpush1.bf16.msra.mxu0 0
  %2655 = vmatprep.subr.bf16.mxu0 0
  %2656 = vmatpush1.bf16.msra.mxu0 0
  %2657 = vmatprep.subr.bf16.mxu0 0
  %2658 = vmatpush1.bf16.msra.mxu0 0
  %2659 = vmatprep.subr.bf16.mxu0 0
  %2660 = vmatpush1.bf16.msra.mxu0 0
  %2661 = vmatprep.subr.bf16.mxu0 0
  %2662 = vmatpush1.bf16.msra.mxu0 0
  %2663 = vmatprep.mubr.bf16.mxu0 0
  %2664 = vmatmul.mubr.bf16.gmra.mrb[0].mxu0 %v2582
  %v2665 = vpop.f32.mrb[0].mxu0
  %v2666 = vadd.f32 0.0, %v2665
  %v2667 = vpop.f32.mrb[0].mxu0
  %v2668 = vadd.f32 0.0, %v2667
  %v2669 = vpop.f32.mrb[0].mxu0
  %v2670 = vpop.f32.mrb[0].mxu0
  %2671 = vdwg.mxu0
  %v2672 = vadd.f32 %v2586, %v2625
  %v2673 = vadd.f32 %v2587, %v2627
  %v2674 = vadd.f32 %v2588, %v2666
  %v2675 = vadd.f32 %v2589, %v2668
  %v2676 = vxor.u32 %v2672, 2147483648
  %v2677 = vxor.u32 %v2673, 2147483648
  %v2678 = vxor.u32 %v2674, 2147483648
  %v2679 = vmul.f32 %v2676, 1.442695
  %v2680 = vpow.pop %v2679
  %v2681 = vmul.f32 %v2677, 1.442695
  %v2682 = vpow.pop %v2681
  %v2683 = vmul.f32 %v2678, 1.442695
  %v2684 = vpow.pop %v2683
  %v2685 = vadd.f32 %v2680, 1.0
  %v2686 = vadd.f32 %v2682, 1.0
  %v2687 = vadd.f32 %v2684, 1.0
  %v2688 = vrcp.pop %v2685
  %v2689 = vmul.f32 1.0, %v2688
  %v2690 = vrcp.pop %v2686
  %v2691 = vmul.f32 1.0, %v2690
  %v2692 = vrcp.pop %v2687
  %v2693 = vmul.f32 1.0, %v2692
  %v2694 = vtanh.pop %v2675
  %v2695 = vmul.f32 %v2691, %v2579
  %v2696 = vmul.f32 %v2689, %v2694
  %v2697 = vadd.f32 %v2695, %v2696
  %v2698 = vtanh.pop %v2697
  %v2699 = vmul.f32 %v2693, %v2698
  %v2700 = vpack.c.bf16 %v2699, %v2699
  %2701 = vst [vmem:[%s1009] sm:$0xf] %v2700
  %v2702 = vld [vmem:[%s1011] sm:$0xff]
  %v2703 = vld [vmem:[%s1011 + $0x8] sm:$0xff]
  %v2704 = vunpack.c.l.bf16 %v2702
  %v2705 = vunpack.c.h.bf16 %v2702
  %v2706 = vunpack.c.l.bf16 %v2703
  %v2707 = vunpack.c.h.bf16 %v2703
  %2708 = vmatprep.subr.bf16.mxu0 %v2409
  %2709 = vmatpush1.bf16.msra.mxu0 %v2408
  %2710 = vmatprep.subr.bf16.mxu0 %v2413
  %2711 = vmatpush1.bf16.msra.mxu0 %v2412
  %2712 = vmatprep.subr.bf16.mxu0 %v2417
  %2713 = vmatpush1.bf16.msra.mxu0 %v2416
  %2714 = vmatprep.subr.bf16.mxu0 %v2421
  %2715 = vmatpush1.bf16.msra.mxu0 %v2420
  %2716 = vmatprep.subr.bf16.mxu0 %v2425
  %2717 = vmatpush1.bf16.msra.mxu0 %v2424
  %2718 = vmatprep.subr.bf16.mxu0 %v2429
  %2719 = vmatpush1.bf16.msra.mxu0 %v2428
  %2720 = vmatprep.subr.bf16.mxu0 %v2433
  %2721 = vmatpush1.bf16.msra.mxu0 %v2432
  %2722 = vmatprep.subr.bf16.mxu0 %v2437
  %2723 = vmatpush1.bf16.msra.mxu0 %v2436
  %2724 = vmatprep.subr.bf16.mxu0 0
  %2725 = vmatpush1.bf16.msra.mxu0 0
  %2726 = vmatprep.subr.bf16.mxu0 0
  %2727 = vmatpush1.bf16.msra.mxu0 0
  %2728 = vmatprep.subr.bf16.mxu0 0
  %2729 = vmatpush1.bf16.msra.mxu0 0
  %2730 = vmatprep.subr.bf16.mxu0 0
  %2731 = vmatpush1.bf16.msra.mxu0 0
  %2732 = vmatprep.subr.bf16.mxu0 0
  %2733 = vmatpush1.bf16.msra.mxu0 0
  %2734 = vmatprep.subr.bf16.mxu0 0
  %2735 = vmatpush1.bf16.msra.mxu0 0
  %2736 = vmatprep.subr.bf16.mxu0 0
  %2737 = vmatpush1.bf16.msra.mxu0 0
  %2738 = vmatprep.subr.bf16.mxu0 0
  %2739 = vmatpush1.bf16.msra.mxu0 0
  %2740 = vmatprep.mubr.bf16.mxu0 0
  %2741 = vmatmul.mubr.bf16.gmra.mrb[0].mxu0 %v2700
  %v2742 = vpop.f32.mrb[0].mxu0
  %v2743 = vadd.f32 0.0, %v2742
  %v2744 = vpop.f32.mrb[0].mxu0
  %v2745 = vadd.f32 0.0, %v2744
  %v2746 = vpop.f32.mrb[0].mxu0
  %v2747 = vpop.f32.mrb[0].mxu0
  %2748 = vdwg.mxu0
  %2749 = vmatprep.subr.bf16.mxu0 %v2411
  %2750 = vmatpush1.bf16.msra.mxu0 %v2410
  %2751 = vmatprep.subr.bf16.mxu0 %v2415
  %2752 = vmatpush1.bf16.msra.mxu0 %v2414
  %2753 = vmatprep.subr.bf16.mxu0 %v2419
  %2754 = vmatpush1.bf16.msra.mxu0 %v2418
  %2755 = vmatprep.subr.bf16.mxu0 %v2423
  %2756 = vmatpush1.bf16.msra.mxu0 %v2422
  %2757 = vmatprep.subr.bf16.mxu0 %v2427
  %2758 = vmatpush1.bf16.msra.mxu0 %v2426
  %2759 = vmatprep.subr.bf16.mxu0 %v2431
  %2760 = vmatpush1.bf16.msra.mxu0 %v2430
  %2761 = vmatprep.subr.bf16.mxu0 %v2435
  %2762 = vmatpush1.bf16.msra.mxu0 %v2434
  %2763 = vmatprep.subr.bf16.mxu0 %v2439
  %2764 = vmatpush1.bf16.msra.mxu0 %v2438
  %2765 = vmatprep.subr.bf16.mxu0 0
  %2766 = vmatpush1.bf16.msra.mxu0 0
  %2767 = vmatprep.subr.bf16.mxu0 0
  %2768 = vmatpush1.bf16.msra.mxu0 0
  %2769 = vmatprep.subr.bf16.mxu0 0
  %2770 = vmatpush1.bf16.msra.mxu0 0
  %2771 = vmatprep.subr.bf16.mxu0 0
  %2772 = vmatpush1.bf16.msra.mxu0 0
  %2773 = vmatprep.subr.bf16.mxu0 0
  %2774 = vmatpush1.bf16.msra.mxu0 0
  %2775 = vmatprep.subr.bf16.mxu0 0
  %2776 = vmatpush1.bf16.msra.mxu0 0
  %2777 = vmatprep.subr.bf16.mxu0 0
  %2778 = vmatpush1.bf16.msra.mxu0 0
  %2779 = vmatprep.subr.bf16.mxu0 0
  %2780 = vmatpush1.bf16.msra.mxu0 0
  %2781 = vmatprep.mubr.bf16.mxu0 0
  %2782 = vmatmul.mubr.bf16.gmra.mrb[0].mxu0 %v2700
  %v2783 = vpop.f32.mrb[0].mxu0
  %v2784 = vadd.f32 0.0, %v2783
  %v2785 = vpop.f32.mrb[0].mxu0
  %v2786 = vadd.f32 0.0, %v2785
  %v2787 = vpop.f32.mrb[0].mxu0
  %v2788 = vpop.f32.mrb[0].mxu0
  %2789 = vdwg.mxu0
  %v2790 = vadd.f32 %v2704, %v2743
  %v2791 = vadd.f32 %v2705, %v2745
  %v2792 = vadd.f32 %v2706, %v2784
  %v2793 = vadd.f32 %v2707, %v2786
  %v2794 = vxor.u32 %v2790, 2147483648
  %v2795 = vxor.u32 %v2791, 2147483648
  %v2796 = vxor.u32 %v2792, 2147483648
  %v2797 = vmul.f32 %v2794, 1.442695
  %v2798 = vpow.pop %v2797
  %v2799 = vmul.f32 %v2795, 1.442695
  %v2800 = vpow.pop %v2799
  %v2801 = vmul.f32 %v2796, 1.442695
  %v2802 = vpow.pop %v2801
  %v2803 = vadd.f32 %v2798, 1.0
  %v2804 = vadd.f32 %v2800, 1.0
  %v2805 = vadd.f32 %v2802, 1.0
  %v2806 = vrcp.pop %v2803
  %v2807 = vmul.f32 1.0, %v2806
  %v2808 = vrcp.pop %v2804
  %v2809 = vmul.f32 1.0, %v2808
  %v2810 = vrcp.pop %v2805
  %v2811 = vmul.f32 1.0, %v2810
  %v2812 = vtanh.pop %v2793
  %v2813 = vmul.f32 %v2809, %v2697
  %v2814 = vmul.f32 %v2807, %v2812
  %v2815 = vadd.f32 %v2813, %v2814
  %v2816 = vtanh.pop %v2815
  %v2817 = vmul.f32 %v2811, %v2816
  %v2818 = vpack.c.bf16 %v2817, %v2817
  %2819 = vst [vmem:[%s1129] sm:$0xf] %v2818
  %v2820 = vld [vmem:[%s1131] sm:$0xff]
  %v2821 = vld [vmem:[%s1131 + $0x8] sm:$0xff]
  %v2822 = vunpack.c.l.bf16 %v2820
  %v2823 = vunpack.c.h.bf16 %v2820
  %v2824 = vunpack.c.l.bf16 %v2821
  %v2825 = vunpack.c.h.bf16 %v2821
  %2826 = vmatprep.subr.bf16.mxu0 %v2409
  %2827 = vmatpush1.bf16.msra.mxu0 %v2408
  %2828 = vmatprep.subr.bf16.mxu0 %v2413
  %2829 = vmatpush1.bf16.msra.mxu0 %v2412
  %2830 = vmatprep.subr.bf16.mxu0 %v2417
  %2831 = vmatpush1.bf16.msra.mxu0 %v2416
  %2832 = vmatprep.subr.bf16.mxu0 %v2421
  %2833 = vmatpush1.bf16.msra.mxu0 %v2420
  %2834 = vmatprep.subr.bf16.mxu0 %v2425
  %2835 = vmatpush1.bf16.msra.mxu0 %v2424
  %2836 = vmatprep.subr.bf16.mxu0 %v2429
  %2837 = vmatpush1.bf16.msra.mxu0 %v2428
  %2838 = vmatprep.subr.bf16.mxu0 %v2433
  %2839 = vmatpush1.bf16.msra.mxu0 %v2432
  %2840 = vmatprep.subr.bf16.mxu0 %v2437
  %2841 = vmatpush1.bf16.msra.mxu0 %v2436
  %2842 = vmatprep.subr.bf16.mxu0 0
  %2843 = vmatpush1.bf16.msra.mxu0 0
  %2844 = vmatprep.subr.bf16.mxu0 0
  %2845 = vmatpush1.bf16.msra.mxu0 0
  %2846 = vmatprep.subr.bf16.mxu0 0
  %2847 = vmatpush1.bf16.msra.mxu0 0
  %2848 = vmatprep.subr.bf16.mxu0 0
  %2849 = vmatpush1.bf16.msra.mxu0 0
  %2850 = vmatprep.subr.bf16.mxu0 0
  %2851 = vmatpush1.bf16.msra.mxu0 0
  %2852 = vmatprep.subr.bf16.mxu0 0
  %2853 = vmatpush1.bf16.msra.mxu0 0
  %2854 = vmatprep.subr.bf16.mxu0 0
  %2855 = vmatpush1.bf16.msra.mxu0 0
  %2856 = vmatprep.subr.bf16.mxu0 0
  %2857 = vmatpush1.bf16.msra.mxu0 0
  %2858 = vmatprep.mubr.bf16.mxu0 0
  %2859 = vmatmul.mubr.bf16.gmra.mrb[0].mxu0 %v2818
  %v2860 = vpop.f32.mrb[0].mxu0
  %v2861 = vadd.f32 0.0, %v2860
  %v2862 = vpop.f32.mrb[0].mxu0
  %v2863 = vadd.f32 0.0, %v2862
  %v2864 = vpop.f32.mrb[0].mxu0
  %v2865 = vpop.f32.mrb[0].mxu0
  %2866 = vdwg.mxu0
  %2867 = vmatprep.subr.bf16.mxu0 %v2411
  %2868 = vmatpush1.bf16.msra.mxu0 %v2410
  %2869 = vmatprep.subr.bf16.mxu0 %v2415
  %2870 = vmatpush1.bf16.msra.mxu0 %v2414
  %2871 = vmatprep.subr.bf16.mxu0 %v2419
  %2872 = vmatpush1.bf16.msra.mxu0 %v2418
  %2873 = vmatprep.subr.bf16.mxu0 %v2423
  %2874 = vmatpush1.bf16.msra.mxu0 %v2422
  %2875 = vmatprep.subr.bf16.mxu0 %v2427
  %2876 = vmatpush1.bf16.msra.mxu0 %v2426
  %2877 = vmatprep.subr.bf16.mxu0 %v2431
  %2878 = vmatpush1.bf16.msra.mxu0 %v2430
  %2879 = vmatprep.subr.bf16.mxu0 %v2435
  %2880 = vmatpush1.bf16.msra.mxu0 %v2434
  %2881 = vmatprep.subr.bf16.mxu0 %v2439
  %2882 = vmatpush1.bf16.msra.mxu0 %v2438
  %2883 = vmatprep.subr.bf16.mxu0 0
  %2884 = vmatpush1.bf16.msra.mxu0 0
  %2885 = vmatprep.subr.bf16.mxu0 0
  %2886 = vmatpush1.bf16.msra.mxu0 0
  %2887 = vmatprep.subr.bf16.mxu0 0
  %2888 = vmatpush1.bf16.msra.mxu0 0
  %2889 = vmatprep.subr.bf16.mxu0 0
  %2890 = vmatpush1.bf16.msra.mxu0 0
  %2891 = vmatprep.subr.bf16.mxu0 0
  %2892 = vmatpush1.bf16.msra.mxu0 0
  %2893 = vmatprep.subr.bf16.mxu0 0
  %2894 = vmatpush1.bf16.msra.mxu0 0
  %2895 = vmatprep.subr.bf16.mxu0 0
  %2896 = vmatpush1.bf16.msra.mxu0 0
  %2897 = vmatprep.subr.bf16.mxu0 0
  %2898 = vmatpush1.bf16.msra.mxu0 0
  %2899 = vmatprep.mubr.bf16.mxu0 0
  %2900 = vmatmul.mubr.bf16.gmra.mrb[0].mxu0 %v2818
  %v2901 = vpop.f32.mrb[0].mxu0
  %v2902 = vadd.f32 0.0, %v2901
  %v2903 = vpop.f32.mrb[0].mxu0
  %v2904 = vadd.f32 0.0, %v2903
  %v2905 = vpop.f32.mrb[0].mxu0
  %v2906 = vpop.f32.mrb[0].mxu0
  %2907 = vdwg.mxu0
  %v2908 = vadd.f32 %v2822, %v2861
  %v2909 = vadd.f32 %v2823, %v2863
  %v2910 = vadd.f32 %v2824, %v2902
  %v2911 = vadd.f32 %v2825, %v2904
  %v2912 = vxor.u32 %v2908, 2147483648
  %v2913 = vxor.u32 %v2909, 2147483648
  %v2914 = vxor.u32 %v2910, 2147483648
  %v2915 = vmul.f32 %v2912, 1.442695
  %v2916 = vpow.pop %v2915
  %v2917 = vmul.f32 %v2913, 1.442695
  %v2918 = vpow.pop %v2917
  %v2919 = vmul.f32 %v2914, 1.442695
  %v2920 = vpow.pop %v2919
  %v2921 = vadd.f32 %v2916, 1.0
  %v2922 = vadd.f32 %v2918, 1.0
  %v2923 = vadd.f32 %v2920, 1.0
  %v2924 = vrcp.pop %v2921
  %v2925 = vmul.f32 1.0, %v2924
  %v2926 = vrcp.pop %v2922
  %v2927 = vmul.f32 1.0, %v2926
  %v2928 = vrcp.pop %v2923
  %v2929 = vmul.f32 1.0, %v2928
  %v2930 = vtanh.pop %v2911
  %v2931 = vmul.f32 %v2927, %v2815
  %v2932 = vmul.f32 %v2925, %v2930
  %v2933 = vadd.f32 %v2931, %v2932
  %v2934 = vtanh.pop %v2933
  %v2935 = vmul.f32 %v2929, %v2934
  %v2936 = vpack.c.bf16 %v2935, %v2935
  %2937 = vst [vmem:[%s1249] sm:$0xf] %v2936
  %v2938 = vld [vmem:[%s1251] sm:$0xff]
  %v2939 = vld [vmem:[%s1251 + $0x8] sm:$0xff]
  %v2940 = vunpack.c.l.bf16 %v2938
  %v2941 = vunpack.c.h.bf16 %v2938
  %v2942 = vunpack.c.l.bf16 %v2939
  %v2943 = vunpack.c.h.bf16 %v2939
  %2944 = vmatprep.subr.bf16.mxu0 %v2409
  %2945 = vmatpush1.bf16.msra.mxu0 %v2408
  %2946 = vmatprep.subr.bf16.mxu0 %v2413
  %2947 = vmatpush1.bf16.msra.mxu0 %v2412
  %2948 = vmatprep.subr.bf16.mxu0 %v2417
  %2949 = vmatpush1.bf16.msra.mxu0 %v2416
  %2950 = vmatprep.subr.bf16.mxu0 %v2421
  %2951 = vmatpush1.bf16.msra.mxu0 %v2420
  %2952 = vmatprep.subr.bf16.mxu0 %v2425
  %2953 = vmatpush1.bf16.msra.mxu0 %v2424
  %2954 = vmatprep.subr.bf16.mxu0 %v2429
  %2955 = vmatpush1.bf16.msra.mxu0 %v2428
  %2956 = vmatprep.subr.bf16.mxu0 %v2433
  %2957 = vmatpush1.bf16.msra.mxu0 %v2432
  %2958 = vmatprep.subr.bf16.mxu0 %v2437
  %2959 = vmatpush1.bf16.msra.mxu0 %v2436
  %2960 = vmatprep.subr.bf16.mxu0 0
  %2961 = vmatpush1.bf16.msra.mxu0 0
  %2962 = vmatprep.subr.bf16.mxu0 0
  %2963 = vmatpush1.bf16.msra.mxu0 0
  %2964 = vmatprep.subr.bf16.mxu0 0
  %2965 = vmatpush1.bf16.msra.mxu0 0
  %2966 = vmatprep.subr.bf16.mxu0 0
  %2967 = vmatpush1.bf16.msra.mxu0 0
  %2968 = vmatprep.subr.bf16.mxu0 0
  %2969 = vmatpush1.bf16.msra.mxu0 0
  %2970 = vmatprep.subr.bf16.mxu0 0
  %2971 = vmatpush1.bf16.msra.mxu0 0
  %2972 = vmatprep.subr.bf16.mxu0 0
  %2973 = vmatpush1.bf16.msra.mxu0 0
  %2974 = vmatprep.subr.bf16.mxu0 0
  %2975 = vmatpush1.bf16.msra.mxu0 0
  %2976 = vmatprep.mubr.bf16.mxu0 0
  %2977 = vmatmul.mubr.bf16.gmra.mrb[0].mxu0 %v2936
  %v2978 = vpop.f32.mrb[0].mxu0
  %v2979 = vadd.f32 0.0, %v2978
  %v2980 = vpop.f32.mrb[0].mxu0
  %v2981 = vadd.f32 0.0, %v2980
  %v2982 = vpop.f32.mrb[0].mxu0
  %v2983 = vpop.f32.mrb[0].mxu0
  %2984 = vdwg.mxu0
  %2985 = vmatprep.subr.bf16.mxu0 %v2411
  %2986 = vmatpush1.bf16.msra.mxu0 %v2410
  %2987 = vmatprep.subr.bf16.mxu0 %v2415
  %2988 = vmatpush1.bf16.msra.mxu0 %v2414
  %2989 = vmatprep.subr.bf16.mxu0 %v2419
  %2990 = vmatpush1.bf16.msra.mxu0 %v2418
  %2991 = vmatprep.subr.bf16.mxu0 %v2423
  %2992 = vmatpush1.bf16.msra.mxu0 %v2422
  %2993 = vmatprep.subr.bf16.mxu0 %v2427
  %2994 = vmatpush1.bf16.msra.mxu0 %v2426
  %2995 = vmatprep.subr.bf16.mxu0 %v2431
  %2996 = vmatpush1.bf16.msra.mxu0 %v2430
  %2997 = vmatprep.subr.bf16.mxu0 %v2435
  %2998 = vmatpush1.bf16.msra.mxu0 %v2434
  %2999 = vmatprep.subr.bf16.mxu0 %v2439
  %3000 = vmatpush1.bf16.msra.mxu0 %v2438
  %3001 = vmatprep.subr.bf16.mxu0 0
  %3002 = vmatpush1.bf16.msra.mxu0 0
  %3003 = vmatprep.subr.bf16.mxu0 0
  %3004 = vmatpush1.bf16.msra.mxu0 0
  %3005 = vmatprep.subr.bf16.mxu0 0
  %3006 = vmatpush1.bf16.msra.mxu0 0
  %3007 = vmatprep.subr.bf16.mxu0 0
  %3008 = vmatpush1.bf16.msra.mxu0 0
  %3009 = vmatprep.subr.bf16.mxu0 0
  %3010 = vmatpush1.bf16.msra.mxu0 0
  %3011 = vmatprep.subr.bf16.mxu0 0
  %3012 = vmatpush1.bf16.msra.mxu0 0
  %3013 = vmatprep.subr.bf16.mxu0 0
  %3014 = vmatpush1.bf16.msra.mxu0 0
  %3015 = vmatprep.subr.bf16.mxu0 0
  %3016 = vmatpush1.bf16.msra.mxu0 0
  %3017 = vmatprep.mubr.bf16.mxu0 0
  %3018 = vmatmul.mubr.bf16.gmra.mrb[0].mxu0 %v2936
  %v3019 = vpop.f32.mrb[0].mxu0
  %v3020 = vadd.f32 0.0, %v3019
  %v3021 = vpop.f32.mrb[0].mxu0
  %v3022 = vadd.f32 0.0, %v3021
  %v3023 = vpop.f32.mrb[0].mxu0
  %v3024 = vpop.f32.mrb[0].mxu0
  %3025 = vdwg.mxu0
  %v3026 = vadd.f32 %v2940, %v2979
  %v3027 = vadd.f32 %v2941, %v2981
  %v3028 = vadd.f32 %v2942, %v3020
  %v3029 = vadd.f32 %v2943, %v3022
  %v3030 = vxor.u32 %v3026, 2147483648
  %v3031 = vxor.u32 %v3027, 2147483648
  %v3032 = vxor.u32 %v3028, 2147483648
  %v3033 = vmul.f32 %v3030, 1.442695
  %v3034 = vpow.pop %v3033
  %v3035 = vmul.f32 %v3031, 1.442695
  %v3036 = vpow.pop %v3035
  %v3037 = vmul.f32 %v3032, 1.442695
  %v3038 = vpow.pop %v3037
  %v3039 = vadd.f32 %v3034, 1.0
  %v3040 = vadd.f32 %v3036, 1.0
  %v3041 = vadd.f32 %v3038, 1.0
  %v3042 = vrcp.pop %v3039
  %v3043 = vmul.f32 1.0, %v3042
  %v3044 = vrcp.pop %v3040
  %v3045 = vmul.f32 1.0, %v3044
  %v3046 = vrcp.pop %v3041
  %v3047 = vmul.f32 1.0, %v3046
  %v3048 = vtanh.pop %v3029
  %v3049 = vmul.f32 %v3045, %v2933
  %v3050 = vmul.f32 %v3043, %v3048
  %v3051 = vadd.f32 %v3049, %v3050
  %v3052 = vtanh.pop %v3051
  %v3053 = vmul.f32 %v3047, %v3052
  %v3054 = vpack.c.bf16 %v3053, %v3053
  %3055 = vst [vmem:[%s1369] sm:$0xf] %v3054
  %v3056 = vld [vmem:[%s1371] sm:$0xff]
  %v3057 = vld [vmem:[%s1371 + $0x8] sm:$0xff]
  %v3058 = vunpack.c.l.bf16 %v3056
  %v3059 = vunpack.c.h.bf16 %v3056
  %v3060 = vunpack.c.l.bf16 %v3057
  %v3061 = vunpack.c.h.bf16 %v3057
  %3062 = vmatprep.subr.bf16.mxu0 %v2409
  %3063 = vmatpush1.bf16.msra.mxu0 %v2408
  %3064 = vmatprep.subr.bf16.mxu0 %v2413
  %3065 = vmatpush1.bf16.msra.mxu0 %v2412
  %3066 = vmatprep.subr.bf16.mxu0 %v2417
  %3067 = vmatpush1.bf16.msra.mxu0 %v2416
  %3068 = vmatprep.subr.bf16.mxu0 %v2421
  %3069 = vmatpush1.bf16.msra.mxu0 %v2420
  %3070 = vmatprep.subr.bf16.mxu0 %v2425
  %3071 = vmatpush1.bf16.msra.mxu0 %v2424
  %3072 = vmatprep.subr.bf16.mxu0 %v2429
  %3073 = vmatpush1.bf16.msra.mxu0 %v2428
  %3074 = vmatprep.subr.bf16.mxu0 %v2433
  %3075 = vmatpush1.bf16.msra.mxu0 %v2432
  %3076 = vmatprep.subr.bf16.mxu0 %v2437
  %3077 = vmatpush1.bf16.msra.mxu0 %v2436
  %3078 = vmatprep.subr.bf16.mxu0 0
  %3079 = vmatpush1.bf16.msra.mxu0 0
  %3080 = vmatprep.subr.bf16.mxu0 0
  %3081 = vmatpush1.bf16.msra.mxu0 0
  %3082 = vmatprep.subr.bf16.mxu0 0
  %3083 = vmatpush1.bf16.msra.mxu0 0
  %3084 = vmatprep.subr.bf16.mxu0 0
  %3085 = vmatpush1.bf16.msra.mxu0 0
  %3086 = vmatprep.subr.bf16.mxu0 0
  %3087 = vmatpush1.bf16.msra.mxu0 0
  %3088 = vmatprep.subr.bf16.mxu0 0
  %3089 = vmatpush1.bf16.msra.mxu0 0
  %3090 = vmatprep.subr.bf16.mxu0 0
  %3091 = vmatpush1.bf16.msra.mxu0 0
  %3092 = vmatprep.subr.bf16.mxu0 0
  %3093 = vmatpush1.bf16.msra.mxu0 0
  %3094 = vmatprep.mubr.bf16.mxu0 0
  %3095 = vmatmul.mubr.bf16.gmra.mrb[0].mxu0 %v3054
  %v3096 = vpop.f32.mrb[0].mxu0
  %v3097 = vadd.f32 0.0, %v3096
  %v3098 = vpop.f32.mrb[0].mxu0
  %v3099 = vadd.f32 0.0, %v3098
  %v3100 = vpop.f32.mrb[0].mxu0
  %v3101 = vpop.f32.mrb[0].mxu0
  %3102 = vdwg.mxu0
  %3103 = vmatprep.subr.bf16.mxu0 %v2411
  %3104 = vmatpush1.bf16.msra.mxu0 %v2410
  %3105 = vmatprep.subr.bf16.mxu0 %v2415
  %3106 = vmatpush1.bf16.msra.mxu0 %v2414
  %3107 = vmatprep.subr.bf16.mxu0 %v2419
  %3108 = vmatpush1.bf16.msra.mxu0 %v2418
  %3109 = vmatprep.subr.bf16.mxu0 %v2423
  %3110 = vmatpush1.bf16.msra.mxu0 %v2422
  %3111 = vmatprep.subr.bf16.mxu0 %v2427
  %3112 = vmatpush1.bf16.msra.mxu0 %v2426
  %3113 = vmatprep.subr.bf16.mxu0 %v2431
  %3114 = vmatpush1.bf16.msra.mxu0 %v2430
  %3115 = vmatprep.subr.bf16.mxu0 %v2435
  %3116 = vmatpush1.bf16.msra.mxu0 %v2434
  %3117 = vmatprep.subr.bf16.mxu0 %v2439
  %3118 = vmatpush1.bf16.msra.mxu0 %v2438
  %3119 = vmatprep.subr.bf16.mxu0 0
  %3120 = vmatpush1.bf16.msra.mxu0 0
  %3121 = vmatprep.subr.bf16.mxu0 0
  %3122 = vmatpush1.bf16.msra.mxu0 0
  %3123 = vmatprep.subr.bf16.mxu0 0
  %3124 = vmatpush1.bf16.msra.mxu0 0
  %3125 = vmatprep.subr.bf16.mxu0 0
  %3126 = vmatpush1.bf16.msra.mxu0 0
  %3127 = vmatprep.subr.bf16.mxu0 0
  %3128 = vmatpush1.bf16.msra.mxu0 0
  %3129 = vmatprep.subr.bf16.mxu0 0
  %3130 = vmatpush1.bf16.msra.mxu0 0
  %3131 = vmatprep.subr.bf16.mxu0 0
  %3132 = vmatpush1.bf16.msra.mxu0 0
  %3133 = vmatprep.subr.bf16.mxu0 0
  %3134 = vmatpush1.bf16.msra.mxu0 0
  %3135 = vmatprep.mubr.bf16.mxu0 0
  %3136 = vmatmul.mubr.bf16.gmra.mrb[0].mxu0 %v3054
  %v3137 = vpop.f32.mrb[0].mxu0
  %v3138 = vadd.f32 0.0, %v3137
  %v3139 = vpop.f32.mrb[0].mxu0
  %v3140 = vadd.f32 0.0, %v3139
  %v3141 = vpop.f32.mrb[0].mxu0
  %v3142 = vpop.f32.mrb[0].mxu0
  %3143 = vdwg.mxu0
  %v3144 = vadd.f32 %v3058, %v3097
  %v3145 = vadd.f32 %v3059, %v3099
  %v3146 = vadd.f32 %v3060, %v3138
  %v3147 = vadd.f32 %v3061, %v3140
  %v3148 = vxor.u32 %v3144, 2147483648
  %v3149 = vxor.u32 %v3145, 2147483648
  %v3150 = vxor.u32 %v3146, 2147483648
  %v3151 = vmul.f32 %v3148, 1.442695
  %v3152 = vpow.pop %v3151
  %v3153 = vmul.f32 %v3149, 1.442695
  %v3154 = vpow.pop %v3153
  %v3155 = vmul.f32 %v3150, 1.442695
  %v3156 = vpow.pop %v3155
  %v3157 = vadd.f32 %v3152, 1.0
  %v3158 = vadd.f32 %v3154, 1.0
  %v3159 = vadd.f32 %v3156, 1.0
  %v3160 = vrcp.pop %v3157
  %v3161 = vmul.f32 1.0, %v3160
  %v3162 = vrcp.pop %v3158
  %v3163 = vmul.f32 1.0, %v3162
  %v3164 = vrcp.pop %v3159
  %v3165 = vmul.f32 1.0, %v3164
  %v3166 = vtanh.pop %v3147
  %v3167 = vmul.f32 %v3163, %v3051
  %v3168 = vmul.f32 %v3161, %v3166
  %v3169 = vadd.f32 %v3167, %v3168
  %v3170 = vtanh.pop %v3169
  %v3171 = vmul.f32 %v3165, %v3170
  %v3172 = vpack.c.bf16 %v3171, %v3171
  %3173 = vst [vmem:[%s1489] sm:$0xf] %v3172
  %v3174 = vld [vmem:[%s1491] sm:$0xff]
  %v3175 = vld [vmem:[%s1491 + $0x8] sm:$0xff]
  %v3176 = vunpack.c.l.bf16 %v3174
  %v3177 = vunpack.c.h.bf16 %v3174
  %v3178 = vunpack.c.l.bf16 %v3175
  %v3179 = vunpack.c.h.bf16 %v3175
  %3180 = vmatprep.subr.bf16.mxu0 %v2409
  %3181 = vmatpush1.bf16.msra.mxu0 %v2408
  %3182 = vmatprep.subr.bf16.mxu0 %v2413
  %3183 = vmatpush1.bf16.msra.mxu0 %v2412
  %3184 = vmatprep.subr.bf16.mxu0 %v2417
  %3185 = vmatpush1.bf16.msra.mxu0 %v2416
  %3186 = vmatprep.subr.bf16.mxu0 %v2421
  %3187 = vmatpush1.bf16.msra.mxu0 %v2420
  %3188 = vmatprep.subr.bf16.mxu0 %v2425
  %3189 = vmatpush1.bf16.msra.mxu0 %v2424
  %3190 = vmatprep.subr.bf16.mxu0 %v2429
  %3191 = vmatpush1.bf16.msra.mxu0 %v2428
  %3192 = vmatprep.subr.bf16.mxu0 %v2433
  %3193 = vmatpush1.bf16.msra.mxu0 %v2432
  %3194 = vmatprep.subr.bf16.mxu0 %v2437
  %3195 = vmatpush1.bf16.msra.mxu0 %v2436
  %3196 = vmatprep.subr.bf16.mxu0 0
  %3197 = vmatpush1.bf16.msra.mxu0 0
  %3198 = vmatprep.subr.bf16.mxu0 0
  %3199 = vmatpush1.bf16.msra.mxu0 0
  %3200 = vmatprep.subr.bf16.mxu0 0
  %3201 = vmatpush1.bf16.msra.mxu0 0
  %3202 = vmatprep.subr.bf16.mxu0 0
  %3203 = vmatpush1.bf16.msra.mxu0 0
  %3204 = vmatprep.subr.bf16.mxu0 0
  %3205 = vmatpush1.bf16.msra.mxu0 0
  %3206 = vmatprep.subr.bf16.mxu0 0
  %3207 = vmatpush1.bf16.msra.mxu0 0
  %3208 = vmatprep.subr.bf16.mxu0 0
  %3209 = vmatpush1.bf16.msra.mxu0 0
  %3210 = vmatprep.subr.bf16.mxu0 0
  %3211 = vmatpush1.bf16.msra.mxu0 0
  %3212 = vmatprep.mubr.bf16.mxu0 0
  %3213 = vmatmul.mubr.bf16.gmra.mrb[0].mxu0 %v3172
  %v3214 = vpop.f32.mrb[0].mxu0
  %v3215 = vadd.f32 0.0, %v3214
  %v3216 = vpop.f32.mrb[0].mxu0
  %v3217 = vadd.f32 0.0, %v3216
  %v3218 = vpop.f32.mrb[0].mxu0
  %v3219 = vpop.f32.mrb[0].mxu0
  %3220 = vdwg.mxu0
  %3221 = vmatprep.subr.bf16.mxu0 %v2411
  %3222 = vmatpush1.bf16.msra.mxu0 %v2410
  %3223 = vmatprep.subr.bf16.mxu0 %v2415
  %3224 = vmatpush1.bf16.msra.mxu0 %v2414
  %3225 = vmatprep.subr.bf16.mxu0 %v2419
  %3226 = vmatpush1.bf16.msra.mxu0 %v2418
  %3227 = vmatprep.subr.bf16.mxu0 %v2423
  %3228 = vmatpush1.bf16.msra.mxu0 %v2422
  %3229 = vmatprep.subr.bf16.mxu0 %v2427
  %3230 = vmatpush1.bf16.msra.mxu0 %v2426
  %3231 = vmatprep.subr.bf16.mxu0 %v2431
  %3232 = vmatpush1.bf16.msra.mxu0 %v2430
  %3233 = vmatprep.subr.bf16.mxu0 %v2435
  %3234 = vmatpush1.bf16.msra.mxu0 %v2434
  %3235 = vmatprep.subr.bf16.mxu0 %v2439
  %3236 = vmatpush1.bf16.msra.mxu0 %v2438
  %3237 = vmatprep.subr.bf16.mxu0 0
  %3238 = vmatpush1.bf16.msra.mxu0 0
  %3239 = vmatprep.subr.bf16.mxu0 0
  %3240 = vmatpush1.bf16.msra.mxu0 0
  %3241 = vmatprep.subr.bf16.mxu0 0
  %3242 = vmatpush1.bf16.msra.mxu0 0
  %3243 = vmatprep.subr.bf16.mxu0 0
  %3244 = vmatpush1.bf16.msra.mxu0 0
  %3245 = vmatprep.subr.bf16.mxu0 0
  %3246 = vmatpush1.bf16.msra.mxu0 0
  %3247 = vmatprep.subr.bf16.mxu0 0
  %3248 = vmatpush1.bf16.msra.mxu0 0
  %3249 = vmatprep.subr.bf16.mxu0 0
  %3250 = vmatpush1.bf16.msra.mxu0 0
  %3251 = vmatprep.subr.bf16.mxu0 0
  %3252 = vmatpush1.bf16.msra.mxu0 0
  %3253 = vmatprep.mubr.bf16.mxu0 0
  %3254 = vmatmul.mubr.bf16.gmra.mrb[0].mxu0 %v3172
  %v3255 = vpop.f32.mrb[0].mxu0
  %v3256 = vadd.f32 0.0, %v3255
  %v3257 = vpop.f32.mrb[0].mxu0
  %v3258 = vadd.f32 0.0, %v3257
  %v3259 = vpop.f32.mrb[0].mxu0
  %v3260 = vpop.f32.mrb[0].mxu0
  %3261 = vdwg.mxu0
  %v3262 = vadd.f32 %v3176, %v3215
  %v3263 = vadd.f32 %v3177, %v3217
  %v3264 = vadd.f32 %v3178, %v3256
  %v3265 = vadd.f32 %v3179, %v3258
  %v3266 = vxor.u32 %v3262, 2147483648
  %v3267 = vxor.u32 %v3263, 2147483648
  %v3268 = vxor.u32 %v3264, 2147483648
  %v3269 = vmul.f32 %v3266, 1.442695
  %v3270 = vpow.pop %v3269
  %v3271 = vmul.f32 %v3267, 1.442695
  %v3272 = vpow.pop %v3271
  %v3273 = vmul.f32 %v3268, 1.442695
  %v3274 = vpow.pop %v3273
  %v3275 = vadd.f32 %v3270, 1.0
  %v3276 = vadd.f32 %v3272, 1.0
  %v3277 = vadd.f32 %v3274, 1.0
  %v3278 = vrcp.pop %v3275
  %v3279 = vmul.f32 1.0, %v3278
  %v3280 = vrcp.pop %v3276
  %v3281 = vmul.f32 1.0, %v3280
  %v3282 = vrcp.pop %v3277
  %v3283 = vmul.f32 1.0, %v3282
  %v3284 = vtanh.pop %v3265
  %v3285 = vmul.f32 %v3281, %v3169
  %v3286 = vmul.f32 %v3279, %v3284
  %v3287 = vadd.f32 %v3285, %v3286
  %v3288 = vtanh.pop %v3287
  %v3289 = vmul.f32 %v3283, %v3288
  %v3290 = vpack.c.bf16 %v3289, %v3289
  %3291 = vst [vmem:[%s1609] sm:$0xf] %v3290
  %v3292 = vld [vmem:[%s1611] sm:$0xff]
  %v3293 = vld [vmem:[%s1611 + $0x8] sm:$0xff]
  %v3294 = vunpack.c.l.bf16 %v3292
  %v3295 = vunpack.c.h.bf16 %v3292
  %v3296 = vunpack.c.l.bf16 %v3293
  %v3297 = vunpack.c.h.bf16 %v3293
  %3298 = vmatprep.subr.bf16.mxu0 %v2409
  %3299 = vmatpush1.bf16.msra.mxu0 %v2408
  %3300 = vmatprep.subr.bf16.mxu0 %v2413
  %3301 = vmatpush1.bf16.msra.mxu0 %v2412
  %3302 = vmatprep.subr.bf16.mxu0 %v2417
  %3303 = vmatpush1.bf16.msra.mxu0 %v2416
  %3304 = vmatprep.subr.bf16.mxu0 %v2421
  %3305 = vmatpush1.bf16.msra.mxu0 %v2420
  %3306 = vmatprep.subr.bf16.mxu0 %v2425
  %3307 = vmatpush1.bf16.msra.mxu0 %v2424
  %3308 = vmatprep.subr.bf16.mxu0 %v2429
  %3309 = vmatpush1.bf16.msra.mxu0 %v2428
  %3310 = vmatprep.subr.bf16.mxu0 %v2433
  %3311 = vmatpush1.bf16.msra.mxu0 %v2432
  %3312 = vmatprep.subr.bf16.mxu0 %v2437
  %3313 = vmatpush1.bf16.msra.mxu0 %v2436
  %3314 = vmatprep.subr.bf16.mxu0 0
  %3315 = vmatpush1.bf16.msra.mxu0 0
  %3316 = vmatprep.subr.bf16.mxu0 0
  %3317 = vmatpush1.bf16.msra.mxu0 0
  %3318 = vmatprep.subr.bf16.mxu0 0
  %3319 = vmatpush1.bf16.msra.mxu0 0
  %3320 = vmatprep.subr.bf16.mxu0 0
  %3321 = vmatpush1.bf16.msra.mxu0 0
  %3322 = vmatprep.subr.bf16.mxu0 0
  %3323 = vmatpush1.bf16.msra.mxu0 0
  %3324 = vmatprep.subr.bf16.mxu0 0
  %3325 = vmatpush1.bf16.msra.mxu0 0
  %3326 = vmatprep.subr.bf16.mxu0 0
  %3327 = vmatpush1.bf16.msra.mxu0 0
  %3328 = vmatprep.subr.bf16.mxu0 0
  %3329 = vmatpush1.bf16.msra.mxu0 0
  %3330 = vmatprep.mubr.bf16.mxu0 0
  %3331 = vmatmul.mubr.bf16.gmra.mrb[0].mxu0 %v3290
  %v3332 = vpop.f32.mrb[0].mxu0
  %v3333 = vadd.f32 0.0, %v3332
  %v3334 = vpop.f32.mrb[0].mxu0
  %v3335 = vadd.f32 0.0, %v3334
  %v3336 = vpop.f32.mrb[0].mxu0
  %v3337 = vpop.f32.mrb[0].mxu0
  %3338 = vdwg.mxu0
  %3339 = vmatprep.subr.bf16.mxu0 %v2411
  %3340 = vmatpush1.bf16.msra.mxu0 %v2410
  %3341 = vmatprep.subr.bf16.mxu0 %v2415
  %3342 = vmatpush1.bf16.msra.mxu0 %v2414
  %3343 = vmatprep.subr.bf16.mxu0 %v2419
  %3344 = vmatpush1.bf16.msra.mxu0 %v2418
  %3345 = vmatprep.subr.bf16.mxu0 %v2423
  %3346 = vmatpush1.bf16.msra.mxu0 %v2422
  %3347 = vmatprep.subr.bf16.mxu0 %v2427
  %3348 = vmatpush1.bf16.msra.mxu0 %v2426
  %3349 = vmatprep.subr.bf16.mxu0 %v2431
  %3350 = vmatpush1.bf16.msra.mxu0 %v2430
  %3351 = vmatprep.subr.bf16.mxu0 %v2435
  %3352 = vmatpush1.bf16.msra.mxu0 %v2434
  %3353 = vmatprep.subr.bf16.mxu0 %v2439
  %3354 = vmatpush1.bf16.msra.mxu0 %v2438
  %3355 = vmatprep.subr.bf16.mxu0 0
  %3356 = vmatpush1.bf16.msra.mxu0 0
  %3357 = vmatprep.subr.bf16.mxu0 0
  %3358 = vmatpush1.bf16.msra.mxu0 0
  %3359 = vmatprep.subr.bf16.mxu0 0
  %3360 = vmatpush1.bf16.msra.mxu0 0
  %3361 = vmatprep.subr.bf16.mxu0 0
  %3362 = vmatpush1.bf16.msra.mxu0 0
  %3363 = vmatprep.subr.bf16.mxu0 0
  %3364 = vmatpush1.bf16.msra.mxu0 0
  %3365 = vmatprep.subr.bf16.mxu0 0
  %3366 = vmatpush1.bf16.msra.mxu0 0
  %3367 = vmatprep.subr.bf16.mxu0 0
  %3368 = vmatpush1.bf16.msra.mxu0 0
  %3369 = vmatprep.subr.bf16.mxu0 0
  %3370 = vmatpush1.bf16.msra.mxu0 0
  %3371 = vmatprep.mubr.bf16.mxu0 0
  %3372 = vmatmul.mubr.bf16.gmra.mrb[0].mxu0 %v3290
  %v3373 = vpop.f32.mrb[0].mxu0
  %v3374 = vadd.f32 0.0, %v3373
  %v3375 = vpop.f32.mrb[0].mxu0
  %v3376 = vadd.f32 0.0, %v3375
  %v3377 = vpop.f32.mrb[0].mxu0
  %v3378 = vpop.f32.mrb[0].mxu0
  %3379 = vdwg.mxu0
  %v3380 = vadd.f32 %v3294, %v3333
  %v3381 = vadd.f32 %v3295, %v3335
  %v3382 = vadd.f32 %v3296, %v3374
  %v3383 = vadd.f32 %v3297, %v3376
  %v3384 = vxor.u32 %v3380, 2147483648
  %v3385 = vxor.u32 %v3381, 2147483648
  %v3386 = vxor.u32 %v3382, 2147483648
  %v3387 = vmul.f32 %v3384, 1.442695
  %v3388 = vpow.pop %v3387
  %v3389 = vmul.f32 %v3385, 1.442695
  %v3390 = vpow.pop %v3389
  %v3391 = vmul.f32 %v3386, 1.442695
  %v3392 = vpow.pop %v3391
  %v3393 = vadd.f32 %v3388, 1.0
  %v3394 = vadd.f32 %v3390, 1.0
  %v3395 = vadd.f32 %v3392, 1.0
  %v3396 = vrcp.pop %v3393
  %v3397 = vmul.f32 1.0, %v3396
  %v3398 = vrcp.pop %v3394
  %v3399 = vmul.f32 1.0, %v3398
  %v3400 = vrcp.pop %v3395
  %v3401 = vmul.f32 1.0, %v3400
  %v3402 = vtanh.pop %v3383
  %v3403 = vmul.f32 %v3399, %v3287
  %v3404 = vmul.f32 %v3397, %v3402
  %v3405 = vadd.f32 %v3403, %v3404
  %v3406 = vtanh.pop %v3405
  %v3407 = vmul.f32 %v3401, %v3406
  %v3408 = vpack.c.bf16 %v3407, %v3407
  %3409 = vst [vmem:[%s1729] sm:$0xf] %v3408
  %s3410 = scalar_lea.vmem %s12, 8
  %3411 = vst [vmem:[%s3410] sm:$0xff] %v3407
  %s3412 = scalar_lea.vmem %s13, 8
  %3413 = vst [vmem:[%s3412] sm:$0xff] %v3405
  %v3414 = vld [vmem:[#allocation2] sm:$0xf]
  %v3415 = vld [vmem:[#allocation2 + $0x4] sm:$0xf]
  %v3416 = vld [vmem:[#allocation2 + $0x8] sm:$0xf]
  %v3417 = vld [vmem:[#allocation2 + $0xc] sm:$0xf]
  %v3418 = vld [vmem:[#allocation2 + $0x10] sm:$0xf]
  %v3419 = vld [vmem:[#allocation2 + $0x14] sm:$0xf]
  %v3420 = vld [vmem:[#allocation2 + $0x18] sm:$0xf]
  %v3421 = vld [vmem:[#allocation2 + $0x1c] sm:$0xf]
  %v3422 = vld [vmem:[%s7] sm:$0xf]
  %v3423 = vld [vmem:[%s7 + $0x4] sm:$0xf]
  %v3424 = vld [vmem:[%s7 + $0x8] sm:$0xf]
  %v3425 = vld [vmem:[%s7 + $0xc] sm:$0xf]
  %v3426 = vld [vmem:[%s7 + $0x10] sm:$0xf]
  %v3427 = vld [vmem:[%s7 + $0x14] sm:$0xf]
  %v3428 = vld [vmem:[%s7 + $0x18] sm:$0xf]
  %v3429 = vld [vmem:[%s7 + $0x1c] sm:$0xf]
  %v3430 = vld [vmem:[%s7 + $0x20] sm:$0xf]
  %v3431 = vld [vmem:[%s7 + $0x24] sm:$0xf]
  %v3432 = vld [vmem:[%s7 + $0x28] sm:$0xf]
  %v3433 = vld [vmem:[%s7 + $0x2c] sm:$0xf]
  %v3434 = vld [vmem:[%s7 + $0x30] sm:$0xf]
  %v3435 = vld [vmem:[%s7 + $0x34] sm:$0xf]
  %v3436 = vld [vmem:[%s7 + $0x38] sm:$0xf]
  %v3437 = vld [vmem:[%s7 + $0x3c] sm:$0xf]
  %v3438 = vld [vmem:[%s8] sm:$0x1]
  %v3440 = vlaneseq
  %v3441 = vshrl.u32 %v3440, 7
  %v3442 = vsub.s32 0, %v3441
  %v3443 = vrot.slane %v3438, %v3442
  %v3453 = vunpack.c.l.b16 %v3414
  %v3454 = vunpack.c.l.b16 %v3415
  %v3455 = vunpack.c.l.b16 %v3416
  %v3456 = vunpack.c.l.b16 %v3417
  %v3457 = vunpack.c.l.b16 %v3418
  %v3458 = vunpack.c.l.b16 %v3419
  %v3459 = vunpack.c.l.b16 %v3420
  %v3460 = vunpack.c.l.b16 %v3421
  %v3461 = vpack.c.b16 %v3454, %v3453
  %v3462 = vpack.c.b16 %v3456, %v3455
  %v3463 = vpack.c.b16 %v3458, %v3457
  %v3464 = vpack.c.b16 %v3460, %v3459
  %v3485 = vunpack.c.l.b16 %v3422
  %v3486 = vunpack.c.l.b16 %v3423
  %v3487 = vunpack.c.l.b16 %v3424
  %v3488 = vunpack.c.l.b16 %v3425
  %v3489 = vunpack.c.l.b16 %v3426
  %v3490 = vunpack.c.l.b16 %v3427
  %v3491 = vunpack.c.l.b16 %v3428
  %v3492 = vunpack.c.l.b16 %v3429
  %v3493 = vunpack.c.l.b16 %v3430
  %v3494 = vunpack.c.l.b16 %v3431
  %v3495 = vunpack.c.l.b16 %v3432
  %v3496 = vunpack.c.l.b16 %v3433
  %v3497 = vunpack.c.l.b16 %v3434
  %v3498 = vunpack.c.l.b16 %v3435
  %v3499 = vunpack.c.l.b16 %v3436
  %v3500 = vunpack.c.l.b16 %v3437
  %v3501 = vpack.c.b16 %v3486, %v3485
  %v3502 = vpack.c.b16 %v3488, %v3487
  %v3503 = vpack.c.b16 %v3490, %v3489
  %v3504 = vpack.c.b16 %v3492, %v3491
  %v3505 = vpack.c.b16 %v3494, %v3493
  %v3506 = vpack.c.b16 %v3496, %v3495
  %v3507 = vpack.c.b16 %v3498, %v3497
  %v3508 = vpack.c.b16 %v3500, %v3499
  %3517 = vmatprep.subr.bf16.mxu0 0
  %3518 = vmatpush1.bf16.msra.mxu0 %v3501
  %3519 = vmatprep.subr.bf16.mxu0 0
  %3520 = vmatpush1.bf16.msra.mxu0 %v3502
  %3521 = vmatprep.subr.bf16.mxu0 0
  %3522 = vmatpush1.bf16.msra.mxu0 %v3503
  %3523 = vmatprep.subr.bf16.mxu0 0
  %3524 = vmatpush1.bf16.msra.mxu0 %v3504
  %3525 = vmatprep.subr.bf16.mxu0 0
  %3526 = vmatpush1.bf16.msra.mxu0 %v3505
  %3527 = vmatprep.subr.bf16.mxu0 0
  %3528 = vmatpush1.bf16.msra.mxu0 %v3506
  %3529 = vmatprep.subr.bf16.mxu0 0
  %3530 = vmatpush1.bf16.msra.mxu0 %v3507
  %3531 = vmatprep.subr.bf16.mxu0 0
  %3532 = vmatpush1.bf16.msra.mxu0 %v3508
  %3533 = vmatprep.subr.bf16.mxu0 0
  %3534 = vmatpush1.bf16.msra.mxu0 0
  %3535 = vmatprep.subr.bf16.mxu0 0
  %3536 = vmatpush1.bf16.msra.mxu0 0
  %3537 = vmatprep.subr.bf16.mxu0 0
  %3538 = vmatpush1.bf16.msra.mxu0 0
  %3539 = vmatprep.subr.bf16.mxu0 0
  %3540 = vmatpush1.bf16.msra.mxu0 0
  %3541 = vmatprep.subr.bf16.mxu0 0
  %3542 = vmatpush1.bf16.msra.mxu0 0
  %3543 = vmatprep.subr.bf16.mxu0 0
  %3544 = vmatpush1.bf16.msra.mxu0 0
  %3545 = vmatprep.subr.bf16.mxu0 0
  %3546 = vmatpush1.bf16.msra.mxu0 0
  %3547 = vmatprep.subr.bf16.mxu0 0
  %3548 = vmatpush1.bf16.msra.mxu0 0
  %3549 = vmatprep.mubr.bf16.mxu0 0
  %3550 = vmatmul.mubr.bf16.gmra.mrb[0].mxu0 %v3461
  %v3551 = vpop.f32.mrb[0].mxu0
  %v3552 = vadd.f32 %v3443, %v3551
  %v3553 = vpop.f32.mrb[0].mxu0
  %v3554 = vpop.f32.mrb[0].mxu0
  %v3555 = vadd.f32 %v3443, %v3554
  %v3556 = vpop.f32.mrb[0].mxu0
  %3557 = vmatprep.mubr.bf16.mxu0 0
  %3558 = vmatmul.mubr.bf16.gmra.mrb[0].mxu0 %v3462
  %v3559 = vpop.f32.mrb[0].mxu0
  %v3560 = vadd.f32 %v3443, %v3559
  %v3561 = vpop.f32.mrb[0].mxu0
  %v3562 = vpop.f32.mrb[0].mxu0
  %v3563 = vadd.f32 %v3443, %v3562
  %v3564 = vpop.f32.mrb[0].mxu0
  %3565 = vmatprep.mubr.bf16.mxu0 0
  %3566 = vmatmul.mubr.bf16.gmra.mrb[0].mxu0 %v3463
  %v3567 = vpop.f32.mrb[0].mxu0
  %v3568 = vadd.f32 %v3443, %v3567
  %v3569 = vpop.f32.mrb[0].mxu0
  %v3570 = vpop.f32.mrb[0].mxu0
  %v3571 = vadd.f32 %v3443, %v3570
  %v3572 = vpop.f32.mrb[0].mxu0
  %3573 = vmatprep.mubr.bf16.mxu0 0
  %3574 = vmatmul.mubr.bf16.gmra.mrb[0].mxu0 %v3464
  %v3575 = vpop.f32.mrb[0].mxu0
  %v3576 = vadd.f32 %v3443, %v3575
  %v3577 = vpop.f32.mrb[0].mxu0
  %v3578 = vpop.f32.mrb[0].mxu0
  %v3579 = vadd.f32 %v3443, %v3578
  %v3580 = vpop.f32.mrb[0].mxu0
  %3581 = vdwg.mxu0
  %3582 = vst [vmem:[%s11] sm:$0xff] %v3552
  %3583 = vst [vmem:[%s11 + $0x8] sm:$0xff] %v3555
  %3584 = vst [vmem:[%s11 + $0x10] sm:$0xff] %v3560
  %3585 = vst [vmem:[%s11 + $0x18] sm:$0xff] %v3563
  %3586 = vst [vmem:[%s11 + $0x20] sm:$0xff] %v3568
  %3587 = vst [vmem:[%s11 + $0x28] sm:$0xff] %v3571
  %3588 = vst [vmem:[%s11 + $0x30] sm:$0xff] %v3576
  %3589 = vst [vmem:[%s11 + $0x38] sm:$0xff] %v3579
  // Predicated region
  $region46: #{char_model_forward.1} parent=0 // pred_check
    _
  $region47: #{char_model_forward.1} parent=0 // pred_check_branch
    %3591 = sbr.rel (0) target = $region49
  $region48: #{char_model_forward.1} parent=0 // pred_region
    _
  $region49: #{char_model_forward.1} parent=0 // pred_fallthru
    _
  // Predicated region
  $region50: #{char_model_forward.1} parent=0 // pred_check
    _
  $region51: #{char_model_forward.1} parent=0 // pred_check_branch
    %3593 = sbr.rel (0) target = $region53
  $region52: #{char_model_forward.1} parent=0 // pred_region
    _
  $region53: #{char_model_forward.1} parent=0 // pred_fallthru
    _
  // Predicated region
  $region54: #{char_model_forward.1} parent=0 // pred_check
    _
  $region55: #{char_model_forward.1} parent=0 // pred_check_branch
    %3595 = sbr.rel (0) target = $region57
  $region56: #{char_model_forward.1} parent=0 // pred_region
    _
  $region57: #{char_model_forward.1} parent=0 // pred_fallthru
    _
  // Predicated region
  $region58: #{char_model_forward.1} parent=0 // pred_check
    _
  $region59: #{char_model_forward.1} parent=0 // pred_check_branch
    %3597 = sbr.rel (0) target = $region61
  $region60: #{char_model_forward.1} parent=0 // pred_region
    _
  $region61: #{char_model_forward.1} parent=0 // pred_fallthru
    _
  // Predicated region
  $region62: #{char_model_forward.1} parent=0 // pred_check
    _
  $region63: #{char_model_forward.1} parent=0 // pred_check_branch
    %3599 = sbr.rel (0) target = $region65
  $region64: #{char_model_forward.1} parent=0 // pred_region
    _
  $region65: #{char_model_forward.1} parent=0 // pred_fallthru
    _
  // Predicated region
  $region66: #{char_model_forward.1} parent=0 // pred_check
    _
  $region67: #{char_model_forward.1} parent=0 // pred_check_branch
    %3601 = sbr.rel (0) target = $region69
  $region68: #{char_model_forward.1} parent=0 // pred_region
    _
  $region69: #{char_model_forward.1} parent=0 // pred_fallthru
    _

</llo_original>
